<compile_context>
chip_gen: v5e
topology: v5e:2x2
jax: 0.10.0
libtpu: 0.0.40
codegen_flags: <defaults>
</compile_context>

<pallas_src>
import functools
import math

import jax
import jax.numpy as jnp
from jax import lax
from jax.experimental import pallas as pl
from jax.experimental.pallas import tpu as pltpu


def _round_up(x, m):
    return ((x + m - 1) // m) * m


def _vmem_budget_bytes():
    """~75% of physical VMEM: 48 MiB on v7x (64 MiB), ~96 MiB on v5e/v6e (128 MiB)."""
    cap = 64 * 1024 * 1024  # conservative default (v7x-sized VMEM)
    try:
        cap = int(pltpu.get_tpu_info().vmem_capacity_bytes)
    except Exception:
        pass
    return max(32 * 1024 * 1024, min((cap * 3) // 4, 112 * 1024 * 1024))


def _pick_time_chunk(T, Bp, Ip, Hp, vmem_budget, max_chunk):
    """Largest time chunk whose per-chunk buffers fit comfortably in VMEM."""
    w_bytes = 2  # bf16 weights
    fixed = (Ip + Hp) * 4 * Hp * w_bytes * 2      # W_ih + W_hh (worst case 2 buffers)
    fixed += 2 * 4 * Hp * 4                       # fused biases
    fixed += 2 * Bp * Hp * 4                      # h / c recurrent state
    per_t = (Bp * Ip * 4 * 3                      # x chunk (<= f32, up to 3 buffers)
             + Bp * Hp * 4 * 2                    # output chunk (double-buffered)
             + Bp * 4 * Hp * 4)                   # hoisted gate pre-activations
    avail = vmem_budget // 2 - fixed              # generous headroom for compiler temps
    by_vmem = avail // per_t if avail > 0 else 1
    return int(max(1, min(max_chunk, T, by_vmem)))


def _bilstm_kernel(x_ref, w_ih_ref, w_hh_ref, b_ref, out_ref,
                   h_scr, c_scr, gx_scr, *, hp, tc, n_chunks, t_real, t_pad):
    """One (direction, time-chunk) grid step of the bidirectional LSTM."""
    d = pl.program_id(0)    # 0 = forward sweep, 1 = reverse sweep
    ci = pl.program_id(1)   # chunk index within this direction's sweep

    # Reset recurrent state at the start of each direction's time sweep.
    @pl.when(ci == 0)
    def _():
        h_scr[...] = jnp.zeros_like(h_scr)
        c_scr[...] = jnp.zeros_like(c_scr)

    bp = h_scr.shape[0]
    ip = x_ref.shape[2]

    # ---- Hoisted input projection: one tall (tc*Bp, Ip) @ (Ip, 4*Hp) matmul ----
    x_chunk = x_ref[...].astype(jnp.bfloat16)                      # (tc, Bp, Ip)
    gx = jnp.dot(x_chunk.reshape(tc * bp, ip), w_ih_ref[0],
                 preferred_element_type=jnp.float32)               # (tc*Bp, 4*Hp)
    gx = gx + b_ref[0]                                             # fused bias, once/chunk
    gx_scr[...] = gx.reshape(tc, bp, 4 * hp)

    w_hh = w_hh_ref[0]                                             # (Hp, 4*Hp) bf16

    # Padded-time offset of the x/out block this grid step covers.
    block_t0 = (ci * (1 - d) + (n_chunks - 1 - ci) * d) * tc

    def step(l, carry):
        h, c = carry
        # In-chunk time index: forward walks 0..tc-1, reverse walks tc-1..0.
        li = l * (1 - d) + (tc - 1 - l) * d
        gates = gx_scr[li] + jnp.dot(h.astype(jnp.bfloat16), w_hh,
                                     preferred_element_type=jnp.float32)
        # Lane-aligned gate chunks (hp is a multiple of 128). PyTorch order i,f,g,o.
        ig = jax.nn.sigmoid(gates[:, 0 * hp:1 * hp])
        fg = jax.nn.sigmoid(gates[:, 1 * hp:2 * hp])
        gg = jnp.tanh(gates[:, 2 * hp:3 * hp])
        og = jax.nn.sigmoid(gates[:, 3 * hp:4 * hp])
        c_new = fg * c + ig * gg
        h_new = og * jnp.tanh(c_new)
        if t_pad:
            # Ragged T: padded timesteps (time >= t_real) must not disturb the
            # recurrent state (the reverse sweep meets them *before* real data).
            m = (block_t0 + li < t_real).astype(jnp.float32)
            h_new = m * h_new + (1.0 - m) * h
            c_new = m * c_new + (1.0 - m) * c
        out_ref[li] = h_new.astype(out_ref.dtype)
        return h_new, c_new

    h_fin, c_fin = lax.fori_loop(0, tc, step, (h_scr[...], c_scr[...]),
                                 unroll=True)
    h_scr[...] = h_fin
    c_scr[...] = c_fin


def _pack_direction(w_ih, w_hh, b_ih, b_hh, ip, hp):
    """Pad one LSTMCell's params per-gate to (ip, 4*hp)/(hp, 4*hp)/(1, 4*hp).

    PyTorch layout in: weight_ih (4H, I), weight_hh (4H, H), biases (4H,).
    Output layout: y = x @ W with gate g occupying columns [g*hp, (g+1)*hp).
    """
    four_h, i_dim = w_ih.shape
    h_dim = four_h // 4

    w_ih4 = w_ih.reshape(4, h_dim, i_dim)
    w_hh4 = w_hh.reshape(4, h_dim, h_dim)
    b4 = (b_ih + b_hh).reshape(4, h_dim)

    w_ih_p = jnp.zeros((4, hp, ip), w_ih.dtype).at[:, :h_dim, :i_dim].set(w_ih4)
    w_hh_p = jnp.zeros((4, hp, hp), w_hh.dtype).at[:, :h_dim, :h_dim].set(w_hh4)
    b_p = jnp.zeros((4, hp), b_ih.dtype).at[:, :h_dim].set(b4)

    w_ih_t = jnp.transpose(w_ih_p, (2, 0, 1)).reshape(ip, 4 * hp)
    w_hh_t = jnp.transpose(w_hh_p, (2, 0, 1)).reshape(hp, 4 * hp)
    return w_ih_t, w_hh_t, b_p.reshape(1, 4 * hp)


def bilstm_forward(x, params, batch_first=False, max_time_chunk=16):
    """biLSTM.forward(x, x_mask=None) — returns (T, B, 2H) (or (B, T, 2H))."""
    (w_ih_f, w_hh_f, b_ih_f, b_hh_f,
     w_ih_r, w_hh_r, b_ih_r, b_hh_r) = params

    if batch_first:
        x = jnp.swapaxes(x, 0, 1)
    T, B, I = x.shape
    H = w_hh_f.shape[1]

    # Lane/sublane-aligned padded sizes.
    Bp = _round_up(max(B, 8), 8)
    Ip = _round_up(max(I, 128), 128)
    Hp = _round_up(max(H, 128), 128)

    vmem_budget = _vmem_budget_bytes()
    TC = _pick_time_chunk(T, Bp, Ip, Hp, vmem_budget, max_time_chunk)
    NC = (T + TC - 1) // TC
    Tp = NC * TC

    # Only materialize a padded copy of x when the shape actually needs it;
    # the pad + bf16 cast are fused into one pass (bf16 also halves x DMA bytes).
    needs_pad = (B != Bp) or (I != Ip) or (Tp != T)
    if needs_pad:
        x_in = jnp.zeros((Tp, Bp, Ip), jnp.bfloat16).at[:T, :B, :I].set(
            x.astype(jnp.bfloat16))
    else:
        x_in = x  # already aligned: kernel casts each chunk to bf16 in VMEM

    wi_f, wh_f, bb_f = _pack_direction(w_ih_f, w_hh_f, b_ih_f, b_hh_f, Ip, Hp)
    wi_r, wh_r, bb_r = _pack_direction(w_ih_r, w_hh_r, b_ih_r, b_hh_r, Ip, Hp)
    w_ih = jnp.stack([wi_f, wi_r]).astype(jnp.bfloat16)   # (2, Ip, 4*Hp)
    w_hh = jnp.stack([wh_f, wh_r]).astype(jnp.bfloat16)   # (2, Hp, 4*Hp)
    bias = jnp.stack([bb_f, bb_r]).astype(jnp.float32)    # (2, 1, 4*Hp)

    kernel = functools.partial(_bilstm_kernel, hp=Hp, tc=TC, n_chunks=NC,
                               t_real=T, t_pad=Tp - T)

    # Forward (d=0) walks time chunks 0..NC-1; reverse (d=1) walks NC-1..0 and
    # writes each hidden state into the same chunk (reversed within the chunk),
    # matching output_r.insert(0, ht_r) alignment in the PyTorch module.
    def time_block(d, t):
        return t * (1 - d) + (NC - 1 - t) * d

    out_shape = jax.ShapeDtypeStruct((Tp, Bp, 2 * Hp), x.dtype)

    def build(pipeline_hints):
        w_kw = dict(pipeline_mode=pl.Buffered(1)) if pipeline_hints else {}
        x_kw = (dict(pipeline_mode=pl.Buffered(3))
                if (pipeline_hints and NC > 2) else {})
        return pl.pallas_call(
            kernel,
            out_shape=out_shape,
            grid_spec=pltpu.PrefetchScalarGridSpec(
                num_scalar_prefetch=0,
                grid=(2, NC),
                in_specs=[
                    # x time-chunk
                    pl.BlockSpec((TC, Bp, Ip),
                                 lambda d, t: (time_block(d, t), 0, 0), **x_kw),
                    # resident fused weights / bias per direction
                    pl.BlockSpec((1, Ip, 4 * Hp), lambda d, t: (d, 0, 0), **w_kw),
                    pl.BlockSpec((1, Hp, 4 * Hp), lambda d, t: (d, 0, 0), **w_kw),
                    pl.BlockSpec((1, 1, 4 * Hp), lambda d, t: (d, 0, 0), **w_kw),
                ],
                # fused bidirectional output: fwd -> cols [0,Hp), rev -> [Hp,2Hp)
                out_specs=pl.BlockSpec((TC, Bp, Hp),
                                       lambda d, t: (time_block(d, t), 0, d)),
                scratch_shapes=[
                    pltpu.VMEM((Bp, Hp), jnp.float32),        # h state
                    pltpu.VMEM((Bp, Hp), jnp.float32),        # c state
                    pltpu.VMEM((TC, Bp, 4 * Hp), jnp.float32),  # hoisted x @ W_ih + b
                ],
            ),
            compiler_params=pltpu.CompilerParams(
                dimension_semantics=("parallel", "arbitrary"),
                vmem_limit_bytes=vmem_budget,
            ),
        )

    try:
        out = build(True)(x_in, w_ih, w_hh, bias)
        out = jax.block_until_ready(out)
    except Exception:
        # Fallback without pipeline_mode hints (older JAX / unsupported counts).
        out = build(False)(x_in, w_ih, w_hh, bias)

    if H == Hp:
        y = out[:T, :B, :]           # already in the final fused (T, B, 2H) layout
    else:
        y = jnp.concatenate([out[:T, :B, :H], out[:T, :B, Hp:Hp + H]], axis=2)
    if batch_first:
        y = jnp.swapaxes(y, 0, 1)
    return y


def init_params(key, input_size, hidden_size, dtype=jnp.float32):
    """Deterministic init mirroring nn.LSTMCell: U(-1/sqrt(H), 1/sqrt(H))."""
    k = 1.0 / math.sqrt(hidden_size)
    keys = jax.random.split(key, 8)

    def u(kk, shape):
        return jax.random.uniform(kk, shape, dtype, -k, k)

    H, I = hidden_size, input_size
    return (u(keys[0], (4 * H, I)), u(keys[1], (4 * H, H)),
            u(keys[2], (4 * H,)), u(keys[3], (4 * H,)),
            u(keys[4], (4 * H, I)), u(keys[5], (4 * H, H)),
            u(keys[6], (4 * H,)), u(keys[7], (4 * H,)))


def bilstm_ref(x, params, batch_first=False):
    """Pure-JAX f32 reference mirroring the PyTorch biLSTM.forward (x_mask=None)."""
    (w_ih_f, w_hh_f, b_ih_f, b_hh_f,
     w_ih_r, w_hh_r, b_ih_r, b_hh_r) = params
    if batch_first:
        x = jnp.swapaxes(x, 0, 1)
    T, B, _ = x.shape
    H = w_hh_f.shape[1]

    def cell(xt, h, c, w_ih, w_hh, b_ih, b_hh):
        gates = xt @ w_ih.T + b_ih + h @ w_hh.T + b_hh
        i = jax.nn.sigmoid(gates[:, :H])
        f = jax.nn.sigmoid(gates[:, H:2 * H])
        g = jnp.tanh(gates[:, 2 * H:3 * H])
        o = jax.nn.sigmoid(gates[:, 3 * H:])
        c2 = f * c + i * g
        h2 = o * jnp.tanh(c2)
        return h2, c2

    h_f = jnp.zeros((B, H), x.dtype)
    c_f = jnp.zeros((B, H), x.dtype)
    h_r = jnp.zeros((B, H), x.dtype)
    c_r = jnp.zeros((B, H), x.dtype)
    out_f, out_r = [], []
    for step in range(T):
        j = T - 1 - step
        h_f, c_f = cell(x[step], h_f, c_f, w_ih_f, w_hh_f, b_ih_f, b_hh_f)
        h_r, c_r = cell(x[j], h_r, c_r, w_ih_r, w_hh_r, b_ih_r, b_hh_r)
        out_f.append(h_f)
        out_r.insert(0, h_r)
    y = jnp.concatenate([jnp.stack(out_f), jnp.stack(out_r)], axis=2)
    if batch_first:
        y = jnp.swapaxes(y, 0, 1)
    return y


if __name__ == "__main__":
    T, B, I, H = 8, 2, 16, 32
    key = jax.random.PRNGKey(0)
    kx, kp = jax.random.split(key, 2)

    x = jax.random.normal(kx, (T, B, I), jnp.float32)   # (seq, batch, input)
    params = init_params(kp, I, H)

    y = bilstm_forward(x, params, batch_first=False)
    jax.block_until_ready(y)

    y_ref = bilstm_ref(x, params, batch_first=False)
    assert y.shape == (T, B, 2 * H), y.shape
    # bf16 MXU inputs (weights / x / h) vs the pure-f32 reference: allow a
    # modest tolerance; structural bugs would show errors O(0.1+).
    assert jnp.allclose(y, y_ref, atol=5e-2, rtol=5e-2), (
        float(jnp.max(jnp.abs(y - y_ref))))

    print("KERNEL_OK")
</pallas_src>

<mosaic_0001>
module attributes {stable_mosaic.version = 11 : i64} {
  func.func @_bilstm_kernel(%arg0: i32, %arg1: i32, %arg2: memref<8x8x128xbf16, #tpu.memory_space<vmem>>, %arg3: memref<1x128x512xbf16, #tpu.memory_space<vmem>>, %arg4: memref<1x128x512xbf16, #tpu.memory_space<vmem>>, %arg5: memref<1x1x512xf32, #tpu.memory_space<vmem>>, %arg6: memref<8x8x128xf32, #tpu.memory_space<vmem>>, %arg7: memref<8x128xf32, #tpu.memory_space<vmem>>, %arg8: memref<8x128xf32, #tpu.memory_space<vmem>>, %arg9: memref<8x8x512xf32, #tpu.memory_space<vmem>>) attributes {dimension_semantics = [#tpu.dimension_semantics<parallel>, #tpu.dimension_semantics<arbitrary>], iteration_bounds = array<i64: 2, 1>, scalar_prefetch = 0 : i64, scratch_operands = 3 : i64, tpu.core_type = #tpu.core_type<tc>, window_params = [{transform_indices = @transform_0, window_bounds = array<i64: 8, 8, 128>}, {pipeline_mode = #tpu.pipeline_mode<synchronous>, transform_indices = @transform_1, window_bounds = array<i64: 1, 128, 512>}, {pipeline_mode = #tpu.pipeline_mode<synchronous>, transform_indices = @transform_2, window_bounds = array<i64: 1, 128, 512>}, {pipeline_mode = #tpu.pipeline_mode<synchronous>, transform_indices = @transform_3, window_bounds = array<i64: 1, 1, 512>}, {transform_indices = @transform_4, window_bounds = array<i64: 8, 8, 128>}]} {
    %c0_i32 = arith.constant 0 : i32
    %0 = arith.cmpi eq, %arg1, %c0_i32 : i32
    %1 = arith.extui %0 : i1 to i32
    %c0_i32_0 = arith.constant 0 : i32
    %2 = arith.cmpi ne, %1, %c0_i32_0 : i32
    scf.if %2 {
      %cst_104 = arith.constant 0.000000e+00 : f32
      %340 = vector.broadcast %cst_104 : f32 to vector<8x128xf32>
      %c0_105 = arith.constant 0 : index
      %c0_106 = arith.constant 0 : index
      %341 = vector.load %arg7[%c0_105, %c0_106] : memref<8x128xf32, #tpu.memory_space<vmem>>, vector<8x128xf32>
      tpu.vector_store %arg7[%c0_105, %c0_106], %340 {strides = array<i32>} : memref<8x128xf32, #tpu.memory_space<vmem>>, vector<8x128xf32>,
      %cst_107 = arith.constant 0.000000e+00 : f32
      %342 = vector.broadcast %cst_107 : f32 to vector<8x128xf32>
      %c0_108 = arith.constant 0 : index
      %c0_109 = arith.constant 0 : index
      %343 = vector.load %arg8[%c0_108, %c0_109] : memref<8x128xf32, #tpu.memory_space<vmem>>, vector<8x128xf32>
      tpu.vector_store %arg8[%c0_108, %c0_109], %342 {strides = array<i32>} : memref<8x128xf32, #tpu.memory_space<vmem>>, vector<8x128xf32>,
    } else {
    }
    %c0 = arith.constant 0 : index
    %c0_1 = arith.constant 0 : index
    %c0_2 = arith.constant 0 : index
    %3 = vector.load %arg2[%c0, %c0_1, %c0_2] : memref<8x8x128xbf16, #tpu.memory_space<vmem>>, vector<8x8x128xbf16>
    %4 = vector.shape_cast %3 : vector<8x8x128xbf16> to vector<64x128xbf16>
    %c0_3 = arith.constant 0 : index
    %c0_4 = arith.constant 0 : index
    %c0_5 = arith.constant 0 : index
    %5 = vector.load %arg3[%c0_3, %c0_4, %c0_5] : memref<1x128x512xbf16, #tpu.memory_space<vmem>>, vector<1x128x512xbf16>
    %6 = vector.shape_cast %5 : vector<1x128x512xbf16> to vector<128x512xbf16>
    %cst = arith.constant dense<0.000000e+00> : vector<64x512xf32>
    %7 = tpu.matmul %4, %6, %cst {dimension_numbers = #tpu.dot_dimension_numbers<[1], [0], [0], [1], [0, 0, 1, 1], [], []>} : vector<64x128xbf16>, vector<128x512xbf16>, vector<64x512xf32> -> vector<64x512xf32>
    %c0_6 = arith.constant 0 : index
    %c0_7 = arith.constant 0 : index
    %c0_8 = arith.constant 0 : index
    %8 = vector.load %arg5[%c0_6, %c0_7, %c0_8] : memref<1x1x512xf32, #tpu.memory_space<vmem>>, vector<1x1x512xf32>
    %9 = vector.shape_cast %8 : vector<1x1x512xf32> to vector<1x512xf32>
    %10 = vector.broadcast %9 : vector<1x512xf32> to vector<64x512xf32>
    %11 = arith.addf %7, %10 : vector<64x512xf32>
    %12 = vector.shape_cast %11 : vector<64x512xf32> to vector<8x8x512xf32>
    %c0_9 = arith.constant 0 : index
    %c0_10 = arith.constant 0 : index
    %c0_11 = arith.constant 0 : index
    %13 = vector.load %arg9[%c0_9, %c0_10, %c0_11] : memref<8x8x512xf32, #tpu.memory_space<vmem>>, vector<8x8x512xf32>
    tpu.vector_store %arg9[%c0_9, %c0_10, %c0_11], %12 {strides = array<i32>} : memref<8x8x512xf32, #tpu.memory_space<vmem>>, vector<8x8x512xf32>,
    %c0_12 = arith.constant 0 : index
    %c0_13 = arith.constant 0 : index
    %c0_14 = arith.constant 0 : index
    %14 = vector.load %arg4[%c0_12, %c0_13, %c0_14] : memref<1x128x512xbf16, #tpu.memory_space<vmem>>, vector<1x128x512xbf16>
    %15 = vector.shape_cast %14 : vector<1x128x512xbf16> to vector<128x512xbf16>
    %c0_15 = arith.constant 0 : index
    %c0_16 = arith.constant 0 : index
    %16 = vector.load %arg7[%c0_15, %c0_16] : memref<8x128xf32, #tpu.memory_space<vmem>>, vector<8x128xf32>
    %c0_17 = arith.constant 0 : index
    %c0_18 = arith.constant 0 : index
    %17 = vector.load %arg8[%c0_17, %c0_18] : memref<8x128xf32, #tpu.memory_space<vmem>>, vector<8x128xf32>
    %c0_i32_19 = arith.constant 0 : i32
    %c1_i32 = arith.constant 1 : i32
    %18 = arith.subi %c1_i32, %arg0 : i32
    %19 = arith.muli %c0_i32_19, %18 : i32
    %c7_i32 = arith.constant 7 : i32
    %20 = arith.subi %c7_i32, %c0_i32_19 : i32
    %21 = arith.muli %20, %arg0 : i32
    %22 = arith.addi %19, %21 : i32
    %23 = arith.index_cast %22 : i32 to index
    %c0_20 = arith.constant 0 : index
    %c0_21 = arith.constant 0 : index
    %24 = vector.load %arg9[%23, %c0_20, %c0_21] : memref<8x8x512xf32, #tpu.memory_space<vmem>>, vector<1x8x512xf32>
    %25 = vector.shape_cast %24 : vector<1x8x512xf32> to vector<8x512xf32>
    %26 = arith.truncf %16 : vector<8x128xf32> to vector<8x128xbf16>
    %cst_22 = arith.constant dense<0.000000e+00> : vector<8x512xf32>
    %27 = tpu.matmul %26, %15, %cst_22 {dimension_numbers = #tpu.dot_dimension_numbers<[1], [0], [0], [1], [0, 0, 1, 1], [], []>} : vector<8x128xbf16>, vector<128x512xbf16>, vector<8x512xf32> -> vector<8x512xf32>
    %28 = arith.addf %25, %27 : vector<8x512xf32>
    %29 = vector.extract_strided_slice %28 {offsets = [0, 0], sizes = [8, 128], strides = [1, 1]} : vector<8x512xf32> to vector<8x128xf32>
    %30 = arith.negf %29 : vector<8x128xf32>
    %31 = math.exp %30 : vector<8x128xf32>
    %cst_23 = arith.constant 1.000000e+00 : f32
    %32 = vector.broadcast %cst_23 : f32 to vector<8x128xf32>
    %33 = arith.addf %32, %31 : vector<8x128xf32>
    %34 = arith.divf %32, %33 : vector<8x128xf32>
    %35 = vector.extract_strided_slice %28 {offsets = [0, 128], sizes = [8, 128], strides = [1, 1]} : vector<8x512xf32> to vector<8x128xf32>
    %36 = arith.negf %35 : vector<8x128xf32>
    %37 = math.exp %36 : vector<8x128xf32>
    %cst_24 = arith.constant 1.000000e+00 : f32
    %38 = vector.broadcast %cst_24 : f32 to vector<8x128xf32>
    %39 = arith.addf %38, %37 : vector<8x128xf32>
    %40 = arith.divf %38, %39 : vector<8x128xf32>
    %41 = vector.extract_strided_slice %28 {offsets = [0, 256], sizes = [8, 128], strides = [1, 1]} : vector<8x512xf32> to vector<8x128xf32>
    %42 = math.tanh %41 : vector<8x128xf32>
    %43 = vector.extract_strided_slice %28 {offsets = [0, 384], sizes = [8, 128], strides = [1, 1]} : vector<8x512xf32> to vector<8x128xf32>
    %44 = arith.negf %43 : vector<8x128xf32>
    %45 = math.exp %44 : vector<8x128xf32>
    %cst_25 = arith.constant 1.000000e+00 : f32
    %46 = vector.broadcast %cst_25 : f32 to vector<8x128xf32>
    %47 = arith.addf %46, %45 : vector<8x128xf32>
    %48 = arith.divf %46, %47 : vector<8x128xf32>
    %49 = arith.mulf %40, %17 : vector<8x128xf32>
    %50 = arith.mulf %34, %42 : vector<8x128xf32>
    %51 = arith.addf %49, %50 : vector<8x128xf32>
    %52 = math.tanh %51 : vector<8x128xf32>
    %53 = arith.mulf %48, %52 : vector<8x128xf32>
    %54 = arith.index_cast %22 : i32 to index
    %c0_26 = arith.constant 0 : index
    %c0_27 = arith.constant 0 : index
    %55 = vector.load %arg6[%54, %c0_26, %c0_27] : memref<8x8x128xf32, #tpu.memory_space<vmem>>, vector<1x8x128xf32>
    %56 = vector.shape_cast %55 : vector<1x8x128xf32> to vector<8x128xf32>
    %57 = vector.shape_cast %53 : vector<8x128xf32> to vector<1x8x128xf32>
    tpu.vector_store %arg6[%54, %c0_26, %c0_27], %57 {strides = array<i32>} : memref<8x8x128xf32, #tpu.memory_space<vmem>>, vector<1x8x128xf32>,
    %c1_i32_28 = arith.constant 1 : i32
    %c1_i32_29 = arith.constant 1 : i32
    %58 = arith.subi %c1_i32_29, %arg0 : i32
    %59 = arith.muli %c1_i32_28, %58 : i32
    %c7_i32_30 = arith.constant 7 : i32
    %60 = arith.subi %c7_i32_30, %c1_i32_28 : i32
    %61 = arith.muli %60, %arg0 : i32
    %62 = arith.addi %59, %61 : i32
    %63 = arith.index_cast %62 : i32 to index
    %c0_31 = arith.constant 0 : index
    %c0_32 = arith.constant 0 : index
    %64 = vector.load %arg9[%63, %c0_31, %c0_32] : memref<8x8x512xf32, #tpu.memory_space<vmem>>, vector<1x8x512xf32>
    %65 = vector.shape_cast %64 : vector<1x8x512xf32> to vector<8x512xf32>
    %66 = arith.truncf %53 : vector<8x128xf32> to vector<8x128xbf16>
    %cst_33 = arith.constant dense<0.000000e+00> : vector<8x512xf32>
    %67 = tpu.matmul %66, %15, %cst_33 {dimension_numbers = #tpu.dot_dimension_numbers<[1], [0], [0], [1], [0, 0, 1, 1], [], []>} : vector<8x128xbf16>, vector<128x512xbf16>, vector<8x512xf32> -> vector<8x512xf32>
    %68 = arith.addf %65, %67 : vector<8x512xf32>
    %69 = vector.extract_strided_slice %68 {offsets = [0, 0], sizes = [8, 128], strides = [1, 1]} : vector<8x512xf32> to vector<8x128xf32>
    %70 = arith.negf %69 : vector<8x128xf32>
    %71 = math.exp %70 : vector<8x128xf32>
    %cst_34 = arith.constant 1.000000e+00 : f32
    %72 = vector.broadcast %cst_34 : f32 to vector<8x128xf32>
    %73 = arith.addf %72, %71 : vector<8x128xf32>
    %74 = arith.divf %72, %73 : vector<8x128xf32>
    %75 = vector.extract_strided_slice %68 {offsets = [0, 128], sizes = [8, 128], strides = [1, 1]} : vector<8x512xf32> to vector<8x128xf32>
    %76 = arith.negf %75 : vector<8x128xf32>
    %77 = math.exp %76 : vector<8x128xf32>
    %cst_35 = arith.constant 1.000000e+00 : f32
    %78 = vector.broadcast %cst_35 : f32 to vector<8x128xf32>
    %79 = arith.addf %78, %77 : vector<8x128xf32>
    %80 = arith.divf %78, %79 : vector<8x128xf32>
    %81 = vector.extract_strided_slice %68 {offsets = [0, 256], sizes = [8, 128], strides = [1, 1]} : vector<8x512xf32> to vector<8x128xf32>
    %82 = math.tanh %81 : vector<8x128xf32>
    %83 = vector.extract_strided_slice %68 {offsets = [0, 384], sizes = [8, 128], strides = [1, 1]} : vector<8x512xf32> to vector<8x128xf32>
    %84 = arith.negf %83 : vector<8x128xf32>
    %85 = math.exp %84 : vector<8x128xf32>
    %cst_36 = arith.constant 1.000000e+00 : f32
    %86 = vector.broadcast %cst_36 : f32 to vector<8x128xf32>
    %87 = arith.addf %86, %85 : vector<8x128xf32>
    %88 = arith.divf %86, %87 : vector<8x128xf32>
    %89 = arith.mulf %80, %51 : vector<8x128xf32>
    %90 = arith.mulf %74, %82 : vector<8x128xf32>
    %91 = arith.addf %89, %90 : vector<8x128xf32>
    %92 = math.tanh %91 : vector<8x128xf32>
    %93 = arith.mulf %88, %92 : vector<8x128xf32>
    %94 = arith.index_cast %62 : i32 to index
    %c0_37 = arith.constant 0 : index
    %c0_38 = arith.constant 0 : index
    %95 = vector.load %arg6[%94, %c0_37, %c0_38] : memref<8x8x128xf32, #tpu.memory_space<vmem>>, vector<1x8x128xf32>
    %96 = vector.shape_cast %95 : vector<1x8x128xf32> to vector<8x128xf32>
    %97 = vector.shape_cast %93 : vector<8x128xf32> to vector<1x8x128xf32>
    tpu.vector_store %arg6[%94, %c0_37, %c0_38], %97 {strides = array<i32>} : memref<8x8x128xf32, #tpu.memory_space<vmem>>, vector<1x8x128xf32>,
    %c2_i32 = arith.constant 2 : i32
    %c1_i32_39 = arith.constant 1 : i32
    %98 = arith.subi %c1_i32_39, %arg0 : i32
    %99 = arith.muli %c2_i32, %98 : i32
    %c7_i32_40 = arith.constant 7 : i32
    %100 = arith.subi %c7_i32_40, %c2_i32 : i32
    %101 = arith.muli %100, %arg0 : i32
    %102 = arith.addi %99, %101 : i32
    %103 = arith.index_cast %102 : i32 to index
    %c0_41 = arith.constant 0 : index
    %c0_42 = arith.constant 0 : index
    %104 = vector.load %arg9[%103, %c0_41, %c0_42] : memref<8x8x512xf32, #tpu.memory_space<vmem>>, vector<1x8x512xf32>
    %105 = vector.shape_cast %104 : vector<1x8x512xf32> to vector<8x512xf32>
    %106 = arith.truncf %93 : vector<8x128xf32> to vector<8x128xbf16>
    %cst_43 = arith.constant dense<0.000000e+00> : vector<8x512xf32>
    %107 = tpu.matmul %106, %15, %cst_43 {dimension_numbers = #tpu.dot_dimension_numbers<[1], [0], [0], [1], [0, 0, 1, 1], [], []>} : vector<8x128xbf16>, vector<128x512xbf16>, vector<8x512xf32> -> vector<8x512xf32>
    %108 = arith.addf %105, %107 : vector<8x512xf32>
    %109 = vector.extract_strided_slice %108 {offsets = [0, 0], sizes = [8, 128], strides = [1, 1]} : vector<8x512xf32> to vector<8x128xf32>
    %110 = arith.negf %109 : vector<8x128xf32>
    %111 = math.exp %110 : vector<8x128xf32>
    %cst_44 = arith.constant 1.000000e+00 : f32
    %112 = vector.broadcast %cst_44 : f32 to vector<8x128xf32>
    %113 = arith.addf %112, %111 : vector<8x128xf32>
    %114 = arith.divf %112, %113 : vector<8x128xf32>
    %115 = vector.extract_strided_slice %108 {offsets = [0, 128], sizes = [8, 128], strides = [1, 1]} : vector<8x512xf32> to vector<8x128xf32>
    %116 = arith.negf %115 : vector<8x128xf32>
    %117 = math.exp %116 : vector<8x128xf32>
    %cst_45 = arith.constant 1.000000e+00 : f32
    %118 = vector.broadcast %cst_45 : f32 to vector<8x128xf32>
    %119 = arith.addf %118, %117 : vector<8x128xf32>
    %120 = arith.divf %118, %119 : vector<8x128xf32>
    %121 = vector.extract_strided_slice %108 {offsets = [0, 256], sizes = [8, 128], strides = [1, 1]} : vector<8x512xf32> to vector<8x128xf32>
    %122 = math.tanh %121 : vector<8x128xf32>
    %123 = vector.extract_strided_slice %108 {offsets = [0, 384], sizes = [8, 128], strides = [1, 1]} : vector<8x512xf32> to vector<8x128xf32>
    %124 = arith.negf %123 : vector<8x128xf32>
    %125 = math.exp %124 : vector<8x128xf32>
    %cst_46 = arith.constant 1.000000e+00 : f32
    %126 = vector.broadcast %cst_46 : f32 to vector<8x128xf32>
    %127 = arith.addf %126, %125 : vector<8x128xf32>
    %128 = arith.divf %126, %127 : vector<8x128xf32>
    %129 = arith.mulf %120, %91 : vector<8x128xf32>
    %130 = arith.mulf %114, %122 : vector<8x128xf32>
    %131 = arith.addf %129, %130 : vector<8x128xf32>
    %132 = math.tanh %131 : vector<8x128xf32>
    %133 = arith.mulf %128, %132 : vector<8x128xf32>
    %134 = arith.index_cast %102 : i32 to index
    %c0_47 = arith.constant 0 : index
    %c0_48 = arith.constant 0 : index
    %135 = vector.load %arg6[%134, %c0_47, %c0_48] : memref<8x8x128xf32, #tpu.memory_space<vmem>>, vector<1x8x128xf32>
    %136 = vector.shape_cast %135 : vector<1x8x128xf32> to vector<8x128xf32>
    %137 = vector.shape_cast %133 : vector<8x128xf32> to vector<1x8x128xf32>
    tpu.vector_store %arg6[%134, %c0_47, %c0_48], %137 {strides = array<i32>} : memref<8x8x128xf32, #tpu.memory_space<vmem>>, vector<1x8x128xf32>,
    %c3_i32 = arith.constant 3 : i32
    %c1_i32_49 = arith.constant 1 : i32
    %138 = arith.subi %c1_i32_49, %arg0 : i32
    %139 = arith.muli %c3_i32, %138 : i32
    %c7_i32_50 = arith.constant 7 : i32
    %140 = arith.subi %c7_i32_50, %c3_i32 : i32
    %141 = arith.muli %140, %arg0 : i32
    %142 = arith.addi %139, %141 : i32
    %143 = arith.index_cast %142 : i32 to index
    %c0_51 = arith.constant 0 : index
    %c0_52 = arith.constant 0 : index
    %144 = vector.load %arg9[%143, %c0_51, %c0_52] : memref<8x8x512xf32, #tpu.memory_space<vmem>>, vector<1x8x512xf32>
    %145 = vector.shape_cast %144 : vector<1x8x512xf32> to vector<8x512xf32>
    %146 = arith.truncf %133 : vector<8x128xf32> to vector<8x128xbf16>
    %cst_53 = arith.constant dense<0.000000e+00> : vector<8x512xf32>
    %147 = tpu.matmul %146, %15, %cst_53 {dimension_numbers = #tpu.dot_dimension_numbers<[1], [0], [0], [1], [0, 0, 1, 1], [], []>} : vector<8x128xbf16>, vector<128x512xbf16>, vector<8x512xf32> -> vector<8x512xf32>
    %148 = arith.addf %145, %147 : vector<8x512xf32>
    %149 = vector.extract_strided_slice %148 {offsets = [0, 0], sizes = [8, 128], strides = [1, 1]} : vector<8x512xf32> to vector<8x128xf32>
    %150 = arith.negf %149 : vector<8x128xf32>
    %151 = math.exp %150 : vector<8x128xf32>
    %cst_54 = arith.constant 1.000000e+00 : f32
    %152 = vector.broadcast %cst_54 : f32 to vector<8x128xf32>
    %153 = arith.addf %152, %151 : vector<8x128xf32>
    %154 = arith.divf %152, %153 : vector<8x128xf32>
    %155 = vector.extract_strided_slice %148 {offsets = [0, 128], sizes = [8, 128], strides = [1, 1]} : vector<8x512xf32> to vector<8x128xf32>
    %156 = arith.negf %155 : vector<8x128xf32>
    %157 = math.exp %156 : vector<8x128xf32>
    %cst_55 = arith.constant 1.000000e+00 : f32
    %158 = vector.broadcast %cst_55 : f32 to vector<8x128xf32>
    %159 = arith.addf %158, %157 : vector<8x128xf32>
    %160 = arith.divf %158, %159 : vector<8x128xf32>
    %161 = vector.extract_strided_slice %148 {offsets = [0, 256], sizes = [8, 128], strides = [1, 1]} : vector<8x512xf32> to vector<8x128xf32>
    %162 = math.tanh %161 : vector<8x128xf32>
    %163 = vector.extract_strided_slice %148 {offsets = [0, 384], sizes = [8, 128], strides = [1, 1]} : vector<8x512xf32> to vector<8x128xf32>
    %164 = arith.negf %163 : vector<8x128xf32>
    %165 = math.exp %164 : vector<8x128xf32>
    %cst_56 = arith.constant 1.000000e+00 : f32
    %166 = vector.broadcast %cst_56 : f32 to vector<8x128xf32>
    %167 = arith.addf %166, %165 : vector<8x128xf32>
    %168 = arith.divf %166, %167 : vector<8x128xf32>
    %169 = arith.mulf %160, %131 : vector<8x128xf32>
    %170 = arith.mulf %154, %162 : vector<8x128xf32>
    %171 = arith.addf %169, %170 : vector<8x128xf32>
    %172 = math.tanh %171 : vector<8x128xf32>
    %173 = arith.mulf %168, %172 : vector<8x128xf32>
    %174 = arith.index_cast %142 : i32 to index
    %c0_57 = arith.constant 0 : index
    %c0_58 = arith.constant 0 : index
    %175 = vector.load %arg6[%174, %c0_57, %c0_58] : memref<8x8x128xf32, #tpu.memory_space<vmem>>, vector<1x8x128xf32>
    %176 = vector.shape_cast %175 : vector<1x8x128xf32> to vector<8x128xf32>
    %177 = vector.shape_cast %173 : vector<8x128xf32> to vector<1x8x128xf32>
    tpu.vector_store %arg6[%174, %c0_57, %c0_58], %177 {strides = array<i32>} : memref<8x8x128xf32, #tpu.memory_space<vmem>>, vector<1x8x128xf32>,
    %c4_i32 = arith.constant 4 : i32
    %c1_i32_59 = arith.constant 1 : i32
    %178 = arith.subi %c1_i32_59, %arg0 : i32
    %179 = arith.muli %c4_i32, %178 : i32
    %c7_i32_60 = arith.constant 7 : i32
    %180 = arith.subi %c7_i32_60, %c4_i32 : i32
    %181 = arith.muli %180, %arg0 : i32
    %182 = arith.addi %179, %181 : i32
    %183 = arith.index_cast %182 : i32 to index
    %c0_61 = arith.constant 0 : index
    %c0_62 = arith.constant 0 : index
    %184 = vector.load %arg9[%183, %c0_61, %c0_62] : memref<8x8x512xf32, #tpu.memory_space<vmem>>, vector<1x8x512xf32>
    %185 = vector.shape_cast %184 : vector<1x8x512xf32> to vector<8x512xf32>
    %186 = arith.truncf %173 : vector<8x128xf32> to vector<8x128xbf16>
    %cst_63 = arith.constant dense<0.000000e+00> : vector<8x512xf32>
    %187 = tpu.matmul %186, %15, %cst_63 {dimension_numbers = #tpu.dot_dimension_numbers<[1], [0], [0], [1], [0, 0, 1, 1], [], []>} : vector<8x128xbf16>, vector<128x512xbf16>, vector<8x512xf32> -> vector<8x512xf32>
    %188 = arith.addf %185, %187 : vector<8x512xf32>
    %189 = vector.extract_strided_slice %188 {offsets = [0, 0], sizes = [8, 128], strides = [1, 1]} : vector<8x512xf32> to vector<8x128xf32>
    %190 = arith.negf %189 : vector<8x128xf32>
    %191 = math.exp %190 : vector<8x128xf32>
    %cst_64 = arith.constant 1.000000e+00 : f32
    %192 = vector.broadcast %cst_64 : f32 to vector<8x128xf32>
    %193 = arith.addf %192, %191 : vector<8x128xf32>
    %194 = arith.divf %192, %193 : vector<8x128xf32>
    %195 = vector.extract_strided_slice %188 {offsets = [0, 128], sizes = [8, 128], strides = [1, 1]} : vector<8x512xf32> to vector<8x128xf32>
    %196 = arith.negf %195 : vector<8x128xf32>
    %197 = math.exp %196 : vector<8x128xf32>
    %cst_65 = arith.constant 1.000000e+00 : f32
    %198 = vector.broadcast %cst_65 : f32 to vector<8x128xf32>
    %199 = arith.addf %198, %197 : vector<8x128xf32>
    %200 = arith.divf %198, %199 : vector<8x128xf32>
    %201 = vector.extract_strided_slice %188 {offsets = [0, 256], sizes = [8, 128], strides = [1, 1]} : vector<8x512xf32> to vector<8x128xf32>
    %202 = math.tanh %201 : vector<8x128xf32>
    %203 = vector.extract_strided_slice %188 {offsets = [0, 384], sizes = [8, 128], strides = [1, 1]} : vector<8x512xf32> to vector<8x128xf32>
    %204 = arith.negf %203 : vector<8x128xf32>
    %205 = math.exp %204 : vector<8x128xf32>
    %cst_66 = arith.constant 1.000000e+00 : f32
    %206 = vector.broadcast %cst_66 : f32 to vector<8x128xf32>
    %207 = arith.addf %206, %205 : vector<8x128xf32>
    %208 = arith.divf %206, %207 : vector<8x128xf32>
    %209 = arith.mulf %200, %171 : vector<8x128xf32>
    %210 = arith.mulf %194, %202 : vector<8x128xf32>
    %211 = arith.addf %209, %210 : vector<8x128xf32>
    %212 = math.tanh %211 : vector<8x128xf32>
    %213 = arith.mulf %208, %212 : vector<8x128xf32>
    %214 = arith.index_cast %182 : i32 to index
    %c0_67 = arith.constant 0 : index
    %c0_68 = arith.constant 0 : index
    %215 = vector.load %arg6[%214, %c0_67, %c0_68] : memref<8x8x128xf32, #tpu.memory_space<vmem>>, vector<1x8x128xf32>
    %216 = vector.shape_cast %215 : vector<1x8x128xf32> to vector<8x128xf32>
    %217 = vector.shape_cast %213 : vector<8x128xf32> to vector<1x8x128xf32>
    tpu.vector_store %arg6[%214, %c0_67, %c0_68], %217 {strides = array<i32>} : memref<8x8x128xf32, #tpu.memory_space<vmem>>, vector<1x8x128xf32>,
    %c5_i32 = arith.constant 5 : i32
    %c1_i32_69 = arith.constant 1 : i32
    %218 = arith.subi %c1_i32_69, %arg0 : i32
    %219 = arith.muli %c5_i32, %218 : i32
    %c7_i32_70 = arith.constant 7 : i32
    %220 = arith.subi %c7_i32_70, %c5_i32 : i32
    %221 = arith.muli %220, %arg0 : i32
    %222 = arith.addi %219, %221 : i32
    %223 = arith.index_cast %222 : i32 to index
    %c0_71 = arith.constant 0 : index
    %c0_72 = arith.constant 0 : index
    %224 = vector.load %arg9[%223, %c0_71, %c0_72] : memref<8x8x512xf32, #tpu.memory_space<vmem>>, vector<1x8x512xf32>
    %225 = vector.shape_cast %224 : vector<1x8x512xf32> to vector<8x512xf32>
    %226 = arith.truncf %213 : vector<8x128xf32> to vector<8x128xbf16>
    %cst_73 = arith.constant dense<0.000000e+00> : vector<8x512xf32>
    %227 = tpu.matmul %226, %15, %cst_73 {dimension_numbers = #tpu.dot_dimension_numbers<[1], [0], [0], [1], [0, 0, 1, 1], [], []>} : vector<8x128xbf16>, vector<128x512xbf16>, vector<8x512xf32> -> vector<8x512xf32>
    %228 = arith.addf %225, %227 : vector<8x512xf32>
    %229 = vector.extract_strided_slice %228 {offsets = [0, 0], sizes = [8, 128], strides = [1, 1]} : vector<8x512xf32> to vector<8x128xf32>
    %230 = arith.negf %229 : vector<8x128xf32>
    %231 = math.exp %230 : vector<8x128xf32>
    %cst_74 = arith.constant 1.000000e+00 : f32
    %232 = vector.broadcast %cst_74 : f32 to vector<8x128xf32>
    %233 = arith.addf %232, %231 : vector<8x128xf32>
    %234 = arith.divf %232, %233 : vector<8x128xf32>
    %235 = vector.extract_strided_slice %228 {offsets = [0, 128], sizes = [8, 128], strides = [1, 1]} : vector<8x512xf32> to vector<8x128xf32>
    %236 = arith.negf %235 : vector<8x128xf32>
    %237 = math.exp %236 : vector<8x128xf32>
    %cst_75 = arith.constant 1.000000e+00 : f32
    %238 = vector.broadcast %cst_75 : f32 to vector<8x128xf32>
    %239 = arith.addf %238, %237 : vector<8x128xf32>
    %240 = arith.divf %238, %239 : vector<8x128xf32>
    %241 = vector.extract_strided_slice %228 {offsets = [0, 256], sizes = [8, 128], strides = [1, 1]} : vector<8x512xf32> to vector<8x128xf32>
    %242 = math.tanh %241 : vector<8x128xf32>
    %243 = vector.extract_strided_slice %228 {offsets = [0, 384], sizes = [8, 128], strides = [1, 1]} : vector<8x512xf32> to vector<8x128xf32>
    %244 = arith.negf %243 : vector<8x128xf32>
    %245 = math.exp %244 : vector<8x128xf32>
    %cst_76 = arith.constant 1.000000e+00 : f32
    %246 = vector.broadcast %cst_76 : f32 to vector<8x128xf32>
    %247 = arith.addf %246, %245 : vector<8x128xf32>
    %248 = arith.divf %246, %247 : vector<8x128xf32>
    %249 = arith.mulf %240, %211 : vector<8x128xf32>
    %250 = arith.mulf %234, %242 : vector<8x128xf32>
    %251 = arith.addf %249, %250 : vector<8x128xf32>
    %252 = math.tanh %251 : vector<8x128xf32>
    %253 = arith.mulf %248, %252 : vector<8x128xf32>
    %254 = arith.index_cast %222 : i32 to index
    %c0_77 = arith.constant 0 : index
    %c0_78 = arith.constant 0 : index
    %255 = vector.load %arg6[%254, %c0_77, %c0_78] : memref<8x8x128xf32, #tpu.memory_space<vmem>>, vector<1x8x128xf32>
    %256 = vector.shape_cast %255 : vector<1x8x128xf32> to vector<8x128xf32>
    %257 = vector.shape_cast %253 : vector<8x128xf32> to vector<1x8x128xf32>
    tpu.vector_store %arg6[%254, %c0_77, %c0_78], %257 {strides = array<i32>} : memref<8x8x128xf32, #tpu.memory_space<vmem>>, vector<1x8x128xf32>,
    %c6_i32 = arith.constant 6 : i32
    %c1_i32_79 = arith.constant 1 : i32
    %258 = arith.subi %c1_i32_79, %arg0 : i32
    %259 = arith.muli %c6_i32, %258 : i32
    %c7_i32_80 = arith.constant 7 : i32
    %260 = arith.subi %c7_i32_80, %c6_i32 : i32
    %261 = arith.muli %260, %arg0 : i32
    %262 = arith.addi %259, %261 : i32
    %263 = arith.index_cast %262 : i32 to index
    %c0_81 = arith.constant 0 : index
    %c0_82 = arith.constant 0 : index
    %264 = vector.load %arg9[%263, %c0_81, %c0_82] : memref<8x8x512xf32, #tpu.memory_space<vmem>>, vector<1x8x512xf32>
    %265 = vector.shape_cast %264 : vector<1x8x512xf32> to vector<8x512xf32>
    %266 = arith.truncf %253 : vector<8x128xf32> to vector<8x128xbf16>
    %cst_83 = arith.constant dense<0.000000e+00> : vector<8x512xf32>
    %267 = tpu.matmul %266, %15, %cst_83 {dimension_numbers = #tpu.dot_dimension_numbers<[1], [0], [0], [1], [0, 0, 1, 1], [], []>} : vector<8x128xbf16>, vector<128x512xbf16>, vector<8x512xf32> -> vector<8x512xf32>
    %268 = arith.addf %265, %267 : vector<8x512xf32>
    %269 = vector.extract_strided_slice %268 {offsets = [0, 0], sizes = [8, 128], strides = [1, 1]} : vector<8x512xf32> to vector<8x128xf32>
    %270 = arith.negf %269 : vector<8x128xf32>
    %271 = math.exp %270 : vector<8x128xf32>
    %cst_84 = arith.constant 1.000000e+00 : f32
    %272 = vector.broadcast %cst_84 : f32 to vector<8x128xf32>
    %273 = arith.addf %272, %271 : vector<8x128xf32>
    %274 = arith.divf %272, %273 : vector<8x128xf32>
    %275 = vector.extract_strided_slice %268 {offsets = [0, 128], sizes = [8, 128], strides = [1, 1]} : vector<8x512xf32> to vector<8x128xf32>
    %276 = arith.negf %275 : vector<8x128xf32>
    %277 = math.exp %276 : vector<8x128xf32>
    %cst_85 = arith.constant 1.000000e+00 : f32
    %278 = vector.broadcast %cst_85 : f32 to vector<8x128xf32>
    %279 = arith.addf %278, %277 : vector<8x128xf32>
    %280 = arith.divf %278, %279 : vector<8x128xf32>
    %281 = vector.extract_strided_slice %268 {offsets = [0, 256], sizes = [8, 128], strides = [1, 1]} : vector<8x512xf32> to vector<8x128xf32>
    %282 = math.tanh %281 : vector<8x128xf32>
    %283 = vector.extract_strided_slice %268 {offsets = [0, 384], sizes = [8, 128], strides = [1, 1]} : vector<8x512xf32> to vector<8x128xf32>
    %284 = arith.negf %283 : vector<8x128xf32>
    %285 = math.exp %284 : vector<8x128xf32>
    %cst_86 = arith.constant 1.000000e+00 : f32
    %286 = vector.broadcast %cst_86 : f32 to vector<8x128xf32>
    %287 = arith.addf %286, %285 : vector<8x128xf32>
    %288 = arith.divf %286, %287 : vector<8x128xf32>
    %289 = arith.mulf %280, %251 : vector<8x128xf32>
    %290 = arith.mulf %274, %282 : vector<8x128xf32>
    %291 = arith.addf %289, %290 : vector<8x128xf32>
    %292 = math.tanh %291 : vector<8x128xf32>
    %293 = arith.mulf %288, %292 : vector<8x128xf32>
    %294 = arith.index_cast %262 : i32 to index
    %c0_87 = arith.constant 0 : index
    %c0_88 = arith.constant 0 : index
    %295 = vector.load %arg6[%294, %c0_87, %c0_88] : memref<8x8x128xf32, #tpu.memory_space<vmem>>, vector<1x8x128xf32>
    %296 = vector.shape_cast %295 : vector<1x8x128xf32> to vector<8x128xf32>
    %297 = vector.shape_cast %293 : vector<8x128xf32> to vector<1x8x128xf32>
    tpu.vector_store %arg6[%294, %c0_87, %c0_88], %297 {strides = array<i32>} : memref<8x8x128xf32, #tpu.memory_space<vmem>>, vector<1x8x128xf32>,
    %c7_i32_89 = arith.constant 7 : i32
    %c1_i32_90 = arith.constant 1 : i32
    %298 = arith.subi %c1_i32_90, %arg0 : i32
    %299 = arith.muli %c7_i32_89, %298 : i32
    %c7_i32_91 = arith.constant 7 : i32
    %300 = arith.subi %c7_i32_91, %c7_i32_89 : i32
    %301 = arith.muli %300, %arg0 : i32
    %302 = arith.addi %299, %301 : i32
    %303 = arith.index_cast %302 : i32 to index
    %c0_92 = arith.constant 0 : index
    %c0_93 = arith.constant 0 : index
    %304 = vector.load %arg9[%303, %c0_92, %c0_93] : memref<8x8x512xf32, #tpu.memory_space<vmem>>, vector<1x8x512xf32>
    %305 = vector.shape_cast %304 : vector<1x8x512xf32> to vector<8x512xf32>
    %306 = arith.truncf %293 : vector<8x128xf32> to vector<8x128xbf16>
    %cst_94 = arith.constant dense<0.000000e+00> : vector<8x512xf32>
    %307 = tpu.matmul %306, %15, %cst_94 {dimension_numbers = #tpu.dot_dimension_numbers<[1], [0], [0], [1], [0, 0, 1, 1], [], []>} : vector<8x128xbf16>, vector<128x512xbf16>, vector<8x512xf32> -> vector<8x512xf32>
    %308 = arith.addf %305, %307 : vector<8x512xf32>
    %309 = vector.extract_strided_slice %308 {offsets = [0, 0], sizes = [8, 128], strides = [1, 1]} : vector<8x512xf32> to vector<8x128xf32>
    %310 = arith.negf %309 : vector<8x128xf32>
    %311 = math.exp %310 : vector<8x128xf32>
    %cst_95 = arith.constant 1.000000e+00 : f32
    %312 = vector.broadcast %cst_95 : f32 to vector<8x128xf32>
    %313 = arith.addf %312, %311 : vector<8x128xf32>
    %314 = arith.divf %312, %313 : vector<8x128xf32>
    %315 = vector.extract_strided_slice %308 {offsets = [0, 128], sizes = [8, 128], strides = [1, 1]} : vector<8x512xf32> to vector<8x128xf32>
    %316 = arith.negf %315 : vector<8x128xf32>
    %317 = math.exp %316 : vector<8x128xf32>
    %cst_96 = arith.constant 1.000000e+00 : f32
    %318 = vector.broadcast %cst_96 : f32 to vector<8x128xf32>
    %319 = arith.addf %318, %317 : vector<8x128xf32>
    %320 = arith.divf %318, %319 : vector<8x128xf32>
    %321 = vector.extract_strided_slice %308 {offsets = [0, 256], sizes = [8, 128], strides = [1, 1]} : vector<8x512xf32> to vector<8x128xf32>
    %322 = math.tanh %321 : vector<8x128xf32>
    %323 = vector.extract_strided_slice %308 {offsets = [0, 384], sizes = [8, 128], strides = [1, 1]} : vector<8x512xf32> to vector<8x128xf32>
    %324 = arith.negf %323 : vector<8x128xf32>
    %325 = math.exp %324 : vector<8x128xf32>
    %cst_97 = arith.constant 1.000000e+00 : f32
    %326 = vector.broadcast %cst_97 : f32 to vector<8x128xf32>
    %327 = arith.addf %326, %325 : vector<8x128xf32>
    %328 = arith.divf %326, %327 : vector<8x128xf32>
    %329 = arith.mulf %320, %291 : vector<8x128xf32>
    %330 = arith.mulf %314, %322 : vector<8x128xf32>
    %331 = arith.addf %329, %330 : vector<8x128xf32>
    %332 = math.tanh %331 : vector<8x128xf32>
    %333 = arith.mulf %328, %332 : vector<8x128xf32>
    %334 = arith.index_cast %302 : i32 to index
    %c0_98 = arith.constant 0 : index
    %c0_99 = arith.constant 0 : index
    %335 = vector.load %arg6[%334, %c0_98, %c0_99] : memref<8x8x128xf32, #tpu.memory_space<vmem>>, vector<1x8x128xf32>
    %336 = vector.shape_cast %335 : vector<1x8x128xf32> to vector<8x128xf32>
    %337 = vector.shape_cast %333 : vector<8x128xf32> to vector<1x8x128xf32>
    tpu.vector_store %arg6[%334, %c0_98, %c0_99], %337 {strides = array<i32>} : memref<8x8x128xf32, #tpu.memory_space<vmem>>, vector<1x8x128xf32>,
    %c8_i32 = arith.constant 8 : i32
    %c0_100 = arith.constant 0 : index
    %c0_101 = arith.constant 0 : index
    %338 = vector.load %arg7[%c0_100, %c0_101] : memref<8x128xf32, #tpu.memory_space<vmem>>, vector<8x128xf32>
    tpu.vector_store %arg7[%c0_100, %c0_101], %333 {strides = array<i32>} : memref<8x128xf32, #tpu.memory_space<vmem>>, vector<8x128xf32>,
    %c0_102 = arith.constant 0 : index
    %c0_103 = arith.constant 0 : index
    %339 = vector.load %arg8[%c0_102, %c0_103] : memref<8x128xf32, #tpu.memory_space<vmem>>, vector<8x128xf32>
    tpu.vector_store %arg8[%c0_102, %c0_103], %331 {strides = array<i32>} : memref<8x128xf32, #tpu.memory_space<vmem>>, vector<8x128xf32>,
    return
  }
  func.func @transform_0(%arg0: i32, %arg1: i32) -> (i32, i32, i32) {
    %c1_i32 = arith.constant 1 : i32
    %0 = arith.subi %c1_i32, %arg0 : i32
    %1 = arith.muli %arg1, %0 : i32
    %c0_i32 = arith.constant 0 : i32
    %2 = arith.subi %c0_i32, %arg1 : i32
    %3 = arith.muli %2, %arg0 : i32
    %4 = arith.addi %1, %3 : i32
    %c0_i32_0 = arith.constant 0 : i32
    %c0_i32_1 = arith.constant 0 : i32
    %c0_i32_2 = arith.constant 0 : i32
    return %4, %c0_i32_0, %c0_i32_1 : i32, i32, i32
  }
  func.func @transform_1(%arg0: i32, %arg1: i32) -> (i32, i32, i32) {
    %c0_i32 = arith.constant 0 : i32
    %c0_i32_0 = arith.constant 0 : i32
    %c0_i32_1 = arith.constant 0 : i32
    return %arg0, %c0_i32, %c0_i32_0 : i32, i32, i32
  }
  func.func @transform_2(%arg0: i32, %arg1: i32) -> (i32, i32, i32) {
    %c0_i32 = arith.constant 0 : i32
    %c0_i32_0 = arith.constant 0 : i32
    %c0_i32_1 = arith.constant 0 : i32
    return %arg0, %c0_i32, %c0_i32_0 : i32, i32, i32
  }
  func.func @transform_3(%arg0: i32, %arg1: i32) -> (i32, i32, i32) {
    %c0_i32 = arith.constant 0 : i32
    %c0_i32_0 = arith.constant 0 : i32
    %c0_i32_1 = arith.constant 0 : i32
    return %arg0, %c0_i32, %c0_i32_0 : i32, i32, i32
  }
  func.func @transform_4(%arg0: i32, %arg1: i32) -> (i32, i32, i32) {
    %c1_i32 = arith.constant 1 : i32
    %0 = arith.subi %c1_i32, %arg0 : i32
    %1 = arith.muli %arg1, %0 : i32
    %c0_i32 = arith.constant 0 : i32
    %2 = arith.subi %c0_i32, %arg1 : i32
    %3 = arith.muli %2, %arg0 : i32
    %4 = arith.addi %1, %3 : i32
    %c0_i32_0 = arith.constant 0 : i32
    %c0_i32_1 = arith.constant 0 : i32
    return %4, %c0_i32_0, %arg0 : i32, i32, i32
  }
}

module attributes {stable_mosaic.version = 11 : i64} {
  func.func @_bilstm_kernel(%arg0: i32, %arg1: i32, %arg2: memref<8x8x128xbf16, #tpu.memory_space<vmem>>, %arg3: memref<1x128x512xbf16, #tpu.memory_space<vmem>>, %arg4: memref<1x128x512xbf16, #tpu.memory_space<vmem>>, %arg5: memref<1x1x512xf32, #tpu.memory_space<vmem>>, %arg6: memref<8x8x128xf32, #tpu.memory_space<vmem>>, %arg7: memref<8x128xf32, #tpu.memory_space<vmem>>, %arg8: memref<8x128xf32, #tpu.memory_space<vmem>>, %arg9: memref<8x8x512xf32, #tpu.memory_space<vmem>>) attributes {dimension_semantics = [#tpu.dimension_semantics<parallel>, #tpu.dimension_semantics<arbitrary>], iteration_bounds = array<i64: 2, 1>, scalar_prefetch = 0 : i64, scratch_operands = 3 : i64, tpu.core_type = #tpu.core_type<tc>, window_params = [{transform_indices = @transform_0, window_bounds = array<i64: 8, 8, 128>}, {transform_indices = @transform_1, window_bounds = array<i64: 1, 128, 512>}, {transform_indices = @transform_2, window_bounds = array<i64: 1, 128, 512>}, {transform_indices = @transform_3, window_bounds = array<i64: 1, 1, 512>}, {transform_indices = @transform_4, window_bounds = array<i64: 8, 8, 128>}]} {
    %c0_i32 = arith.constant 0 : i32
    %0 = arith.cmpi eq, %arg1, %c0_i32 : i32
    %1 = arith.extui %0 : i1 to i32
    %c0_i32_0 = arith.constant 0 : i32
    %2 = arith.cmpi ne, %1, %c0_i32_0 : i32
    scf.if %2 {
      %cst_104 = arith.constant 0.000000e+00 : f32
      %340 = vector.broadcast %cst_104 : f32 to vector<8x128xf32>
      %c0_105 = arith.constant 0 : index
      %c0_106 = arith.constant 0 : index
      %341 = vector.load %arg7[%c0_105, %c0_106] : memref<8x128xf32, #tpu.memory_space<vmem>>, vector<8x128xf32>
      tpu.vector_store %arg7[%c0_105, %c0_106], %340 {strides = array<i32>} : memref<8x128xf32, #tpu.memory_space<vmem>>, vector<8x128xf32>,
      %cst_107 = arith.constant 0.000000e+00 : f32
      %342 = vector.broadcast %cst_107 : f32 to vector<8x128xf32>
      %c0_108 = arith.constant 0 : index
      %c0_109 = arith.constant 0 : index
      %343 = vector.load %arg8[%c0_108, %c0_109] : memref<8x128xf32, #tpu.memory_space<vmem>>, vector<8x128xf32>
      tpu.vector_store %arg8[%c0_108, %c0_109], %342 {strides = array<i32>} : memref<8x128xf32, #tpu.memory_space<vmem>>, vector<8x128xf32>,
    } else {
    }
    %c0 = arith.constant 0 : index
    %c0_1 = arith.constant 0 : index
    %c0_2 = arith.constant 0 : index
    %3 = vector.load %arg2[%c0, %c0_1, %c0_2] : memref<8x8x128xbf16, #tpu.memory_space<vmem>>, vector<8x8x128xbf16>
    %4 = vector.shape_cast %3 : vector<8x8x128xbf16> to vector<64x128xbf16>
    %c0_3 = arith.constant 0 : index
    %c0_4 = arith.constant 0 : index
    %c0_5 = arith.constant 0 : index
    %5 = vector.load %arg3[%c0_3, %c0_4, %c0_5] : memref<1x128x512xbf16, #tpu.memory_space<vmem>>, vector<1x128x512xbf16>
    %6 = vector.shape_cast %5 : vector<1x128x512xbf16> to vector<128x512xbf16>
    %cst = arith.constant dense<0.000000e+00> : vector<64x512xf32>
    %7 = tpu.matmul %4, %6, %cst {dimension_numbers = #tpu.dot_dimension_numbers<[1], [0], [0], [1], [0, 0, 1, 1], [], []>} : vector<64x128xbf16>, vector<128x512xbf16>, vector<64x512xf32> -> vector<64x512xf32>
    %c0_6 = arith.constant 0 : index
    %c0_7 = arith.constant 0 : index
    %c0_8 = arith.constant 0 : index
    %8 = vector.load %arg5[%c0_6, %c0_7, %c0_8] : memref<1x1x512xf32, #tpu.memory_space<vmem>>, vector<1x1x512xf32>
    %9 = vector.shape_cast %8 : vector<1x1x512xf32> to vector<1x512xf32>
    %10 = vector.broadcast %9 : vector<1x512xf32> to vector<64x512xf32>
    %11 = arith.addf %7, %10 : vector<64x512xf32>
    %12 = vector.shape_cast %11 : vector<64x512xf32> to vector<8x8x512xf32>
    %c0_9 = arith.constant 0 : index
    %c0_10 = arith.constant 0 : index
    %c0_11 = arith.constant 0 : index
    %13 = vector.load %arg9[%c0_9, %c0_10, %c0_11] : memref<8x8x512xf32, #tpu.memory_space<vmem>>, vector<8x8x512xf32>
    tpu.vector_store %arg9[%c0_9, %c0_10, %c0_11], %12 {strides = array<i32>} : memref<8x8x512xf32, #tpu.memory_space<vmem>>, vector<8x8x512xf32>,
    %c0_12 = arith.constant 0 : index
    %c0_13 = arith.constant 0 : index
    %c0_14 = arith.constant 0 : index
    %14 = vector.load %arg4[%c0_12, %c0_13, %c0_14] : memref<1x128x512xbf16, #tpu.memory_space<vmem>>, vector<1x128x512xbf16>
    %15 = vector.shape_cast %14 : vector<1x128x512xbf16> to vector<128x512xbf16>
    %c0_15 = arith.constant 0 : index
    %c0_16 = arith.constant 0 : index
    %16 = vector.load %arg7[%c0_15, %c0_16] : memref<8x128xf32, #tpu.memory_space<vmem>>, vector<8x128xf32>
    %c0_17 = arith.constant 0 : index
    %c0_18 = arith.constant 0 : index
    %17 = vector.load %arg8[%c0_17, %c0_18] : memref<8x128xf32, #tpu.memory_space<vmem>>, vector<8x128xf32>
    %c0_i32_19 = arith.constant 0 : i32
    %c1_i32 = arith.constant 1 : i32
    %18 = arith.subi %c1_i32, %arg0 : i32
    %19 = arith.muli %c0_i32_19, %18 : i32
    %c7_i32 = arith.constant 7 : i32
    %20 = arith.subi %c7_i32, %c0_i32_19 : i32
    %21 = arith.muli %20, %arg0 : i32
    %22 = arith.addi %19, %21 : i32
    %23 = arith.index_cast %22 : i32 to index
    %c0_20 = arith.constant 0 : index
    %c0_21 = arith.constant 0 : index
    %24 = vector.load %arg9[%23, %c0_20, %c0_21] : memref<8x8x512xf32, #tpu.memory_space<vmem>>, vector<1x8x512xf32>
    %25 = vector.shape_cast %24 : vector<1x8x512xf32> to vector<8x512xf32>
    %26 = arith.truncf %16 : vector<8x128xf32> to vector<8x128xbf16>
    %cst_22 = arith.constant dense<0.000000e+00> : vector<8x512xf32>
    %27 = tpu.matmul %26, %15, %cst_22 {dimension_numbers = #tpu.dot_dimension_numbers<[1], [0], [0], [1], [0, 0, 1, 1], [], []>} : vector<8x128xbf16>, vector<128x512xbf16>, vector<8x512xf32> -> vector<8x512xf32>
    %28 = arith.addf %25, %27 : vector<8x512xf32>
    %29 = vector.extract_strided_slice %28 {offsets = [0, 0], sizes = [8, 128], strides = [1, 1]} : vector<8x512xf32> to vector<8x128xf32>
    %30 = arith.negf %29 : vector<8x128xf32>
    %31 = math.exp %30 : vector<8x128xf32>
    %cst_23 = arith.constant 1.000000e+00 : f32
    %32 = vector.broadcast %cst_23 : f32 to vector<8x128xf32>
    %33 = arith.addf %32, %31 : vector<8x128xf32>
    %34 = arith.divf %32, %33 : vector<8x128xf32>
    %35 = vector.extract_strided_slice %28 {offsets = [0, 128], sizes = [8, 128], strides = [1, 1]} : vector<8x512xf32> to vector<8x128xf32>
    %36 = arith.negf %35 : vector<8x128xf32>
    %37 = math.exp %36 : vector<8x128xf32>
    %cst_24 = arith.constant 1.000000e+00 : f32
    %38 = vector.broadcast %cst_24 : f32 to vector<8x128xf32>
    %39 = arith.addf %38, %37 : vector<8x128xf32>
    %40 = arith.divf %38, %39 : vector<8x128xf32>
    %41 = vector.extract_strided_slice %28 {offsets = [0, 256], sizes = [8, 128], strides = [1, 1]} : vector<8x512xf32> to vector<8x128xf32>
    %42 = math.tanh %41 : vector<8x128xf32>
    %43 = vector.extract_strided_slice %28 {offsets = [0, 384], sizes = [8, 128], strides = [1, 1]} : vector<8x512xf32> to vector<8x128xf32>
    %44 = arith.negf %43 : vector<8x128xf32>
    %45 = math.exp %44 : vector<8x128xf32>
    %cst_25 = arith.constant 1.000000e+00 : f32
    %46 = vector.broadcast %cst_25 : f32 to vector<8x128xf32>
    %47 = arith.addf %46, %45 : vector<8x128xf32>
    %48 = arith.divf %46, %47 : vector<8x128xf32>
    %49 = arith.mulf %40, %17 : vector<8x128xf32>
    %50 = arith.mulf %34, %42 : vector<8x128xf32>
    %51 = arith.addf %49, %50 : vector<8x128xf32>
    %52 = math.tanh %51 : vector<8x128xf32>
    %53 = arith.mulf %48, %52 : vector<8x128xf32>
    %54 = arith.index_cast %22 : i32 to index
    %c0_26 = arith.constant 0 : index
    %c0_27 = arith.constant 0 : index
    %55 = vector.load %arg6[%54, %c0_26, %c0_27] : memref<8x8x128xf32, #tpu.memory_space<vmem>>, vector<1x8x128xf32>
    %56 = vector.shape_cast %55 : vector<1x8x128xf32> to vector<8x128xf32>
    %57 = vector.shape_cast %53 : vector<8x128xf32> to vector<1x8x128xf32>
    tpu.vector_store %arg6[%54, %c0_26, %c0_27], %57 {strides = array<i32>} : memref<8x8x128xf32, #tpu.memory_space<vmem>>, vector<1x8x128xf32>,
    %c1_i32_28 = arith.constant 1 : i32
    %c1_i32_29 = arith.constant 1 : i32
    %58 = arith.subi %c1_i32_29, %arg0 : i32
    %59 = arith.muli %c1_i32_28, %58 : i32
    %c7_i32_30 = arith.constant 7 : i32
    %60 = arith.subi %c7_i32_30, %c1_i32_28 : i32
    %61 = arith.muli %60, %arg0 : i32
    %62 = arith.addi %59, %61 : i32
    %63 = arith.index_cast %62 : i32 to index
    %c0_31 = arith.constant 0 : index
    %c0_32 = arith.constant 0 : index
    %64 = vector.load %arg9[%63, %c0_31, %c0_32] : memref<8x8x512xf32, #tpu.memory_space<vmem>>, vector<1x8x512xf32>
    %65 = vector.shape_cast %64 : vector<1x8x512xf32> to vector<8x512xf32>
    %66 = arith.truncf %53 : vector<8x128xf32> to vector<8x128xbf16>
    %cst_33 = arith.constant dense<0.000000e+00> : vector<8x512xf32>
    %67 = tpu.matmul %66, %15, %cst_33 {dimension_numbers = #tpu.dot_dimension_numbers<[1], [0], [0], [1], [0, 0, 1, 1], [], []>} : vector<8x128xbf16>, vector<128x512xbf16>, vector<8x512xf32> -> vector<8x512xf32>
    %68 = arith.addf %65, %67 : vector<8x512xf32>
    %69 = vector.extract_strided_slice %68 {offsets = [0, 0], sizes = [8, 128], strides = [1, 1]} : vector<8x512xf32> to vector<8x128xf32>
    %70 = arith.negf %69 : vector<8x128xf32>
    %71 = math.exp %70 : vector<8x128xf32>
    %cst_34 = arith.constant 1.000000e+00 : f32
    %72 = vector.broadcast %cst_34 : f32 to vector<8x128xf32>
    %73 = arith.addf %72, %71 : vector<8x128xf32>
    %74 = arith.divf %72, %73 : vector<8x128xf32>
    %75 = vector.extract_strided_slice %68 {offsets = [0, 128], sizes = [8, 128], strides = [1, 1]} : vector<8x512xf32> to vector<8x128xf32>
    %76 = arith.negf %75 : vector<8x128xf32>
    %77 = math.exp %76 : vector<8x128xf32>
    %cst_35 = arith.constant 1.000000e+00 : f32
    %78 = vector.broadcast %cst_35 : f32 to vector<8x128xf32>
    %79 = arith.addf %78, %77 : vector<8x128xf32>
    %80 = arith.divf %78, %79 : vector<8x128xf32>
    %81 = vector.extract_strided_slice %68 {offsets = [0, 256], sizes = [8, 128], strides = [1, 1]} : vector<8x512xf32> to vector<8x128xf32>
    %82 = math.tanh %81 : vector<8x128xf32>
    %83 = vector.extract_strided_slice %68 {offsets = [0, 384], sizes = [8, 128], strides = [1, 1]} : vector<8x512xf32> to vector<8x128xf32>
    %84 = arith.negf %83 : vector<8x128xf32>
    %85 = math.exp %84 : vector<8x128xf32>
    %cst_36 = arith.constant 1.000000e+00 : f32
    %86 = vector.broadcast %cst_36 : f32 to vector<8x128xf32>
    %87 = arith.addf %86, %85 : vector<8x128xf32>
    %88 = arith.divf %86, %87 : vector<8x128xf32>
    %89 = arith.mulf %80, %51 : vector<8x128xf32>
    %90 = arith.mulf %74, %82 : vector<8x128xf32>
    %91 = arith.addf %89, %90 : vector<8x128xf32>
    %92 = math.tanh %91 : vector<8x128xf32>
    %93 = arith.mulf %88, %92 : vector<8x128xf32>
    %94 = arith.index_cast %62 : i32 to index
    %c0_37 = arith.constant 0 : index
    %c0_38 = arith.constant 0 : index
    %95 = vector.load %arg6[%94, %c0_37, %c0_38] : memref<8x8x128xf32, #tpu.memory_space<vmem>>, vector<1x8x128xf32>
    %96 = vector.shape_cast %95 : vector<1x8x128xf32> to vector<8x128xf32>
    %97 = vector.shape_cast %93 : vector<8x128xf32> to vector<1x8x128xf32>
    tpu.vector_store %arg6[%94, %c0_37, %c0_38], %97 {strides = array<i32>} : memref<8x8x128xf32, #tpu.memory_space<vmem>>, vector<1x8x128xf32>,
    %c2_i32 = arith.constant 2 : i32
    %c1_i32_39 = arith.constant 1 : i32
    %98 = arith.subi %c1_i32_39, %arg0 : i32
    %99 = arith.muli %c2_i32, %98 : i32
    %c7_i32_40 = arith.constant 7 : i32
    %100 = arith.subi %c7_i32_40, %c2_i32 : i32
    %101 = arith.muli %100, %arg0 : i32
    %102 = arith.addi %99, %101 : i32
    %103 = arith.index_cast %102 : i32 to index
    %c0_41 = arith.constant 0 : index
    %c0_42 = arith.constant 0 : index
    %104 = vector.load %arg9[%103, %c0_41, %c0_42] : memref<8x8x512xf32, #tpu.memory_space<vmem>>, vector<1x8x512xf32>
    %105 = vector.shape_cast %104 : vector<1x8x512xf32> to vector<8x512xf32>
    %106 = arith.truncf %93 : vector<8x128xf32> to vector<8x128xbf16>
    %cst_43 = arith.constant dense<0.000000e+00> : vector<8x512xf32>
    %107 = tpu.matmul %106, %15, %cst_43 {dimension_numbers = #tpu.dot_dimension_numbers<[1], [0], [0], [1], [0, 0, 1, 1], [], []>} : vector<8x128xbf16>, vector<128x512xbf16>, vector<8x512xf32> -> vector<8x512xf32>
    %108 = arith.addf %105, %107 : vector<8x512xf32>
    %109 = vector.extract_strided_slice %108 {offsets = [0, 0], sizes = [8, 128], strides = [1, 1]} : vector<8x512xf32> to vector<8x128xf32>
    %110 = arith.negf %109 : vector<8x128xf32>
    %111 = math.exp %110 : vector<8x128xf32>
    %cst_44 = arith.constant 1.000000e+00 : f32
    %112 = vector.broadcast %cst_44 : f32 to vector<8x128xf32>
    %113 = arith.addf %112, %111 : vector<8x128xf32>
    %114 = arith.divf %112, %113 : vector<8x128xf32>
    %115 = vector.extract_strided_slice %108 {offsets = [0, 128], sizes = [8, 128], strides = [1, 1]} : vector<8x512xf32> to vector<8x128xf32>
    %116 = arith.negf %115 : vector<8x128xf32>
    %117 = math.exp %116 : vector<8x128xf32>
    %cst_45 = arith.constant 1.000000e+00 : f32
    %118 = vector.broadcast %cst_45 : f32 to vector<8x128xf32>
    %119 = arith.addf %118, %117 : vector<8x128xf32>
    %120 = arith.divf %118, %119 : vector<8x128xf32>
    %121 = vector.extract_strided_slice %108 {offsets = [0, 256], sizes = [8, 128], strides = [1, 1]} : vector<8x512xf32> to vector<8x128xf32>
    %122 = math.tanh %121 : vector<8x128xf32>
    %123 = vector.extract_strided_slice %108 {offsets = [0, 384], sizes = [8, 128], strides = [1, 1]} : vector<8x512xf32> to vector<8x128xf32>
    %124 = arith.negf %123 : vector<8x128xf32>
    %125 = math.exp %124 : vector<8x128xf32>
    %cst_46 = arith.constant 1.000000e+00 : f32
    %126 = vector.broadcast %cst_46 : f32 to vector<8x128xf32>
    %127 = arith.addf %126, %125 : vector<8x128xf32>
    %128 = arith.divf %126, %127 : vector<8x128xf32>
    %129 = arith.mulf %120, %91 : vector<8x128xf32>
    %130 = arith.mulf %114, %122 : vector<8x128xf32>
    %131 = arith.addf %129, %130 : vector<8x128xf32>
    %132 = math.tanh %131 : vector<8x128xf32>
    %133 = arith.mulf %128, %132 : vector<8x128xf32>
    %134 = arith.index_cast %102 : i32 to index
    %c0_47 = arith.constant 0 : index
    %c0_48 = arith.constant 0 : index
    %135 = vector.load %arg6[%134, %c0_47, %c0_48] : memref<8x8x128xf32, #tpu.memory_space<vmem>>, vector<1x8x128xf32>
    %136 = vector.shape_cast %135 : vector<1x8x128xf32> to vector<8x128xf32>
    %137 = vector.shape_cast %133 : vector<8x128xf32> to vector<1x8x128xf32>
    tpu.vector_store %arg6[%134, %c0_47, %c0_48], %137 {strides = array<i32>} : memref<8x8x128xf32, #tpu.memory_space<vmem>>, vector<1x8x128xf32>,
    %c3_i32 = arith.constant 3 : i32
    %c1_i32_49 = arith.constant 1 : i32
    %138 = arith.subi %c1_i32_49, %arg0 : i32
    %139 = arith.muli %c3_i32, %138 : i32
    %c7_i32_50 = arith.constant 7 : i32
    %140 = arith.subi %c7_i32_50, %c3_i32 : i32
    %141 = arith.muli %140, %arg0 : i32
    %142 = arith.addi %139, %141 : i32
    %143 = arith.index_cast %142 : i32 to index
    %c0_51 = arith.constant 0 : index
    %c0_52 = arith.constant 0 : index
    %144 = vector.load %arg9[%143, %c0_51, %c0_52] : memref<8x8x512xf32, #tpu.memory_space<vmem>>, vector<1x8x512xf32>
    %145 = vector.shape_cast %144 : vector<1x8x512xf32> to vector<8x512xf32>
    %146 = arith.truncf %133 : vector<8x128xf32> to vector<8x128xbf16>
    %cst_53 = arith.constant dense<0.000000e+00> : vector<8x512xf32>
    %147 = tpu.matmul %146, %15, %cst_53 {dimension_numbers = #tpu.dot_dimension_numbers<[1], [0], [0], [1], [0, 0, 1, 1], [], []>} : vector<8x128xbf16>, vector<128x512xbf16>, vector<8x512xf32> -> vector<8x512xf32>
    %148 = arith.addf %145, %147 : vector<8x512xf32>
    %149 = vector.extract_strided_slice %148 {offsets = [0, 0], sizes = [8, 128], strides = [1, 1]} : vector<8x512xf32> to vector<8x128xf32>
    %150 = arith.negf %149 : vector<8x128xf32>
    %151 = math.exp %150 : vector<8x128xf32>
    %cst_54 = arith.constant 1.000000e+00 : f32
    %152 = vector.broadcast %cst_54 : f32 to vector<8x128xf32>
    %153 = arith.addf %152, %151 : vector<8x128xf32>
    %154 = arith.divf %152, %153 : vector<8x128xf32>
    %155 = vector.extract_strided_slice %148 {offsets = [0, 128], sizes = [8, 128], strides = [1, 1]} : vector<8x512xf32> to vector<8x128xf32>
    %156 = arith.negf %155 : vector<8x128xf32>
    %157 = math.exp %156 : vector<8x128xf32>
    %cst_55 = arith.constant 1.000000e+00 : f32
    %158 = vector.broadcast %cst_55 : f32 to vector<8x128xf32>
    %159 = arith.addf %158, %157 : vector<8x128xf32>
    %160 = arith.divf %158, %159 : vector<8x128xf32>
    %161 = vector.extract_strided_slice %148 {offsets = [0, 256], sizes = [8, 128], strides = [1, 1]} : vector<8x512xf32> to vector<8x128xf32>
    %162 = math.tanh %161 : vector<8x128xf32>
    %163 = vector.extract_strided_slice %148 {offsets = [0, 384], sizes = [8, 128], strides = [1, 1]} : vector<8x512xf32> to vector<8x128xf32>
    %164 = arith.negf %163 : vector<8x128xf32>
    %165 = math.exp %164 : vector<8x128xf32>
    %cst_56 = arith.constant 1.000000e+00 : f32
    %166 = vector.broadcast %cst_56 : f32 to vector<8x128xf32>
    %167 = arith.addf %166, %165 : vector<8x128xf32>
    %168 = arith.divf %166, %167 : vector<8x128xf32>
    %169 = arith.mulf %160, %131 : vector<8x128xf32>
    %170 = arith.mulf %154, %162 : vector<8x128xf32>
    %171 = arith.addf %169, %170 : vector<8x128xf32>
    %172 = math.tanh %171 : vector<8x128xf32>
    %173 = arith.mulf %168, %172 : vector<8x128xf32>
    %174 = arith.index_cast %142 : i32 to index
    %c0_57 = arith.constant 0 : index
    %c0_58 = arith.constant 0 : index
    %175 = vector.load %arg6[%174, %c0_57, %c0_58] : memref<8x8x128xf32, #tpu.memory_space<vmem>>, vector<1x8x128xf32>
    %176 = vector.shape_cast %175 : vector<1x8x128xf32> to vector<8x128xf32>
    %177 = vector.shape_cast %173 : vector<8x128xf32> to vector<1x8x128xf32>
    tpu.vector_store %arg6[%174, %c0_57, %c0_58], %177 {strides = array<i32>} : memref<8x8x128xf32, #tpu.memory_space<vmem>>, vector<1x8x128xf32>,
    %c4_i32 = arith.constant 4 : i32
    %c1_i32_59 = arith.constant 1 : i32
    %178 = arith.subi %c1_i32_59, %arg0 : i32
    %179 = arith.muli %c4_i32, %178 : i32
    %c7_i32_60 = arith.constant 7 : i32
    %180 = arith.subi %c7_i32_60, %c4_i32 : i32
    %181 = arith.muli %180, %arg0 : i32
    %182 = arith.addi %179, %181 : i32
    %183 = arith.index_cast %182 : i32 to index
    %c0_61 = arith.constant 0 : index
    %c0_62 = arith.constant 0 : index
    %184 = vector.load %arg9[%183, %c0_61, %c0_62] : memref<8x8x512xf32, #tpu.memory_space<vmem>>, vector<1x8x512xf32>
    %185 = vector.shape_cast %184 : vector<1x8x512xf32> to vector<8x512xf32>
    %186 = arith.truncf %173 : vector<8x128xf32> to vector<8x128xbf16>
    %cst_63 = arith.constant dense<0.000000e+00> : vector<8x512xf32>
    %187 = tpu.matmul %186, %15, %cst_63 {dimension_numbers = #tpu.dot_dimension_numbers<[1], [0], [0], [1], [0, 0, 1, 1], [], []>} : vector<8x128xbf16>, vector<128x512xbf16>, vector<8x512xf32> -> vector<8x512xf32>
    %188 = arith.addf %185, %187 : vector<8x512xf32>
    %189 = vector.extract_strided_slice %188 {offsets = [0, 0], sizes = [8, 128], strides = [1, 1]} : vector<8x512xf32> to vector<8x128xf32>
    %190 = arith.negf %189 : vector<8x128xf32>
    %191 = math.exp %190 : vector<8x128xf32>
    %cst_64 = arith.constant 1.000000e+00 : f32
    %192 = vector.broadcast %cst_64 : f32 to vector<8x128xf32>
    %193 = arith.addf %192, %191 : vector<8x128xf32>
    %194 = arith.divf %192, %193 : vector<8x128xf32>
    %195 = vector.extract_strided_slice %188 {offsets = [0, 128], sizes = [8, 128], strides = [1, 1]} : vector<8x512xf32> to vector<8x128xf32>
    %196 = arith.negf %195 : vector<8x128xf32>
    %197 = math.exp %196 : vector<8x128xf32>
    %cst_65 = arith.constant 1.000000e+00 : f32
    %198 = vector.broadcast %cst_65 : f32 to vector<8x128xf32>
    %199 = arith.addf %198, %197 : vector<8x128xf32>
    %200 = arith.divf %198, %199 : vector<8x128xf32>
    %201 = vector.extract_strided_slice %188 {offsets = [0, 256], sizes = [8, 128], strides = [1, 1]} : vector<8x512xf32> to vector<8x128xf32>
    %202 = math.tanh %201 : vector<8x128xf32>
    %203 = vector.extract_strided_slice %188 {offsets = [0, 384], sizes = [8, 128], strides = [1, 1]} : vector<8x512xf32> to vector<8x128xf32>
    %204 = arith.negf %203 : vector<8x128xf32>
    %205 = math.exp %204 : vector<8x128xf32>
    %cst_66 = arith.constant 1.000000e+00 : f32
    %206 = vector.broadcast %cst_66 : f32 to vector<8x128xf32>
    %207 = arith.addf %206, %205 : vector<8x128xf32>
    %208 = arith.divf %206, %207 : vector<8x128xf32>
    %209 = arith.mulf %200, %171 : vector<8x128xf32>
    %210 = arith.mulf %194, %202 : vector<8x128xf32>
    %211 = arith.addf %209, %210 : vector<8x128xf32>
    %212 = math.tanh %211 : vector<8x128xf32>
    %213 = arith.mulf %208, %212 : vector<8x128xf32>
    %214 = arith.index_cast %182 : i32 to index
    %c0_67 = arith.constant 0 : index
    %c0_68 = arith.constant 0 : index
    %215 = vector.load %arg6[%214, %c0_67, %c0_68] : memref<8x8x128xf32, #tpu.memory_space<vmem>>, vector<1x8x128xf32>
    %216 = vector.shape_cast %215 : vector<1x8x128xf32> to vector<8x128xf32>
    %217 = vector.shape_cast %213 : vector<8x128xf32> to vector<1x8x128xf32>
    tpu.vector_store %arg6[%214, %c0_67, %c0_68], %217 {strides = array<i32>} : memref<8x8x128xf32, #tpu.memory_space<vmem>>, vector<1x8x128xf32>,
    %c5_i32 = arith.constant 5 : i32
    %c1_i32_69 = arith.constant 1 : i32
    %218 = arith.subi %c1_i32_69, %arg0 : i32
    %219 = arith.muli %c5_i32, %218 : i32
    %c7_i32_70 = arith.constant 7 : i32
    %220 = arith.subi %c7_i32_70, %c5_i32 : i32
    %221 = arith.muli %220, %arg0 : i32
    %222 = arith.addi %219, %221 : i32
    %223 = arith.index_cast %222 : i32 to index
    %c0_71 = arith.constant 0 : index
    %c0_72 = arith.constant 0 : index
    %224 = vector.load %arg9[%223, %c0_71, %c0_72] : memref<8x8x512xf32, #tpu.memory_space<vmem>>, vector<1x8x512xf32>
    %225 = vector.shape_cast %224 : vector<1x8x512xf32> to vector<8x512xf32>
    %226 = arith.truncf %213 : vector<8x128xf32> to vector<8x128xbf16>
    %cst_73 = arith.constant dense<0.000000e+00> : vector<8x512xf32>
    %227 = tpu.matmul %226, %15, %cst_73 {dimension_numbers = #tpu.dot_dimension_numbers<[1], [0], [0], [1], [0, 0, 1, 1], [], []>} : vector<8x128xbf16>, vector<128x512xbf16>, vector<8x512xf32> -> vector<8x512xf32>
    %228 = arith.addf %225, %227 : vector<8x512xf32>
    %229 = vector.extract_strided_slice %228 {offsets = [0, 0], sizes = [8, 128], strides = [1, 1]} : vector<8x512xf32> to vector<8x128xf32>
    %230 = arith.negf %229 : vector<8x128xf32>
    %231 = math.exp %230 : vector<8x128xf32>
    %cst_74 = arith.constant 1.000000e+00 : f32
    %232 = vector.broadcast %cst_74 : f32 to vector<8x128xf32>
    %233 = arith.addf %232, %231 : vector<8x128xf32>
    %234 = arith.divf %232, %233 : vector<8x128xf32>
    %235 = vector.extract_strided_slice %228 {offsets = [0, 128], sizes = [8, 128], strides = [1, 1]} : vector<8x512xf32> to vector<8x128xf32>
    %236 = arith.negf %235 : vector<8x128xf32>
    %237 = math.exp %236 : vector<8x128xf32>
    %cst_75 = arith.constant 1.000000e+00 : f32
    %238 = vector.broadcast %cst_75 : f32 to vector<8x128xf32>
    %239 = arith.addf %238, %237 : vector<8x128xf32>
    %240 = arith.divf %238, %239 : vector<8x128xf32>
    %241 = vector.extract_strided_slice %228 {offsets = [0, 256], sizes = [8, 128], strides = [1, 1]} : vector<8x512xf32> to vector<8x128xf32>
    %242 = math.tanh %241 : vector<8x128xf32>
    %243 = vector.extract_strided_slice %228 {offsets = [0, 384], sizes = [8, 128], strides = [1, 1]} : vector<8x512xf32> to vector<8x128xf32>
    %244 = arith.negf %243 : vector<8x128xf32>
    %245 = math.exp %244 : vector<8x128xf32>
    %cst_76 = arith.constant 1.000000e+00 : f32
    %246 = vector.broadcast %cst_76 : f32 to vector<8x128xf32>
    %247 = arith.addf %246, %245 : vector<8x128xf32>
    %248 = arith.divf %246, %247 : vector<8x128xf32>
    %249 = arith.mulf %240, %211 : vector<8x128xf32>
    %250 = arith.mulf %234, %242 : vector<8x128xf32>
    %251 = arith.addf %249, %250 : vector<8x128xf32>
    %252 = math.tanh %251 : vector<8x128xf32>
    %253 = arith.mulf %248, %252 : vector<8x128xf32>
    %254 = arith.index_cast %222 : i32 to index
    %c0_77 = arith.constant 0 : index
    %c0_78 = arith.constant 0 : index
    %255 = vector.load %arg6[%254, %c0_77, %c0_78] : memref<8x8x128xf32, #tpu.memory_space<vmem>>, vector<1x8x128xf32>
    %256 = vector.shape_cast %255 : vector<1x8x128xf32> to vector<8x128xf32>
    %257 = vector.shape_cast %253 : vector<8x128xf32> to vector<1x8x128xf32>
    tpu.vector_store %arg6[%254, %c0_77, %c0_78], %257 {strides = array<i32>} : memref<8x8x128xf32, #tpu.memory_space<vmem>>, vector<1x8x128xf32>,
    %c6_i32 = arith.constant 6 : i32
    %c1_i32_79 = arith.constant 1 : i32
    %258 = arith.subi %c1_i32_79, %arg0 : i32
    %259 = arith.muli %c6_i32, %258 : i32
    %c7_i32_80 = arith.constant 7 : i32
    %260 = arith.subi %c7_i32_80, %c6_i32 : i32
    %261 = arith.muli %260, %arg0 : i32
    %262 = arith.addi %259, %261 : i32
    %263 = arith.index_cast %262 : i32 to index
    %c0_81 = arith.constant 0 : index
    %c0_82 = arith.constant 0 : index
    %264 = vector.load %arg9[%263, %c0_81, %c0_82] : memref<8x8x512xf32, #tpu.memory_space<vmem>>, vector<1x8x512xf32>
    %265 = vector.shape_cast %264 : vector<1x8x512xf32> to vector<8x512xf32>
    %266 = arith.truncf %253 : vector<8x128xf32> to vector<8x128xbf16>
    %cst_83 = arith.constant dense<0.000000e+00> : vector<8x512xf32>
    %267 = tpu.matmul %266, %15, %cst_83 {dimension_numbers = #tpu.dot_dimension_numbers<[1], [0], [0], [1], [0, 0, 1, 1], [], []>} : vector<8x128xbf16>, vector<128x512xbf16>, vector<8x512xf32> -> vector<8x512xf32>
    %268 = arith.addf %265, %267 : vector<8x512xf32>
    %269 = vector.extract_strided_slice %268 {offsets = [0, 0], sizes = [8, 128], strides = [1, 1]} : vector<8x512xf32> to vector<8x128xf32>
    %270 = arith.negf %269 : vector<8x128xf32>
    %271 = math.exp %270 : vector<8x128xf32>
    %cst_84 = arith.constant 1.000000e+00 : f32
    %272 = vector.broadcast %cst_84 : f32 to vector<8x128xf32>
    %273 = arith.addf %272, %271 : vector<8x128xf32>
    %274 = arith.divf %272, %273 : vector<8x128xf32>
    %275 = vector.extract_strided_slice %268 {offsets = [0, 128], sizes = [8, 128], strides = [1, 1]} : vector<8x512xf32> to vector<8x128xf32>
    %276 = arith.negf %275 : vector<8x128xf32>
    %277 = math.exp %276 : vector<8x128xf32>
    %cst_85 = arith.constant 1.000000e+00 : f32
    %278 = vector.broadcast %cst_85 : f32 to vector<8x128xf32>
    %279 = arith.addf %278, %277 : vector<8x128xf32>
    %280 = arith.divf %278, %279 : vector<8x128xf32>
    %281 = vector.extract_strided_slice %268 {offsets = [0, 256], sizes = [8, 128], strides = [1, 1]} : vector<8x512xf32> to vector<8x128xf32>
    %282 = math.tanh %281 : vector<8x128xf32>
    %283 = vector.extract_strided_slice %268 {offsets = [0, 384], sizes = [8, 128], strides = [1, 1]} : vector<8x512xf32> to vector<8x128xf32>
    %284 = arith.negf %283 : vector<8x128xf32>
    %285 = math.exp %284 : vector<8x128xf32>
    %cst_86 = arith.constant 1.000000e+00 : f32
    %286 = vector.broadcast %cst_86 : f32 to vector<8x128xf32>
    %287 = arith.addf %286, %285 : vector<8x128xf32>
    %288 = arith.divf %286, %287 : vector<8x128xf32>
    %289 = arith.mulf %280, %251 : vector<8x128xf32>
    %290 = arith.mulf %274, %282 : vector<8x128xf32>
    %291 = arith.addf %289, %290 : vector<8x128xf32>
    %292 = math.tanh %291 : vector<8x128xf32>
    %293 = arith.mulf %288, %292 : vector<8x128xf32>
    %294 = arith.index_cast %262 : i32 to index
    %c0_87 = arith.constant 0 : index
    %c0_88 = arith.constant 0 : index
    %295 = vector.load %arg6[%294, %c0_87, %c0_88] : memref<8x8x128xf32, #tpu.memory_space<vmem>>, vector<1x8x128xf32>
    %296 = vector.shape_cast %295 : vector<1x8x128xf32> to vector<8x128xf32>
    %297 = vector.shape_cast %293 : vector<8x128xf32> to vector<1x8x128xf32>
    tpu.vector_store %arg6[%294, %c0_87, %c0_88], %297 {strides = array<i32>} : memref<8x8x128xf32, #tpu.memory_space<vmem>>, vector<1x8x128xf32>,
    %c7_i32_89 = arith.constant 7 : i32
    %c1_i32_90 = arith.constant 1 : i32
    %298 = arith.subi %c1_i32_90, %arg0 : i32
    %299 = arith.muli %c7_i32_89, %298 : i32
    %c7_i32_91 = arith.constant 7 : i32
    %300 = arith.subi %c7_i32_91, %c7_i32_89 : i32
    %301 = arith.muli %300, %arg0 : i32
    %302 = arith.addi %299, %301 : i32
    %303 = arith.index_cast %302 : i32 to index
    %c0_92 = arith.constant 0 : index
    %c0_93 = arith.constant 0 : index
    %304 = vector.load %arg9[%303, %c0_92, %c0_93] : memref<8x8x512xf32, #tpu.memory_space<vmem>>, vector<1x8x512xf32>
    %305 = vector.shape_cast %304 : vector<1x8x512xf32> to vector<8x512xf32>
    %306 = arith.truncf %293 : vector<8x128xf32> to vector<8x128xbf16>
    %cst_94 = arith.constant dense<0.000000e+00> : vector<8x512xf32>
    %307 = tpu.matmul %306, %15, %cst_94 {dimension_numbers = #tpu.dot_dimension_numbers<[1], [0], [0], [1], [0, 0, 1, 1], [], []>} : vector<8x128xbf16>, vector<128x512xbf16>, vector<8x512xf32> -> vector<8x512xf32>
    %308 = arith.addf %305, %307 : vector<8x512xf32>
    %309 = vector.extract_strided_slice %308 {offsets = [0, 0], sizes = [8, 128], strides = [1, 1]} : vector<8x512xf32> to vector<8x128xf32>
    %310 = arith.negf %309 : vector<8x128xf32>
    %311 = math.exp %310 : vector<8x128xf32>
    %cst_95 = arith.constant 1.000000e+00 : f32
    %312 = vector.broadcast %cst_95 : f32 to vector<8x128xf32>
    %313 = arith.addf %312, %311 : vector<8x128xf32>
    %314 = arith.divf %312, %313 : vector<8x128xf32>
    %315 = vector.extract_strided_slice %308 {offsets = [0, 128], sizes = [8, 128], strides = [1, 1]} : vector<8x512xf32> to vector<8x128xf32>
    %316 = arith.negf %315 : vector<8x128xf32>
    %317 = math.exp %316 : vector<8x128xf32>
    %cst_96 = arith.constant 1.000000e+00 : f32
    %318 = vector.broadcast %cst_96 : f32 to vector<8x128xf32>
    %319 = arith.addf %318, %317 : vector<8x128xf32>
    %320 = arith.divf %318, %319 : vector<8x128xf32>
    %321 = vector.extract_strided_slice %308 {offsets = [0, 256], sizes = [8, 128], strides = [1, 1]} : vector<8x512xf32> to vector<8x128xf32>
    %322 = math.tanh %321 : vector<8x128xf32>
    %323 = vector.extract_strided_slice %308 {offsets = [0, 384], sizes = [8, 128], strides = [1, 1]} : vector<8x512xf32> to vector<8x128xf32>
    %324 = arith.negf %323 : vector<8x128xf32>
    %325 = math.exp %324 : vector<8x128xf32>
    %cst_97 = arith.constant 1.000000e+00 : f32
    %326 = vector.broadcast %cst_97 : f32 to vector<8x128xf32>
    %327 = arith.addf %326, %325 : vector<8x128xf32>
    %328 = arith.divf %326, %327 : vector<8x128xf32>
    %329 = arith.mulf %320, %291 : vector<8x128xf32>
    %330 = arith.mulf %314, %322 : vector<8x128xf32>
    %331 = arith.addf %329, %330 : vector<8x128xf32>
    %332 = math.tanh %331 : vector<8x128xf32>
    %333 = arith.mulf %328, %332 : vector<8x128xf32>
    %334 = arith.index_cast %302 : i32 to index
    %c0_98 = arith.constant 0 : index
    %c0_99 = arith.constant 0 : index
    %335 = vector.load %arg6[%334, %c0_98, %c0_99] : memref<8x8x128xf32, #tpu.memory_space<vmem>>, vector<1x8x128xf32>
    %336 = vector.shape_cast %335 : vector<1x8x128xf32> to vector<8x128xf32>
    %337 = vector.shape_cast %333 : vector<8x128xf32> to vector<1x8x128xf32>
    tpu.vector_store %arg6[%334, %c0_98, %c0_99], %337 {strides = array<i32>} : memref<8x8x128xf32, #tpu.memory_space<vmem>>, vector<1x8x128xf32>,
    %c8_i32 = arith.constant 8 : i32
    %c0_100 = arith.constant 0 : index
    %c0_101 = arith.constant 0 : index
    %338 = vector.load %arg7[%c0_100, %c0_101] : memref<8x128xf32, #tpu.memory_space<vmem>>, vector<8x128xf32>
    tpu.vector_store %arg7[%c0_100, %c0_101], %333 {strides = array<i32>} : memref<8x128xf32, #tpu.memory_space<vmem>>, vector<8x128xf32>,
    %c0_102 = arith.constant 0 : index
    %c0_103 = arith.constant 0 : index
    %339 = vector.load %arg8[%c0_102, %c0_103] : memref<8x128xf32, #tpu.memory_space<vmem>>, vector<8x128xf32>
    tpu.vector_store %arg8[%c0_102, %c0_103], %331 {strides = array<i32>} : memref<8x128xf32, #tpu.memory_space<vmem>>, vector<8x128xf32>,
    return
  }
  func.func @transform_0(%arg0: i32, %arg1: i32) -> (i32, i32, i32) {
    %c1_i32 = arith.constant 1 : i32
    %0 = arith.subi %c1_i32, %arg0 : i32
    %1 = arith.muli %arg1, %0 : i32
    %c0_i32 = arith.constant 0 : i32
    %2 = arith.subi %c0_i32, %arg1 : i32
    %3 = arith.muli %2, %arg0 : i32
    %4 = arith.addi %1, %3 : i32
    %c0_i32_0 = arith.constant 0 : i32
    %c0_i32_1 = arith.constant 0 : i32
    %c0_i32_2 = arith.constant 0 : i32
    return %4, %c0_i32_0, %c0_i32_1 : i32, i32, i32
  }
  func.func @transform_1(%arg0: i32, %arg1: i32) -> (i32, i32, i32) {
    %c0_i32 = arith.constant 0 : i32
    %c0_i32_0 = arith.constant 0 : i32
    %c0_i32_1 = arith.constant 0 : i32
    return %arg0, %c0_i32, %c0_i32_0 : i32, i32, i32
  }
  func.func @transform_2(%arg0: i32, %arg1: i32) -> (i32, i32, i32) {
    %c0_i32 = arith.constant 0 : i32
    %c0_i32_0 = arith.constant 0 : i32
    %c0_i32_1 = arith.constant 0 : i32
    return %arg0, %c0_i32, %c0_i32_0 : i32, i32, i32
  }
  func.func @transform_3(%arg0: i32, %arg1: i32) -> (i32, i32, i32) {
    %c0_i32 = arith.constant 0 : i32
    %c0_i32_0 = arith.constant 0 : i32
    %c0_i32_1 = arith.constant 0 : i32
    return %arg0, %c0_i32, %c0_i32_0 : i32, i32, i32
  }
  func.func @transform_4(%arg0: i32, %arg1: i32) -> (i32, i32, i32) {
    %c1_i32 = arith.constant 1 : i32
    %0 = arith.subi %c1_i32, %arg0 : i32
    %1 = arith.muli %arg1, %0 : i32
    %c0_i32 = arith.constant 0 : i32
    %2 = arith.subi %c0_i32, %arg1 : i32
    %3 = arith.muli %2, %arg0 : i32
    %4 = arith.addi %1, %3 : i32
    %c0_i32_0 = arith.constant 0 : i32
    %c0_i32_1 = arith.constant 0 : i32
    return %4, %c0_i32_0, %arg0 : i32, i32, i32
  }
}

</mosaic_0001>

<llo_original>
// kernel: tpu_custom_call.1
$region0: #{tpu_custom_call.1}
  #allocation0 [shape = 'u32[]', space=smem, size = 0x4, offset = 0x4, fixed_abs, tag = 'smem constant byte address 0x4 - core index']
  #allocation1 [shape = 'u32[72,128]{1,0:T(1,128)}', space=vmem, size = 0x9000, scoped, tag = 'internal scratch']
  #allocation2 [shape = 'f32[8,128]{1,0:T(8,128)}', space=vmem, size = 0x1000, scoped, tag = 'scratch operand']
  #allocation3 [shape = 'f32[8,128]{1,0:T(8,128)}', space=vmem, size = 0x1000, scoped, tag = 'scratch operand']
  #allocation4 [shape = 'f32[8,8,512]{2,1,0:T(8,128)}', space=vmem, size = 0x20000, scoped, tag = 'scratch operand']
  %s0 = inlined_call_operand.hbm [shape: bf16[8,8,128], index: 0, kind: input, shape index: {}]
  %s1 = inlined_call_operand.hbm [shape: bf16[2,128,512], index: 1, kind: input, shape index: {}]
  %s2 = inlined_call_operand.hbm [shape: bf16[2,128,512], index: 2, kind: input, shape index: {}]
  %s3 = inlined_call_operand.hbm [shape: f32[2,1,512], index: 3, kind: input, shape index: {}]
  %s4 = inlined_call_operand.hbm [shape: f32[8,8,256], index: 4, kind: output, shape index: {}]
  %s5 = sld [smem:[#allocation0]]
  $region69: #{tpu_custom_call.1} parent=0
    _
  %s7 = ssub.s32 1, %s5
  %s8 = scalar_select 0, %s7, %s5
  $region1: #{tpu_custom_call.1} parent=0
    #allocation5 [shape = 'u8[32768]{0}', space=vmem, size = 0x8000, scoped, tag = 'input window, operand 0']
    #allocation6 [shape = 's32[2]{0}', space=sflag, size = 0x8, scoped, tag = 'scoped memory for tpu_custom_call.1']
    #allocation7 [shape = 's32[2]{0}', space=sflag, size = 0x8, scoped, tag = 'scoped memory for tpu_custom_call.1']
    #allocation8 [shape = 'u8[131072]{0}', space=vmem, size = 0x20000, scoped, tag = 'input window, operand 1, single buffered']
    #allocation9 [shape = 's32[1]{0}', space=sflag, size = 0x4, scoped, tag = 'scoped memory for tpu_custom_call.1']
    #allocation10 [shape = 'u8[131072]{0}', space=vmem, size = 0x20000, scoped, tag = 'input window, operand 2, single buffered']
    #allocation11 [shape = 'u8[2048]{0}', space=vmem, size = 0x800, scoped, tag = 'input window, operand 3, single buffered']
    #allocation12 [shape = 's32[1]{0}', space=sflag, size = 0x4, scoped, tag = 'scoped memory for tpu_custom_call.1']
    #allocation13 [shape = 'u8[65536]{0}', space=vmem, size = 0x10000, scoped, tag = 'output window, operand 0']
    %9 = vsyncpa [#allocation6], 0
    %s10 = scalar_lea.sflag [#allocation6], 1
    %11 = vsyncpa %s10, 0
    %12 = vsyncpa [#allocation9], 0
    %13 = vsyncpa [#allocation12], 0
    %14 = vsyncpa [#allocation7], 0
    %s15 = scalar_lea.sflag [#allocation7], 1
    %16 = vsyncpa %s15, 0
    loop: start=0, step=1, limit=4
    $region2: #{tpu_custom_call.1} parent=1 // loop_pre_header
      _
    $region3: #{tpu_custom_call.1} parent=1 // loop_header
      %s18 = sphi 0, %s22
      %p19 = scmp.ge.s32.totalorder %s18, 4
      %s25 = sphi 0, %s37
      %s26 = sphi 0, %s33
      %s27 = sphi 0, %s25
      %s28 = sphi 0, %s26
      %s29 = sphi 0, %s27
      %s30 = sphi 0, %s28
      %s50 = sphi 0, %s52
      %s53 = sphi 0, %s50
      %s54 = sphi 0, %s53
      %s70 = sphi 0, %s54
      %s76 = sphi 0, %s78
      %s79 = sphi 0, %s76
      %s80 = sphi 0, %s79
      %s96 = sphi 0, %s80
      %s102 = sphi 0, %s104
      %s105 = sphi 0, %s102
      %s106 = sphi 0, %s105
      %s122 = sphi 0, %s106
      %s128 = sphi 0, %s130
      %s131 = sphi 0, %s128
      %s132 = sphi 0, %s131
      %s148 = sphi 0, %s132
      %s166 = sphi 0, %s168
      %s169 = sphi 0, %s166
      %s170 = sphi 0, %s169
      %s186 = sphi 0, %s170
    $region4: #{tpu_custom_call.1} parent=1 // loop_header_branch
      %21 = sbr.rel (%p19) target = $region8
    $region5: #{tpu_custom_call.1} parent=1 // loop_body
      %s23 = ssub.s32 %s18, 1
      %s24 = ssub.s32 %s18, 2
      %s31 = sadd.s32 1, %s26
      %p32 = scmp.ge.s32.totalorder %s31, 1
      %s33 = scalar_select %p32, 0, %s31
      %s34 = sadd.s32 1, %s25
      %s35 = scalar_select %p32, %s34, %s25
      %p36 = scmp.ge.s32.totalorder %s35, 2
      %s37 = scalar_select %p36, 0, %s35
      %s38 = ssub.s32 1, %s25
      %s39 = smul.u32 %s26, %s38
      %s40 = ssub.s32 0, %s26
      %s41 = smul.u32 %s40, %s25
      %s42 = sadd.s32 %s39, %s41
      %s43 = ssub.s32 1, %s37
      %s44 = smul.u32 %s33, %s43
      %s45 = ssub.s32 0, %s33
      %s46 = smul.u32 %s45, %s37
      %s47 = sadd.s32 %s44, %s46
      %s48 = ssub.s32 %s42, %s47
      %p49 = scmp.eq.s32.totalorder %s48, 0
      %s51 = sadd.s32 %s50, 1
      %s52 = scalar_select %p49, %s50, %s51
      %p55 = pneg %p49
      %p56 = scmp.eq.s32.totalorder %s18, 1
      %p57 = por %p55, %p56
      %p58 = scmp.ne.s32.totalorder %s50, %s53
      %p59 = scmp.eq.s32.totalorder %s18, 0
      %p60 = por %p58, %p59
      %p61 = scmp.ne.s32.totalorder %s50, %s53
      %p62 = scmp.eq.s32.totalorder %s23, 1
      %p63 = por %p61, %p62
      %p64 = scmp.ne.s32.totalorder %s53, %s54
      %p65 = scmp.eq.s32.totalorder %s23, 0
      %p66 = por %p64, %p65
      %p67 = scmp.ne.s32.totalorder %s53, %s54
      %p68 = scmp.eq.s32.totalorder %s24, 1
      %p69 = por %p67, %p68
      %p71 = scmp.ne.s32.totalorder %s54, %s70
      %p72 = scmp.eq.s32.totalorder %s24, 0
      %p73 = por %p71, %p72
      %s74 = ssub.s32 %s25, %s37
      %p75 = scmp.eq.s32.totalorder %s74, 0
      %s77 = sadd.s32 %s76, 1
      %s78 = scalar_select %p75, %s76, %s77
      %p81 = pneg %p75
      %p82 = scmp.eq.s32.totalorder %s18, 1
      %p83 = por %p81, %p82
      %p84 = scmp.ne.s32.totalorder %s76, %s79
      %p85 = scmp.eq.s32.totalorder %s18, 0
      %p86 = por %p84, %p85
      %p87 = scmp.ne.s32.totalorder %s76, %s79
      %p88 = scmp.eq.s32.totalorder %s23, 1
      %p89 = por %p87, %p88
      %p90 = scmp.ne.s32.totalorder %s79, %s80
      %p91 = scmp.eq.s32.totalorder %s23, 0
      %p92 = por %p90, %p91
      %p93 = scmp.ne.s32.totalorder %s79, %s80
      %p94 = scmp.eq.s32.totalorder %s24, 1
      %p95 = por %p93, %p94
      %p97 = scmp.ne.s32.totalorder %s80, %s96
      %p98 = scmp.eq.s32.totalorder %s24, 0
      %p99 = por %p97, %p98
      %s100 = ssub.s32 %s25, %s37
      %p101 = scmp.eq.s32.totalorder %s100, 0
      %s103 = sadd.s32 %s102, 1
      %s104 = scalar_select %p101, %s102, %s103
      %p107 = pneg %p101
      %p108 = scmp.eq.s32.totalorder %s18, 1
      %p109 = por %p107, %p108
      %p110 = scmp.ne.s32.totalorder %s102, %s105
      %p111 = scmp.eq.s32.totalorder %s18, 0
      %p112 = por %p110, %p111
      %p113 = scmp.ne.s32.totalorder %s102, %s105
      %p114 = scmp.eq.s32.totalorder %s23, 1
      %p115 = por %p113, %p114
      %p116 = scmp.ne.s32.totalorder %s105, %s106
      %p117 = scmp.eq.s32.totalorder %s23, 0
      %p118 = por %p116, %p117
      %p119 = scmp.ne.s32.totalorder %s105, %s106
      %p120 = scmp.eq.s32.totalorder %s24, 1
      %p121 = por %p119, %p120
      %p123 = scmp.ne.s32.totalorder %s106, %s122
      %p124 = scmp.eq.s32.totalorder %s24, 0
      %p125 = por %p123, %p124
      %s126 = ssub.s32 %s25, %s37
      %p127 = scmp.eq.s32.totalorder %s126, 0
      %s129 = sadd.s32 %s128, 1
      %s130 = scalar_select %p127, %s128, %s129
      %p133 = pneg %p127
      %p134 = scmp.eq.s32.totalorder %s18, 1
      %p135 = por %p133, %p134
      %p136 = scmp.ne.s32.totalorder %s128, %s131
      %p137 = scmp.eq.s32.totalorder %s18, 0
      %p138 = por %p136, %p137
      %p139 = scmp.ne.s32.totalorder %s128, %s131
      %p140 = scmp.eq.s32.totalorder %s23, 1
      %p141 = por %p139, %p140
      %p142 = scmp.ne.s32.totalorder %s131, %s132
      %p143 = scmp.eq.s32.totalorder %s23, 0
      %p144 = por %p142, %p143
      %p145 = scmp.ne.s32.totalorder %s131, %s132
      %p146 = scmp.eq.s32.totalorder %s24, 1
      %p147 = por %p145, %p146
      %p149 = scmp.ne.s32.totalorder %s132, %s148
      %p150 = scmp.eq.s32.totalorder %s24, 0
      %p151 = por %p149, %p150
      %s152 = ssub.s32 1, %s25
      %s153 = smul.u32 %s26, %s152
      %s154 = ssub.s32 0, %s26
      %s155 = smul.u32 %s154, %s25
      %s156 = sadd.s32 %s153, %s155
      %s157 = ssub.s32 1, %s37
      %s158 = smul.u32 %s33, %s157
      %s159 = ssub.s32 0, %s33
      %s160 = smul.u32 %s159, %s37
      %s161 = sadd.s32 %s158, %s160
      %s162 = ssub.s32 %s156, %s161
      %s163 = ssub.s32 %s25, %s37
      %s164 = sor.u32 %s162, %s163
      %p165 = scmp.eq.s32.totalorder %s164, 0
      %s167 = sadd.s32 %s166, 1
      %s168 = scalar_select %p165, %s166, %s167
      %p171 = pneg %p165
      %p172 = scmp.eq.s32.totalorder %s18, 1
      %p173 = por %p171, %p172
      %p174 = scmp.ne.s32.totalorder %s166, %s169
      %p175 = scmp.eq.s32.totalorder %s18, 0
      %p176 = por %p174, %p175
      %p177 = scmp.ne.s32.totalorder %s166, %s169
      %p178 = scmp.eq.s32.totalorder %s23, 1
      %p179 = por %p177, %p178
      %p180 = scmp.ne.s32.totalorder %s169, %s170
      %p181 = scmp.eq.s32.totalorder %s23, 0
      %p182 = por %p180, %p181
      %p183 = scmp.ne.s32.totalorder %s169, %s170
      %p184 = scmp.eq.s32.totalorder %s24, 1
      %p185 = por %p183, %p184
      %p187 = scmp.ne.s32.totalorder %s170, %s186
      %p188 = scmp.eq.s32.totalorder %s24, 0
      %p189 = por %p187, %p188
      %p190 = scmp.le.s32.totalorder 1, %s18
      %p191 = scmp.lt.s32.totalorder %s18, 3
      %p192 = pnand %p190, %p191
      %p193 = pneg %p192
      // Predicated region
      $region9: #{tpu_custom_call.1} parent=5 // pred_check
        _
      $region10: #{tpu_custom_call.1} parent=5 // pred_check_branch
        %195 = sbr.rel (%p192) target = $region12
      $region11: #{tpu_custom_call.1} parent=5 // pred_region
        %s196 = ssub.s32 %s18, 1
        // Predicated region
        $region13: #{tpu_custom_call.1} parent=11 // pred_check
          %p197 = pneg %p92
        $region14: #{tpu_custom_call.1} parent=11 // pred_check_branch
          %199 = sbr.rel (%p197) target = $region16
        $region15: #{tpu_custom_call.1} parent=11 // pred_region
          %201 = vsyncadd [#allocation9], 0
          %s202 = smul.addr %s27, 64
          %s203 = smul.addr %s202, 4
          %s204 = scalar_lea.hbm %s1, %s203
          %s205 = sshll.u32 %s204, 4
          %s206 = int_to_ptr.hbm [resolvable:$true] %s205
          %s207 = sshll.u32 [#allocation8], 4
          %s208 = int_to_ptr.vmem [resolvable:$true] %s207
          %213 = dma.hbm_to_vmem [thread:$0]  %s206, 4096, %s208, [#allocation9], 256, 256, 16
        $region16: #{tpu_custom_call.1} parent=11 // pred_fallthru
          _
        // Predicated region
        $region17: #{tpu_custom_call.1} parent=11 // pred_check
          %p214 = pneg %p118
        $region18: #{tpu_custom_call.1} parent=11 // pred_check_branch
          %216 = sbr.rel (%p214) target = $region20
        $region19: #{tpu_custom_call.1} parent=11 // pred_region
          %218 = vsyncadd [#allocation9], 0
          %s219 = smul.addr %s27, 64
          %s220 = smul.addr %s219, 4
          %s221 = scalar_lea.hbm %s2, %s220
          %s222 = sshll.u32 %s221, 4
          %s223 = int_to_ptr.hbm [resolvable:$true] %s222
          %s224 = sshll.u32 [#allocation10], 4
          %s225 = int_to_ptr.vmem [resolvable:$true] %s224
          %230 = dma.hbm_to_vmem [thread:$0]  %s223, 4096, %s225, [#allocation9], 256, 256, 16
        $region20: #{tpu_custom_call.1} parent=11 // pred_fallthru
          _
        // Predicated region
        $region21: #{tpu_custom_call.1} parent=11 // pred_check
          %p231 = pneg %p144
        $region22: #{tpu_custom_call.1} parent=11 // pred_check_branch
          %233 = sbr.rel (%p231) target = $region24
        $region23: #{tpu_custom_call.1} parent=11 // pred_region
          %235 = vsyncadd [#allocation12], 0
          %s236 = smul.addr %s27, 4
          %s237 = scalar_lea.hbm %s3, %s236
          %s239 = sshll.u32 %s237, 4
          %s240 = int_to_ptr.hbm [resolvable:$true] %s239
          %s241 = sshll.u32 [#allocation11], 4
          %s242 = int_to_ptr.vmem [resolvable:$true] %s241
          %244 = dma.hbm_to_vmem [thread:$0]  %s240, 64, %s242, [#allocation12]
        $region24: #{tpu_custom_call.1} parent=11 // pred_fallthru
          _
      $region12: #{tpu_custom_call.1} parent=5 // pred_fallthru
        _
      %p245 = scmp.lt.s32.totalorder %s18, 2
      // Predicated region
      $region25: #{tpu_custom_call.1} parent=5 // pred_check
        %p246 = pneg %p245
      $region26: #{tpu_custom_call.1} parent=5 // pred_check_branch
        %248 = sbr.rel (%p246) target = $region28
      $region27: #{tpu_custom_call.1} parent=5 // pred_region
        // Predicated region
        $region29: #{tpu_custom_call.1} parent=27 // pred_check
          %p249 = pneg %p60
        $region30: #{tpu_custom_call.1} parent=27 // pred_check_branch
          %251 = sbr.rel (%p249) target = $region32
        $region31: #{tpu_custom_call.1} parent=27 // pred_region
          %s252 = sand.u32 %s50, 1
          %s253 = scalar_lea.sflag [#allocation6], %s252
          %s254 = sand.u32 %s50, 1
          %s255 = smul.addr %s254, 32
          %s256 = scalar_lea.vmem [#allocation5], %s255
          %s257 = ssub.s32 1, %s25
          %s258 = smul.u32 %s26, %s257
          %s259 = ssub.s32 0, %s26
          %s260 = smul.u32 %s259, %s25
          %s261 = sadd.s32 %s258, %s260
          %s262 = smul.u32 8, %s261
          %264 = vsyncadd %s253, 0
          %s265 = smul.addr %s262, 4
          %s266 = scalar_lea.hbm %s0, %s265
          %s267 = sshll.u32 %s266, 4
          %s268 = int_to_ptr.hbm [resolvable:$true] %s267
          %s269 = sshll.u32 %s256, 4
          %s270 = int_to_ptr.vmem [resolvable:$true] %s269
          %275 = dma.hbm_to_vmem [thread:$0]  %s268, 512, %s270, %s253, 64, 64, 4
        $region32: #{tpu_custom_call.1} parent=27 // pred_fallthru
          _
      $region28: #{tpu_custom_call.1} parent=5 // pred_fallthru
        _
      %p276 = scmp.le.s32.totalorder 1, %s18
      %p277 = scmp.lt.s32.totalorder %s18, 3
      %p278 = pnand %p276, %p277
      %p279 = pneg %p278
      // Predicated region
      $region33: #{tpu_custom_call.1} parent=5 // pred_check
        _
      $region34: #{tpu_custom_call.1} parent=5 // pred_check_branch
        %281 = sbr.rel (%p278) target = $region36
      $region35: #{tpu_custom_call.1} parent=5 // pred_region
        %s282 = ssub.s32 %s18, 1
        %s283 = sand.u32 %s53, 1
        %s284 = scalar_lea.sflag [#allocation6], %s283
        %s285 = sand.u32 %s53, 1
        %s286 = smul.addr %s285, 32
        %s287 = scalar_lea.vmem [#allocation5], %s286
        // Predicated region
        $region37: #{tpu_custom_call.1} parent=35 // pred_check
          %p288 = pneg %p66
        $region38: #{tpu_custom_call.1} parent=35 // pred_check_branch
          %290 = sbr.rel (%p288) target = $region40
        $region39: #{tpu_custom_call.1} parent=35 // pred_region
          %292 = dma.done %s284, 512
        $region40: #{tpu_custom_call.1} parent=35 // pred_fallthru
          _
        // Predicated region
        $region41: #{tpu_custom_call.1} parent=35 // pred_check
          %p293 = pneg %p92
        $region42: #{tpu_custom_call.1} parent=35 // pred_check_branch
          %295 = sbr.rel (%p293) target = $region44
        $region43: #{tpu_custom_call.1} parent=35 // pred_region
          %297 = dma.done [#allocation9], 4096
        $region44: #{tpu_custom_call.1} parent=35 // pred_fallthru
          _
        // Predicated region
        $region45: #{tpu_custom_call.1} parent=35 // pred_check
          %p298 = pneg %p118
        $region46: #{tpu_custom_call.1} parent=35 // pred_check_branch
          %300 = sbr.rel (%p298) target = $region48
        $region47: #{tpu_custom_call.1} parent=35 // pred_region
          %302 = dma.done [#allocation9], 4096
        $region48: #{tpu_custom_call.1} parent=35 // pred_fallthru
          _
        // Predicated region
        $region49: #{tpu_custom_call.1} parent=35 // pred_check
          %p303 = pneg %p144
        $region50: #{tpu_custom_call.1} parent=35 // pred_check_branch
          %305 = sbr.rel (%p303) target = $region52
        $region51: #{tpu_custom_call.1} parent=35 // pred_region
          %307 = dma.done [#allocation12], 64
        $region52: #{tpu_custom_call.1} parent=35 // pred_fallthru
          _
        %s308 = sand.u32 %s53, 1
        %s309 = scalar_lea.sflag [#allocation6], %s308
        %s310 = sand.u32 %s53, 1
        %s311 = smul.addr %s310, 32
        %s312 = scalar_lea.vmem [#allocation5], %s311
        %p313 = pneg %p66
        %p314 = pneg %p63
        %p315 = pneg %p92
        %p316 = pneg %p89
        %p317 = pneg %p118
        %p318 = pneg %p115
        %p319 = pneg %p144
        %p320 = pneg %p141
        %p321 = pneg %p182
        %p322 = pneg %p179
        %s323 = sand.u32 %s169, 1
        %s324 = scalar_lea.sflag [#allocation7], %s323
        %s325 = sand.u32 %s169, 1
        %s326 = smul.addr %s325, 64
        %s327 = scalar_lea.vmem [#allocation13], %s326
        %s328 = ssub.s32 1, %s27
        %s329 = smul.u32 %s28, %s328
        %s330 = ssub.s32 0, %s28
        %s331 = smul.u32 %s330, %s27
        %s332 = sadd.s32 %s329, %s331
        %s333 = smul.u32 8, %s332
        %s334 = ssub.s32 1, %s27
        %s335 = smul.u32 %s28, %s334
        %s336 = ssub.s32 0, %s28
        %s337 = smul.u32 %s336, %s27
        %s338 = sadd.s32 %s335, %s337
        %s339 = smul.u32 8, %s338
        %p340 = scmp.eq.s32.totalorder %s28, 0
        // Predicated region
        $region53: #{tpu_custom_call.1} parent=35 // pred_check
          %p341 = pneg %p340
        $region54: #{tpu_custom_call.1} parent=35 // pred_check_branch
          %343 = sbr.rel (%p341) target = $region56
        $region55: #{tpu_custom_call.1} parent=35 // pred_region
          %344 = vst [vmem:[#allocation2] sm:$0xff] 0.0
          %345 = vst [vmem:[#allocation3] sm:$0xff] 0.0
        $region56: #{tpu_custom_call.1} parent=35 // pred_fallthru
          _
        %v346 = vld [vmem:[%s287] sm:$0xf]
        %v347 = vld [vmem:[%s287 + $0x4] sm:$0xf]
        %v348 = vld [vmem:[%s287 + $0x8] sm:$0xf]
        %v349 = vld [vmem:[%s287 + $0xc] sm:$0xf]
        %v350 = vld [vmem:[%s287 + $0x10] sm:$0xf]
        %v351 = vld [vmem:[%s287 + $0x14] sm:$0xf]
        %v352 = vld [vmem:[%s287 + $0x18] sm:$0xf]
        %v353 = vld [vmem:[%s287 + $0x1c] sm:$0xf]
        %v354 = vld [vmem:[#allocation8] sm:$0xff]
        %v355 = vld [vmem:[#allocation8 + $0x8] sm:$0xff]
        %v356 = vld [vmem:[#allocation8 + $0x10] sm:$0xff]
        %v357 = vld [vmem:[#allocation8 + $0x18] sm:$0xff]
        %v358 = vld [vmem:[#allocation8 + $0x20] sm:$0xff]
        %v359 = vld [vmem:[#allocation8 + $0x28] sm:$0xff]
        %v360 = vld [vmem:[#allocation8 + $0x30] sm:$0xff]
        %v361 = vld [vmem:[#allocation8 + $0x38] sm:$0xff]
        %v362 = vld [vmem:[#allocation8 + $0x40] sm:$0xff]
        %v363 = vld [vmem:[#allocation8 + $0x48] sm:$0xff]
        %v364 = vld [vmem:[#allocation8 + $0x50] sm:$0xff]
        %v365 = vld [vmem:[#allocation8 + $0x58] sm:$0xff]
        %v366 = vld [vmem:[#allocation8 + $0x60] sm:$0xff]
        %v367 = vld [vmem:[#allocation8 + $0x68] sm:$0xff]
        %v368 = vld [vmem:[#allocation8 + $0x70] sm:$0xff]
        %v369 = vld [vmem:[#allocation8 + $0x78] sm:$0xff]
        %v370 = vld [vmem:[#allocation8 + $0x80] sm:$0xff]
        %v371 = vld [vmem:[#allocation8 + $0x88] sm:$0xff]
        %v372 = vld [vmem:[#allocation8 + $0x90] sm:$0xff]
        %v373 = vld [vmem:[#allocation8 + $0x98] sm:$0xff]
        %v374 = vld [vmem:[#allocation8 + $0xa0] sm:$0xff]
        %v375 = vld [vmem:[#allocation8 + $0xa8] sm:$0xff]
        %v376 = vld [vmem:[#allocation8 + $0xb0] sm:$0xff]
        %v377 = vld [vmem:[#allocation8 + $0xb8] sm:$0xff]
        %v378 = vld [vmem:[#allocation8 + $0xc0] sm:$0xff]
        %v379 = vld [vmem:[#allocation8 + $0xc8] sm:$0xff]
        %v380 = vld [vmem:[#allocation8 + $0xd0] sm:$0xff]
        %v381 = vld [vmem:[#allocation8 + $0xd8] sm:$0xff]
        %v382 = vld [vmem:[#allocation8 + $0xe0] sm:$0xff]
        %v383 = vld [vmem:[#allocation8 + $0xe8] sm:$0xff]
        %v384 = vld [vmem:[#allocation8 + $0xf0] sm:$0xff]
        %v385 = vld [vmem:[#allocation8 + $0xf8] sm:$0xff]
        %v386 = vld [vmem:[#allocation11] sm:$0xf]
        %v388 = vperm.slane %v386, 0
        %v389 = vperm.slane %v386, 1
        %v390 = vperm.slane %v386, 2
        %v391 = vperm.slane %v386, 3
        %v404 = vunpack.c.l.b16 %v346
        %v405 = vunpack.c.l.b16 %v347
        %v406 = vunpack.c.l.b16 %v348
        %v407 = vunpack.c.l.b16 %v349
        %v408 = vunpack.c.l.b16 %v350
        %v409 = vunpack.c.l.b16 %v351
        %v410 = vunpack.c.l.b16 %v352
        %v411 = vunpack.c.l.b16 %v353
        %v412 = vpack.c.b16 %v405, %v404
        %v413 = vpack.c.b16 %v407, %v406
        %v414 = vpack.c.b16 %v409, %v408
        %v415 = vpack.c.b16 %v411, %v410
        %v452 = vunpack.c.l.b16 %v354
        %v453 = vunpack.c.h.b16 %v354
        %v454 = vunpack.c.l.b16 %v355
        %v455 = vunpack.c.h.b16 %v355
        %v456 = vunpack.c.l.b16 %v356
        %v457 = vunpack.c.h.b16 %v356
        %v458 = vunpack.c.l.b16 %v357
        %v459 = vunpack.c.h.b16 %v357
        %v460 = vunpack.c.l.b16 %v358
        %v461 = vunpack.c.h.b16 %v358
        %v462 = vunpack.c.l.b16 %v359
        %v463 = vunpack.c.h.b16 %v359
        %v464 = vunpack.c.l.b16 %v360
        %v465 = vunpack.c.h.b16 %v360
        %v466 = vunpack.c.l.b16 %v361
        %v467 = vunpack.c.h.b16 %v361
        %v468 = vunpack.c.l.b16 %v362
        %v469 = vunpack.c.h.b16 %v362
        %v470 = vunpack.c.l.b16 %v363
        %v471 = vunpack.c.h.b16 %v363
        %v472 = vunpack.c.l.b16 %v364
        %v473 = vunpack.c.h.b16 %v364
        %v474 = vunpack.c.l.b16 %v365
        %v475 = vunpack.c.h.b16 %v365
        %v476 = vunpack.c.l.b16 %v366
        %v477 = vunpack.c.h.b16 %v366
        %v478 = vunpack.c.l.b16 %v367
        %v479 = vunpack.c.h.b16 %v367
        %v480 = vunpack.c.l.b16 %v368
        %v481 = vunpack.c.h.b16 %v368
        %v482 = vunpack.c.l.b16 %v369
        %v483 = vunpack.c.h.b16 %v369
        %v484 = vunpack.c.l.b16 %v370
        %v485 = vunpack.c.h.b16 %v370
        %v486 = vunpack.c.l.b16 %v371
        %v487 = vunpack.c.h.b16 %v371
        %v488 = vunpack.c.l.b16 %v372
        %v489 = vunpack.c.h.b16 %v372
        %v490 = vunpack.c.l.b16 %v373
        %v491 = vunpack.c.h.b16 %v373
        %v492 = vunpack.c.l.b16 %v374
        %v493 = vunpack.c.h.b16 %v374
        %v494 = vunpack.c.l.b16 %v375
        %v495 = vunpack.c.h.b16 %v375
        %v496 = vunpack.c.l.b16 %v376
        %v497 = vunpack.c.h.b16 %v376
        %v498 = vunpack.c.l.b16 %v377
        %v499 = vunpack.c.h.b16 %v377
        %v500 = vunpack.c.l.b16 %v378
        %v501 = vunpack.c.h.b16 %v378
        %v502 = vunpack.c.l.b16 %v379
        %v503 = vunpack.c.h.b16 %v379
        %v504 = vunpack.c.l.b16 %v380
        %v505 = vunpack.c.h.b16 %v380
        %v506 = vunpack.c.l.b16 %v381
        %v507 = vunpack.c.h.b16 %v381
        %v508 = vunpack.c.l.b16 %v382
        %v509 = vunpack.c.h.b16 %v382
        %v510 = vunpack.c.l.b16 %v383
        %v511 = vunpack.c.h.b16 %v383
        %v512 = vunpack.c.l.b16 %v384
        %v513 = vunpack.c.h.b16 %v384
        %v514 = vunpack.c.l.b16 %v385
        %v515 = vunpack.c.h.b16 %v385
        %v516 = vpack.c.b16 %v456, %v452
        %v517 = vpack.c.b16 %v457, %v453
        %v518 = vpack.c.b16 %v458, %v454
        %v519 = vpack.c.b16 %v459, %v455
        %v520 = vpack.c.b16 %v464, %v460
        %v521 = vpack.c.b16 %v465, %v461
        %v522 = vpack.c.b16 %v466, %v462
        %v523 = vpack.c.b16 %v467, %v463
        %v524 = vpack.c.b16 %v472, %v468
        %v525 = vpack.c.b16 %v473, %v469
        %v526 = vpack.c.b16 %v474, %v470
        %v527 = vpack.c.b16 %v475, %v471
        %v528 = vpack.c.b16 %v480, %v476
        %v529 = vpack.c.b16 %v481, %v477
        %v530 = vpack.c.b16 %v482, %v478
        %v531 = vpack.c.b16 %v483, %v479
        %v532 = vpack.c.b16 %v488, %v484
        %v533 = vpack.c.b16 %v489, %v485
        %v534 = vpack.c.b16 %v490, %v486
        %v535 = vpack.c.b16 %v491, %v487
        %v536 = vpack.c.b16 %v496, %v492
        %v537 = vpack.c.b16 %v497, %v493
        %v538 = vpack.c.b16 %v498, %v494
        %v539 = vpack.c.b16 %v499, %v495
        %v540 = vpack.c.b16 %v504, %v500
        %v541 = vpack.c.b16 %v505, %v501
        %v542 = vpack.c.b16 %v506, %v502
        %v543 = vpack.c.b16 %v507, %v503
        %v544 = vpack.c.b16 %v512, %v508
        %v545 = vpack.c.b16 %v513, %v509
        %v546 = vpack.c.b16 %v514, %v510
        %v547 = vpack.c.b16 %v515, %v511
        %580 = vmatpush.bf16.msra.mxu0 %v544
        %581 = vmatpush.bf16.msra.mxu0 %v540
        %582 = vmatpush.bf16.msra.mxu0 %v536
        %583 = vmatpush.bf16.msra.mxu0 %v532
        %584 = vmatpush.bf16.msra.mxu0 %v528
        %585 = vmatpush.bf16.msra.mxu0 %v524
        %586 = vmatpush.bf16.msra.mxu0 %v520
        %587 = vmatpush.bf16.msra.mxu0 %v516
        %588 = vmatmul.bf16.gmra.mxu0 %v412
        %v589 = vpop.f32.mrf.mxu0
        %v590 = vadd.f32 %v388, %v589
        %v591 = vpop.f32.mrf.mxu0
        %v592 = vadd.f32 %v388, %v591
        %593 = vmatmul.bf16.gmra.mxu0 %v413
        %v594 = vpop.f32.mrf.mxu0
        %v595 = vadd.f32 %v388, %v594
        %v596 = vpop.f32.mrf.mxu0
        %v597 = vadd.f32 %v388, %v596
        %598 = vmatmul.bf16.gmra.mxu0 %v414
        %v599 = vpop.f32.mrf.mxu0
        %v600 = vadd.f32 %v388, %v599
        %v601 = vpop.f32.mrf.mxu0
        %v602 = vadd.f32 %v388, %v601
        %603 = vmatmul.bf16.gmra.mxu0 %v415
        %v604 = vpop.f32.mrf.mxu0
        %v605 = vadd.f32 %v388, %v604
        %v606 = vpop.f32.mrf.mxu0
        %v607 = vadd.f32 %v388, %v606
        %608 = vdwg.mxu0
        %609 = vmatpush.bf16.msra.mxu0 %v545
        %610 = vmatpush.bf16.msra.mxu0 %v541
        %611 = vmatpush.bf16.msra.mxu0 %v537
        %612 = vmatpush.bf16.msra.mxu0 %v533
        %613 = vmatpush.bf16.msra.mxu0 %v529
        %614 = vmatpush.bf16.msra.mxu0 %v525
        %615 = vmatpush.bf16.msra.mxu0 %v521
        %616 = vmatpush.bf16.msra.mxu0 %v517
        %617 = vmatmul.bf16.gmra.mxu0 %v412
        %v618 = vpop.f32.mrf.mxu0
        %v619 = vadd.f32 %v389, %v618
        %v620 = vpop.f32.mrf.mxu0
        %v621 = vadd.f32 %v389, %v620
        %622 = vmatmul.bf16.gmra.mxu0 %v413
        %v623 = vpop.f32.mrf.mxu0
        %v624 = vadd.f32 %v389, %v623
        %v625 = vpop.f32.mrf.mxu0
        %v626 = vadd.f32 %v389, %v625
        %627 = vmatmul.bf16.gmra.mxu0 %v414
        %v628 = vpop.f32.mrf.mxu0
        %v629 = vadd.f32 %v389, %v628
        %v630 = vpop.f32.mrf.mxu0
        %v631 = vadd.f32 %v389, %v630
        %632 = vmatmul.bf16.gmra.mxu0 %v415
        %v633 = vpop.f32.mrf.mxu0
        %v634 = vadd.f32 %v389, %v633
        %v635 = vpop.f32.mrf.mxu0
        %v636 = vadd.f32 %v389, %v635
        %637 = vdwg.mxu0
        %638 = vmatpush.bf16.msra.mxu0 %v546
        %639 = vmatpush.bf16.msra.mxu0 %v542
        %640 = vmatpush.bf16.msra.mxu0 %v538
        %641 = vmatpush.bf16.msra.mxu0 %v534
        %642 = vmatpush.bf16.msra.mxu0 %v530
        %643 = vmatpush.bf16.msra.mxu0 %v526
        %644 = vmatpush.bf16.msra.mxu0 %v522
        %645 = vmatpush.bf16.msra.mxu0 %v518
        %646 = vmatmul.bf16.gmra.mxu0 %v412
        %v647 = vpop.f32.mrf.mxu0
        %v648 = vadd.f32 %v390, %v647
        %v649 = vpop.f32.mrf.mxu0
        %v650 = vadd.f32 %v390, %v649
        %651 = vmatmul.bf16.gmra.mxu0 %v413
        %v652 = vpop.f32.mrf.mxu0
        %v653 = vadd.f32 %v390, %v652
        %v654 = vpop.f32.mrf.mxu0
        %v655 = vadd.f32 %v390, %v654
        %656 = vmatmul.bf16.gmra.mxu0 %v414
        %v657 = vpop.f32.mrf.mxu0
        %v658 = vadd.f32 %v390, %v657
        %v659 = vpop.f32.mrf.mxu0
        %v660 = vadd.f32 %v390, %v659
        %661 = vmatmul.bf16.gmra.mxu0 %v415
        %v662 = vpop.f32.mrf.mxu0
        %v663 = vadd.f32 %v390, %v662
        %v664 = vpop.f32.mrf.mxu0
        %v665 = vadd.f32 %v390, %v664
        %666 = vdwg.mxu0
        %667 = vmatpush.bf16.msra.mxu0 %v547
        %668 = vmatpush.bf16.msra.mxu0 %v543
        %669 = vmatpush.bf16.msra.mxu0 %v539
        %670 = vmatpush.bf16.msra.mxu0 %v535
        %671 = vmatpush.bf16.msra.mxu0 %v531
        %672 = vmatpush.bf16.msra.mxu0 %v527
        %673 = vmatpush.bf16.msra.mxu0 %v523
        %674 = vmatpush.bf16.msra.mxu0 %v519
        %675 = vmatmul.bf16.gmra.mxu0 %v412
        %v676 = vpop.f32.mrf.mxu0
        %v677 = vadd.f32 %v391, %v676
        %v678 = vpop.f32.mrf.mxu0
        %v679 = vadd.f32 %v391, %v678
        %680 = vmatmul.bf16.gmra.mxu0 %v413
        %v681 = vpop.f32.mrf.mxu0
        %v682 = vadd.f32 %v391, %v681
        %v683 = vpop.f32.mrf.mxu0
        %v684 = vadd.f32 %v391, %v683
        %685 = vmatmul.bf16.gmra.mxu0 %v414
        %v686 = vpop.f32.mrf.mxu0
        %v687 = vadd.f32 %v391, %v686
        %v688 = vpop.f32.mrf.mxu0
        %v689 = vadd.f32 %v391, %v688
        %690 = vmatmul.bf16.gmra.mxu0 %v415
        %v691 = vpop.f32.mrf.mxu0
        %v692 = vadd.f32 %v391, %v691
        %v693 = vpop.f32.mrf.mxu0
        %v694 = vadd.f32 %v391, %v693
        %695 = vdwg.mxu0
        %696 = vst [vmem:[#allocation4] sm:$0xff] %v590
        %697 = vst [vmem:[#allocation4 + $0x8] sm:$0xff] %v619
        %698 = vst [vmem:[#allocation4 + $0x10] sm:$0xff] %v648
        %699 = vst [vmem:[#allocation4 + $0x18] sm:$0xff] %v677
        %700 = vst [vmem:[#allocation4 + $0x20] sm:$0xff] %v592
        %701 = vst [vmem:[#allocation4 + $0x28] sm:$0xff] %v621
        %702 = vst [vmem:[#allocation4 + $0x30] sm:$0xff] %v650
        %703 = vst [vmem:[#allocation4 + $0x38] sm:$0xff] %v679
        %704 = vst [vmem:[#allocation4 + $0x40] sm:$0xff] %v595
        %705 = vst [vmem:[#allocation4 + $0x48] sm:$0xff] %v624
        %706 = vst [vmem:[#allocation4 + $0x50] sm:$0xff] %v653
        %707 = vst [vmem:[#allocation4 + $0x58] sm:$0xff] %v682
        %708 = vst [vmem:[#allocation4 + $0x60] sm:$0xff] %v597
        %709 = vst [vmem:[#allocation4 + $0x68] sm:$0xff] %v626
        %710 = vst [vmem:[#allocation4 + $0x70] sm:$0xff] %v655
        %711 = vst [vmem:[#allocation4 + $0x78] sm:$0xff] %v684
        %712 = vst [vmem:[#allocation4 + $0x80] sm:$0xff] %v600
        %713 = vst [vmem:[#allocation4 + $0x88] sm:$0xff] %v629
        %714 = vst [vmem:[#allocation4 + $0x90] sm:$0xff] %v658
        %715 = vst [vmem:[#allocation4 + $0x98] sm:$0xff] %v687
        %716 = vst [vmem:[#allocation4 + $0xa0] sm:$0xff] %v602
        %717 = vst [vmem:[#allocation4 + $0xa8] sm:$0xff] %v631
        %718 = vst [vmem:[#allocation4 + $0xb0] sm:$0xff] %v660
        %719 = vst [vmem:[#allocation4 + $0xb8] sm:$0xff] %v689
        %720 = vst [vmem:[#allocation4 + $0xc0] sm:$0xff] %v605
        %721 = vst [vmem:[#allocation4 + $0xc8] sm:$0xff] %v634
        %722 = vst [vmem:[#allocation4 + $0xd0] sm:$0xff] %v663
        %723 = vst [vmem:[#allocation4 + $0xd8] sm:$0xff] %v692
        %724 = vst [vmem:[#allocation4 + $0xe0] sm:$0xff] %v607
        %725 = vst [vmem:[#allocation4 + $0xe8] sm:$0xff] %v636
        %726 = vst [vmem:[#allocation4 + $0xf0] sm:$0xff] %v665
        %727 = vst [vmem:[#allocation4 + $0xf8] sm:$0xff] %v694
        %v728 = vld [vmem:[#allocation10] sm:$0xff]
        %v729 = vld [vmem:[#allocation10 + $0x8] sm:$0xff]
        %v730 = vld [vmem:[#allocation10 + $0x10] sm:$0xff]
        %v731 = vld [vmem:[#allocation10 + $0x18] sm:$0xff]
        %v732 = vld [vmem:[#allocation10 + $0x20] sm:$0xff]
        %v733 = vld [vmem:[#allocation10 + $0x28] sm:$0xff]
        %v734 = vld [vmem:[#allocation10 + $0x30] sm:$0xff]
        %v735 = vld [vmem:[#allocation10 + $0x38] sm:$0xff]
        %v736 = vld [vmem:[#allocation10 + $0x40] sm:$0xff]
        %v737 = vld [vmem:[#allocation10 + $0x48] sm:$0xff]
        %v738 = vld [vmem:[#allocation10 + $0x50] sm:$0xff]
        %v739 = vld [vmem:[#allocation10 + $0x58] sm:$0xff]
        %v740 = vld [vmem:[#allocation10 + $0x60] sm:$0xff]
        %v741 = vld [vmem:[#allocation10 + $0x68] sm:$0xff]
        %v742 = vld [vmem:[#allocation10 + $0x70] sm:$0xff]
        %v743 = vld [vmem:[#allocation10 + $0x78] sm:$0xff]
        %v744 = vld [vmem:[#allocation10 + $0x80] sm:$0xff]
        %v745 = vld [vmem:[#allocation10 + $0x88] sm:$0xff]
        %v746 = vld [vmem:[#allocation10 + $0x90] sm:$0xff]
        %v747 = vld [vmem:[#allocation10 + $0x98] sm:$0xff]
        %v748 = vld [vmem:[#allocation10 + $0xa0] sm:$0xff]
        %v749 = vld [vmem:[#allocation10 + $0xa8] sm:$0xff]
        %v750 = vld [vmem:[#allocation10 + $0xb0] sm:$0xff]
        %v751 = vld [vmem:[#allocation10 + $0xb8] sm:$0xff]
        %v752 = vld [vmem:[#allocation10 + $0xc0] sm:$0xff]
        %v753 = vld [vmem:[#allocation10 + $0xc8] sm:$0xff]
        %v754 = vld [vmem:[#allocation10 + $0xd0] sm:$0xff]
        %v755 = vld [vmem:[#allocation10 + $0xd8] sm:$0xff]
        %v756 = vld [vmem:[#allocation10 + $0xe0] sm:$0xff]
        %v757 = vld [vmem:[#allocation10 + $0xe8] sm:$0xff]
        %v758 = vld [vmem:[#allocation10 + $0xf0] sm:$0xff]
        %v759 = vld [vmem:[#allocation10 + $0xf8] sm:$0xff]
        %v760 = vld [vmem:[#allocation2] sm:$0xff]
        %v761 = vld [vmem:[#allocation3] sm:$0xff]
        %s762 = smul.u32 %s27, 7
        %s763 = smul.u32 %s762, 4
        %s764 = smul.addr %s763, 8
        %s765 = scalar_lea.vmem [#allocation4], %s764
        %v766 = vld [vmem:[%s765] sm:$0xff]
        %v767 = vld [vmem:[%s765 + $0x8] sm:$0xff]
        %v768 = vld [vmem:[%s765 + $0x10] sm:$0xff]
        %v769 = vld [vmem:[%s765 + $0x18] sm:$0xff]
        %v770 = vpack.c.bf16 %v760, %v760
        %v803 = vunpack.c.l.b16 %v728
        %v804 = vunpack.c.h.b16 %v728
        %v805 = vunpack.c.l.b16 %v729
        %v806 = vunpack.c.h.b16 %v729
        %v807 = vunpack.c.l.b16 %v730
        %v808 = vunpack.c.h.b16 %v730
        %v809 = vunpack.c.l.b16 %v731
        %v810 = vunpack.c.h.b16 %v731
        %v811 = vunpack.c.l.b16 %v732
        %v812 = vunpack.c.h.b16 %v732
        %v813 = vunpack.c.l.b16 %v733
        %v814 = vunpack.c.h.b16 %v733
        %v815 = vunpack.c.l.b16 %v734
        %v816 = vunpack.c.h.b16 %v734
        %v817 = vunpack.c.l.b16 %v735
        %v818 = vunpack.c.h.b16 %v735
        %v819 = vunpack.c.l.b16 %v736
        %v820 = vunpack.c.h.b16 %v736
        %v821 = vunpack.c.l.b16 %v737
        %v822 = vunpack.c.h.b16 %v737
        %v823 = vunpack.c.l.b16 %v738
        %v824 = vunpack.c.h.b16 %v738
        %v825 = vunpack.c.l.b16 %v739
        %v826 = vunpack.c.h.b16 %v739
        %v827 = vunpack.c.l.b16 %v740
        %v828 = vunpack.c.h.b16 %v740
        %v829 = vunpack.c.l.b16 %v741
        %v830 = vunpack.c.h.b16 %v741
        %v831 = vunpack.c.l.b16 %v742
        %v832 = vunpack.c.h.b16 %v742
        %v833 = vunpack.c.l.b16 %v743
        %v834 = vunpack.c.h.b16 %v743
        %v835 = vunpack.c.l.b16 %v744
        %v836 = vunpack.c.h.b16 %v744
        %v837 = vunpack.c.l.b16 %v745
        %v838 = vunpack.c.h.b16 %v745
        %v839 = vunpack.c.l.b16 %v746
        %v840 = vunpack.c.h.b16 %v746
        %v841 = vunpack.c.l.b16 %v747
        %v842 = vunpack.c.h.b16 %v747
        %v843 = vunpack.c.l.b16 %v748
        %v844 = vunpack.c.h.b16 %v748
        %v845 = vunpack.c.l.b16 %v749
        %v846 = vunpack.c.h.b16 %v749
        %v847 = vunpack.c.l.b16 %v750
        %v848 = vunpack.c.h.b16 %v750
        %v849 = vunpack.c.l.b16 %v751
        %v850 = vunpack.c.h.b16 %v751
        %v851 = vunpack.c.l.b16 %v752
        %v852 = vunpack.c.h.b16 %v752
        %v853 = vunpack.c.l.b16 %v753
        %v854 = vunpack.c.h.b16 %v753
        %v855 = vunpack.c.l.b16 %v754
        %v856 = vunpack.c.h.b16 %v754
        %v857 = vunpack.c.l.b16 %v755
        %v858 = vunpack.c.h.b16 %v755
        %v859 = vunpack.c.l.b16 %v756
        %v860 = vunpack.c.h.b16 %v756
        %v861 = vunpack.c.l.b16 %v757
        %v862 = vunpack.c.h.b16 %v757
        %v863 = vunpack.c.l.b16 %v758
        %v864 = vunpack.c.h.b16 %v758
        %v865 = vunpack.c.l.b16 %v759
        %v866 = vunpack.c.h.b16 %v759
        %v867 = vpack.c.b16 %v807, %v803
        %v868 = vpack.c.b16 %v808, %v804
        %v869 = vpack.c.b16 %v809, %v805
        %v870 = vpack.c.b16 %v810, %v806
        %v871 = vpack.c.b16 %v815, %v811
        %v872 = vpack.c.b16 %v816, %v812
        %v873 = vpack.c.b16 %v817, %v813
        %v874 = vpack.c.b16 %v818, %v814
        %v875 = vpack.c.b16 %v823, %v819
        %v876 = vpack.c.b16 %v824, %v820
        %v877 = vpack.c.b16 %v825, %v821
        %v878 = vpack.c.b16 %v826, %v822
        %v879 = vpack.c.b16 %v831, %v827
        %v880 = vpack.c.b16 %v832, %v828
        %v881 = vpack.c.b16 %v833, %v829
        %v882 = vpack.c.b16 %v834, %v830
        %v883 = vpack.c.b16 %v839, %v835
        %v884 = vpack.c.b16 %v840, %v836
        %v885 = vpack.c.b16 %v841, %v837
        %v886 = vpack.c.b16 %v842, %v838
        %v887 = vpack.c.b16 %v847, %v843
        %v888 = vpack.c.b16 %v848, %v844
        %v889 = vpack.c.b16 %v849, %v845
        %v890 = vpack.c.b16 %v850, %v846
        %v891 = vpack.c.b16 %v855, %v851
        %v892 = vpack.c.b16 %v856, %v852
        %v893 = vpack.c.b16 %v857, %v853
        %v894 = vpack.c.b16 %v858, %v854
        %v895 = vpack.c.b16 %v863, %v859
        %v896 = vpack.c.b16 %v864, %v860
        %v897 = vpack.c.b16 %v865, %v861
        %v898 = vpack.c.b16 %v866, %v862
        %931 = vmatpush.bf16.msra.mxu0 %v895
        %932 = vmatpush.bf16.msra.mxu0 %v891
        %933 = vmatpush.bf16.msra.mxu0 %v887
        %934 = vmatpush.bf16.msra.mxu0 %v883
        %935 = vmatpush.bf16.msra.mxu0 %v879
        %936 = vmatpush.bf16.msra.mxu0 %v875
        %937 = vmatpush.bf16.msra.mxu0 %v871
        %938 = vmatpush.bf16.msra.mxu0 %v867
        %939 = vmatmul.bf16.gmra.mxu0 %v770
        %v940 = vpop.f32.mrf.mxu0
        %v941 = vadd.f32 0.0, %v940
        %v942 = vpop.f32.mrf.mxu0
        %943 = vdwg.mxu0
        %944 = vmatpush.bf16.msra.mxu0 %v896
        %945 = vmatpush.bf16.msra.mxu0 %v892
        %946 = vmatpush.bf16.msra.mxu0 %v888
        %947 = vmatpush.bf16.msra.mxu0 %v884
        %948 = vmatpush.bf16.msra.mxu0 %v880
        %949 = vmatpush.bf16.msra.mxu0 %v876
        %950 = vmatpush.bf16.msra.mxu0 %v872
        %951 = vmatpush.bf16.msra.mxu0 %v868
        %952 = vmatmul.bf16.gmra.mxu0 %v770
        %v953 = vpop.f32.mrf.mxu0
        %v954 = vadd.f32 0.0, %v953
        %v955 = vpop.f32.mrf.mxu0
        %956 = vdwg.mxu0
        %957 = vmatpush.bf16.msra.mxu0 %v897
        %958 = vmatpush.bf16.msra.mxu0 %v893
        %959 = vmatpush.bf16.msra.mxu0 %v889
        %960 = vmatpush.bf16.msra.mxu0 %v885
        %961 = vmatpush.bf16.msra.mxu0 %v881
        %962 = vmatpush.bf16.msra.mxu0 %v877
        %963 = vmatpush.bf16.msra.mxu0 %v873
        %964 = vmatpush.bf16.msra.mxu0 %v869
        %965 = vmatmul.bf16.gmra.mxu0 %v770
        %v966 = vpop.f32.mrf.mxu0
        %v967 = vadd.f32 0.0, %v966
        %v968 = vpop.f32.mrf.mxu0
        %969 = vdwg.mxu0
        %970 = vmatpush.bf16.msra.mxu0 %v898
        %971 = vmatpush.bf16.msra.mxu0 %v894
        %972 = vmatpush.bf16.msra.mxu0 %v890
        %973 = vmatpush.bf16.msra.mxu0 %v886
        %974 = vmatpush.bf16.msra.mxu0 %v882
        %975 = vmatpush.bf16.msra.mxu0 %v878
        %976 = vmatpush.bf16.msra.mxu0 %v874
        %977 = vmatpush.bf16.msra.mxu0 %v870
        %978 = vmatmul.bf16.gmra.mxu0 %v770
        %v979 = vpop.f32.mrf.mxu0
        %v980 = vadd.f32 0.0, %v979
        %v981 = vpop.f32.mrf.mxu0
        %982 = vdwg.mxu0
        %v983 = vadd.f32 %v766, %v941
        %v984 = vadd.f32 %v767, %v954
        %v985 = vadd.f32 %v768, %v967
        %v986 = vadd.f32 %v769, %v980
        %v987 = vxor.u32 %v983, 2147483648
        %v988 = vmul.f32 %v987, 1.442695
        %v989 = vpow.pop %v988
        %v990 = vadd.f32 %v989, 1.0
        %v991 = vrcp.pop %v990
        %v992 = vmul.f32 %v990, %v991
        %v993 = vsub.f32 1.0, %v992
        %v994 = vmul.f32 %v991, %v993
        %v995 = vadd.f32 %v991, %v994
        %vm996 = vweird.f32 %v990
        %vm997 = vweird.f32 %v991
        %vm998 = vmor %vm996, %vm997
        %v999 = vsel %vm998, %v991, %v995
        %v1000 = vand.u32 2147483647, %v990
        %vm1001 = vcmp.eq.f32.partialorder %v1000, 8.507059e+37
        %v1002 = vand.u32 %v990, 2147483648
        %v1003 = vor.u32 1.1754944e-38, %v1002
        %v1004 = vsel %vm1001, %v1003, %v999
        %v1005 = vmul.f32 1.0, %v1004
        %v1006 = vxor.u32 %v984, 2147483648
        %v1007 = vmul.f32 %v1006, 1.442695
        %v1008 = vpow.pop %v1007
        %v1009 = vadd.f32 %v1008, 1.0
        %v1010 = vrcp.pop %v1009
        %v1011 = vmul.f32 %v1009, %v1010
        %v1012 = vsub.f32 1.0, %v1011
        %v1013 = vmul.f32 %v1010, %v1012
        %v1014 = vadd.f32 %v1010, %v1013
        %vm1015 = vweird.f32 %v1009
        %vm1016 = vweird.f32 %v1010
        %vm1017 = vmor %vm1015, %vm1016
        %v1018 = vsel %vm1017, %v1010, %v1014
        %v1019 = vand.u32 2147483647, %v1009
        %vm1020 = vcmp.eq.f32.partialorder %v1019, 8.507059e+37
        %v1021 = vand.u32 %v1009, 2147483648
        %v1022 = vor.u32 1.1754944e-38, %v1021
        %v1023 = vsel %vm1020, %v1022, %v1018
        %v1024 = vmul.f32 1.0, %v1023
        %v1025 = vtanh.pop %v985
        %v1026 = vxor.u32 %v986, 2147483648
        %v1027 = vmul.f32 %v1026, 1.442695
        %v1028 = vpow.pop %v1027
        %v1029 = vadd.f32 %v1028, 1.0
        %v1030 = vrcp.pop %v1029
        %v1031 = vmul.f32 %v1029, %v1030
        %v1032 = vsub.f32 1.0, %v1031
        %v1033 = vmul.f32 %v1030, %v1032
        %v1034 = vadd.f32 %v1030, %v1033
        %vm1035 = vweird.f32 %v1029
        %vm1036 = vweird.f32 %v1030
        %vm1037 = vmor %vm1035, %vm1036
        %v1038 = vsel %vm1037, %v1030, %v1034
        %v1039 = vand.u32 2147483647, %v1029
        %vm1040 = vcmp.eq.f32.partialorder %v1039, 8.507059e+37
        %v1041 = vand.u32 %v1029, 2147483648
        %v1042 = vor.u32 1.1754944e-38, %v1041
        %v1043 = vsel %vm1040, %v1042, %v1038
        %v1044 = vmul.f32 1.0, %v1043
        %v1045 = vmul.f32 %v1024, %v761
        %v1046 = vmul.f32 %v1005, %v1025
        %v1047 = vadd.f32 %v1045, %v1046
        %v1048 = vtanh.pop %v1047
        %v1049 = vmul.f32 %v1044, %v1048
        %s1050 = smul.u32 %s762, 8
        %s1051 = scalar_lea.vmem %s327, %s1050 [#allocation13]
        %1052 = vst [vmem:[%s1051] sm:$0xff] %v1049
        %s1053 = ssub.s32 1, %s27
        %s1054 = smul.u32 %s27, 6
        %s1055 = sadd.s32 %s1053, %s1054
        %s1056 = smul.u32 %s1055, 4
        %s1057 = smul.addr %s1056, 8
        %s1058 = scalar_lea.vmem [#allocation4], %s1057
        %v1059 = vld [vmem:[%s1058] sm:$0xff]
        %v1060 = vld [vmem:[%s1058 + $0x8] sm:$0xff]
        %v1061 = vld [vmem:[%s1058 + $0x10] sm:$0xff]
        %v1062 = vld [vmem:[%s1058 + $0x18] sm:$0xff]
        %v1063 = vpack.c.bf16 %v1049, %v1049
        %1064 = vmatpush.bf16.msra.mxu0 %v895
        %1065 = vmatpush.bf16.msra.mxu0 %v891
        %1066 = vmatpush.bf16.msra.mxu0 %v887
        %1067 = vmatpush.bf16.msra.mxu0 %v883
        %1068 = vmatpush.bf16.msra.mxu0 %v879
        %1069 = vmatpush.bf16.msra.mxu0 %v875
        %1070 = vmatpush.bf16.msra.mxu0 %v871
        %1071 = vmatpush.bf16.msra.mxu0 %v867
        %1072 = vmatmul.bf16.gmra.mxu0 %v1063
        %v1073 = vpop.f32.mrf.mxu0
        %v1074 = vadd.f32 0.0, %v1073
        %v1075 = vpop.f32.mrf.mxu0
        %1076 = vdwg.mxu0
        %1077 = vmatpush.bf16.msra.mxu0 %v896
        %1078 = vmatpush.bf16.msra.mxu0 %v892
        %1079 = vmatpush.bf16.msra.mxu0 %v888
        %1080 = vmatpush.bf16.msra.mxu0 %v884
        %1081 = vmatpush.bf16.msra.mxu0 %v880
        %1082 = vmatpush.bf16.msra.mxu0 %v876
        %1083 = vmatpush.bf16.msra.mxu0 %v872
        %1084 = vmatpush.bf16.msra.mxu0 %v868
        %1085 = vmatmul.bf16.gmra.mxu0 %v1063
        %v1086 = vpop.f32.mrf.mxu0
        %v1087 = vadd.f32 0.0, %v1086
        %v1088 = vpop.f32.mrf.mxu0
        %1089 = vdwg.mxu0
        %1090 = vmatpush.bf16.msra.mxu0 %v897
        %1091 = vmatpush.bf16.msra.mxu0 %v893
        %1092 = vmatpush.bf16.msra.mxu0 %v889
        %1093 = vmatpush.bf16.msra.mxu0 %v885
        %1094 = vmatpush.bf16.msra.mxu0 %v881
        %1095 = vmatpush.bf16.msra.mxu0 %v877
        %1096 = vmatpush.bf16.msra.mxu0 %v873
        %1097 = vmatpush.bf16.msra.mxu0 %v869
        %1098 = vmatmul.bf16.gmra.mxu0 %v1063
        %v1099 = vpop.f32.mrf.mxu0
        %v1100 = vadd.f32 0.0, %v1099
        %v1101 = vpop.f32.mrf.mxu0
        %1102 = vdwg.mxu0
        %1103 = vmatpush.bf16.msra.mxu0 %v898
        %1104 = vmatpush.bf16.msra.mxu0 %v894
        %1105 = vmatpush.bf16.msra.mxu0 %v890
        %1106 = vmatpush.bf16.msra.mxu0 %v886
        %1107 = vmatpush.bf16.msra.mxu0 %v882
        %1108 = vmatpush.bf16.msra.mxu0 %v878
        %1109 = vmatpush.bf16.msra.mxu0 %v874
        %1110 = vmatpush.bf16.msra.mxu0 %v870
        %1111 = vmatmul.bf16.gmra.mxu0 %v1063
        %v1112 = vpop.f32.mrf.mxu0
        %v1113 = vadd.f32 0.0, %v1112
        %v1114 = vpop.f32.mrf.mxu0
        %1115 = vdwg.mxu0
        %v1116 = vadd.f32 %v1059, %v1074
        %v1117 = vadd.f32 %v1060, %v1087
        %v1118 = vadd.f32 %v1061, %v1100
        %v1119 = vadd.f32 %v1062, %v1113
        %v1120 = vxor.u32 %v1116, 2147483648
        %v1121 = vmul.f32 %v1120, 1.442695
        %v1122 = vpow.pop %v1121
        %v1123 = vadd.f32 %v1122, 1.0
        %v1124 = vrcp.pop %v1123
        %v1125 = vmul.f32 %v1123, %v1124
        %v1126 = vsub.f32 1.0, %v1125
        %v1127 = vmul.f32 %v1124, %v1126
        %v1128 = vadd.f32 %v1124, %v1127
        %vm1129 = vweird.f32 %v1123
        %vm1130 = vweird.f32 %v1124
        %vm1131 = vmor %vm1129, %vm1130
        %v1132 = vsel %vm1131, %v1124, %v1128
        %v1133 = vand.u32 2147483647, %v1123
        %vm1134 = vcmp.eq.f32.partialorder %v1133, 8.507059e+37
        %v1135 = vand.u32 %v1123, 2147483648
        %v1136 = vor.u32 1.1754944e-38, %v1135
        %v1137 = vsel %vm1134, %v1136, %v1132
        %v1138 = vmul.f32 1.0, %v1137
        %v1139 = vxor.u32 %v1117, 2147483648
        %v1140 = vmul.f32 %v1139, 1.442695
        %v1141 = vpow.pop %v1140
        %v1142 = vadd.f32 %v1141, 1.0
        %v1143 = vrcp.pop %v1142
        %v1144 = vmul.f32 %v1142, %v1143
        %v1145 = vsub.f32 1.0, %v1144
        %v1146 = vmul.f32 %v1143, %v1145
        %v1147 = vadd.f32 %v1143, %v1146
        %vm1148 = vweird.f32 %v1142
        %vm1149 = vweird.f32 %v1143
        %vm1150 = vmor %vm1148, %vm1149
        %v1151 = vsel %vm1150, %v1143, %v1147
        %v1152 = vand.u32 2147483647, %v1142
        %vm1153 = vcmp.eq.f32.partialorder %v1152, 8.507059e+37
        %v1154 = vand.u32 %v1142, 2147483648
        %v1155 = vor.u32 1.1754944e-38, %v1154
        %v1156 = vsel %vm1153, %v1155, %v1151
        %v1157 = vmul.f32 1.0, %v1156
        %v1158 = vtanh.pop %v1118
        %v1159 = vxor.u32 %v1119, 2147483648
        %v1160 = vmul.f32 %v1159, 1.442695
        %v1161 = vpow.pop %v1160
        %v1162 = vadd.f32 %v1161, 1.0
        %v1163 = vrcp.pop %v1162
        %v1164 = vmul.f32 %v1162, %v1163
        %v1165 = vsub.f32 1.0, %v1164
        %v1166 = vmul.f32 %v1163, %v1165
        %v1167 = vadd.f32 %v1163, %v1166
        %vm1168 = vweird.f32 %v1162
        %vm1169 = vweird.f32 %v1163
        %vm1170 = vmor %vm1168, %vm1169
        %v1171 = vsel %vm1170, %v1163, %v1167
        %v1172 = vand.u32 2147483647, %v1162
        %vm1173 = vcmp.eq.f32.partialorder %v1172, 8.507059e+37
        %v1174 = vand.u32 %v1162, 2147483648
        %v1175 = vor.u32 1.1754944e-38, %v1174
        %v1176 = vsel %vm1173, %v1175, %v1171
        %v1177 = vmul.f32 1.0, %v1176
        %v1178 = vmul.f32 %v1157, %v1047
        %v1179 = vmul.f32 %v1138, %v1158
        %v1180 = vadd.f32 %v1178, %v1179
        %v1181 = vtanh.pop %v1180
        %v1182 = vmul.f32 %v1177, %v1181
        %s1183 = smul.u32 %s1055, 8
        %s1184 = scalar_lea.vmem %s327, %s1183 [#allocation13]
        %1185 = vst [vmem:[%s1184] sm:$0xff] %v1182
        %s1186 = smul.u32 %s1053, 2
        %s1187 = smul.u32 %s27, 5
        %s1188 = sadd.s32 %s1186, %s1187
        %s1189 = smul.u32 %s1188, 4
        %s1190 = smul.addr %s1189, 8
        %s1191 = scalar_lea.vmem [#allocation4], %s1190
        %v1192 = vld [vmem:[%s1191] sm:$0xff]
        %v1193 = vld [vmem:[%s1191 + $0x8] sm:$0xff]
        %v1194 = vld [vmem:[%s1191 + $0x10] sm:$0xff]
        %v1195 = vld [vmem:[%s1191 + $0x18] sm:$0xff]
        %v1196 = vpack.c.bf16 %v1182, %v1182
        %1197 = vmatpush.bf16.msra.mxu0 %v895
        %1198 = vmatpush.bf16.msra.mxu0 %v891
        %1199 = vmatpush.bf16.msra.mxu0 %v887
        %1200 = vmatpush.bf16.msra.mxu0 %v883
        %1201 = vmatpush.bf16.msra.mxu0 %v879
        %1202 = vmatpush.bf16.msra.mxu0 %v875
        %1203 = vmatpush.bf16.msra.mxu0 %v871
        %1204 = vmatpush.bf16.msra.mxu0 %v867
        %1205 = vmatmul.bf16.gmra.mxu0 %v1196
        %v1206 = vpop.f32.mrf.mxu0
        %v1207 = vadd.f32 0.0, %v1206
        %v1208 = vpop.f32.mrf.mxu0
        %1209 = vdwg.mxu0
        %1210 = vmatpush.bf16.msra.mxu0 %v896
        %1211 = vmatpush.bf16.msra.mxu0 %v892
        %1212 = vmatpush.bf16.msra.mxu0 %v888
        %1213 = vmatpush.bf16.msra.mxu0 %v884
        %1214 = vmatpush.bf16.msra.mxu0 %v880
        %1215 = vmatpush.bf16.msra.mxu0 %v876
        %1216 = vmatpush.bf16.msra.mxu0 %v872
        %1217 = vmatpush.bf16.msra.mxu0 %v868
        %1218 = vmatmul.bf16.gmra.mxu0 %v1196
        %v1219 = vpop.f32.mrf.mxu0
        %v1220 = vadd.f32 0.0, %v1219
        %v1221 = vpop.f32.mrf.mxu0
        %1222 = vdwg.mxu0
        %1223 = vmatpush.bf16.msra.mxu0 %v897
        %1224 = vmatpush.bf16.msra.mxu0 %v893
        %1225 = vmatpush.bf16.msra.mxu0 %v889
        %1226 = vmatpush.bf16.msra.mxu0 %v885
        %1227 = vmatpush.bf16.msra.mxu0 %v881
        %1228 = vmatpush.bf16.msra.mxu0 %v877
        %1229 = vmatpush.bf16.msra.mxu0 %v873
        %1230 = vmatpush.bf16.msra.mxu0 %v869
        %1231 = vmatmul.bf16.gmra.mxu0 %v1196
        %v1232 = vpop.f32.mrf.mxu0
        %v1233 = vadd.f32 0.0, %v1232
        %v1234 = vpop.f32.mrf.mxu0
        %1235 = vdwg.mxu0
        %1236 = vmatpush.bf16.msra.mxu0 %v898
        %1237 = vmatpush.bf16.msra.mxu0 %v894
        %1238 = vmatpush.bf16.msra.mxu0 %v890
        %1239 = vmatpush.bf16.msra.mxu0 %v886
        %1240 = vmatpush.bf16.msra.mxu0 %v882
        %1241 = vmatpush.bf16.msra.mxu0 %v878
        %1242 = vmatpush.bf16.msra.mxu0 %v874
        %1243 = vmatpush.bf16.msra.mxu0 %v870
        %1244 = vmatmul.bf16.gmra.mxu0 %v1196
        %v1245 = vpop.f32.mrf.mxu0
        %v1246 = vadd.f32 0.0, %v1245
        %v1247 = vpop.f32.mrf.mxu0
        %1248 = vdwg.mxu0
        %v1249 = vadd.f32 %v1192, %v1207
        %v1250 = vadd.f32 %v1193, %v1220
        %v1251 = vadd.f32 %v1194, %v1233
        %v1252 = vadd.f32 %v1195, %v1246
        %v1253 = vxor.u32 %v1249, 2147483648
        %v1254 = vmul.f32 %v1253, 1.442695
        %v1255 = vpow.pop %v1254
        %v1256 = vadd.f32 %v1255, 1.0
        %v1257 = vrcp.pop %v1256
        %v1258 = vmul.f32 %v1256, %v1257
        %v1259 = vsub.f32 1.0, %v1258
        %v1260 = vmul.f32 %v1257, %v1259
        %v1261 = vadd.f32 %v1257, %v1260
        %vm1262 = vweird.f32 %v1256
        %vm1263 = vweird.f32 %v1257
        %vm1264 = vmor %vm1262, %vm1263
        %v1265 = vsel %vm1264, %v1257, %v1261
        %v1266 = vand.u32 2147483647, %v1256
        %vm1267 = vcmp.eq.f32.partialorder %v1266, 8.507059e+37
        %v1268 = vand.u32 %v1256, 2147483648
        %v1269 = vor.u32 1.1754944e-38, %v1268
        %v1270 = vsel %vm1267, %v1269, %v1265
        %v1271 = vmul.f32 1.0, %v1270
        %v1272 = vxor.u32 %v1250, 2147483648
        %v1273 = vmul.f32 %v1272, 1.442695
        %v1274 = vpow.pop %v1273
        %v1275 = vadd.f32 %v1274, 1.0
        %v1276 = vrcp.pop %v1275
        %v1277 = vmul.f32 %v1275, %v1276
        %v1278 = vsub.f32 1.0, %v1277
        %v1279 = vmul.f32 %v1276, %v1278
        %v1280 = vadd.f32 %v1276, %v1279
        %vm1281 = vweird.f32 %v1275
        %vm1282 = vweird.f32 %v1276
        %vm1283 = vmor %vm1281, %vm1282
        %v1284 = vsel %vm1283, %v1276, %v1280
        %v1285 = vand.u32 2147483647, %v1275
        %vm1286 = vcmp.eq.f32.partialorder %v1285, 8.507059e+37
        %v1287 = vand.u32 %v1275, 2147483648
        %v1288 = vor.u32 1.1754944e-38, %v1287
        %v1289 = vsel %vm1286, %v1288, %v1284
        %v1290 = vmul.f32 1.0, %v1289
        %v1291 = vtanh.pop %v1251
        %v1292 = vxor.u32 %v1252, 2147483648
        %v1293 = vmul.f32 %v1292, 1.442695
        %v1294 = vpow.pop %v1293
        %v1295 = vadd.f32 %v1294, 1.0
        %v1296 = vrcp.pop %v1295
        %v1297 = vmul.f32 %v1295, %v1296
        %v1298 = vsub.f32 1.0, %v1297
        %v1299 = vmul.f32 %v1296, %v1298
        %v1300 = vadd.f32 %v1296, %v1299
        %vm1301 = vweird.f32 %v1295
        %vm1302 = vweird.f32 %v1296
        %vm1303 = vmor %vm1301, %vm1302
        %v1304 = vsel %vm1303, %v1296, %v1300
        %v1305 = vand.u32 2147483647, %v1295
        %vm1306 = vcmp.eq.f32.partialorder %v1305, 8.507059e+37
        %v1307 = vand.u32 %v1295, 2147483648
        %v1308 = vor.u32 1.1754944e-38, %v1307
        %v1309 = vsel %vm1306, %v1308, %v1304
        %v1310 = vmul.f32 1.0, %v1309
        %v1311 = vmul.f32 %v1290, %v1180
        %v1312 = vmul.f32 %v1271, %v1291
        %v1313 = vadd.f32 %v1311, %v1312
        %v1314 = vtanh.pop %v1313
        %v1315 = vmul.f32 %v1310, %v1314
        %s1316 = smul.u32 %s1188, 8
        %s1317 = scalar_lea.vmem %s327, %s1316 [#allocation13]
        %1318 = vst [vmem:[%s1317] sm:$0xff] %v1315
        %s1319 = smul.u32 %s1053, 3
        %s1320 = smul.u32 %s27, 4
        %s1321 = sadd.s32 %s1319, %s1320
        %s1322 = smul.u32 %s1321, 4
        %s1323 = smul.addr %s1322, 8
        %s1324 = scalar_lea.vmem [#allocation4], %s1323
        %v1325 = vld [vmem:[%s1324] sm:$0xff]
        %v1326 = vld [vmem:[%s1324 + $0x8] sm:$0xff]
        %v1327 = vld [vmem:[%s1324 + $0x10] sm:$0xff]
        %v1328 = vld [vmem:[%s1324 + $0x18] sm:$0xff]
        %v1329 = vpack.c.bf16 %v1315, %v1315
        %1330 = vmatpush.bf16.msra.mxu0 %v895
        %1331 = vmatpush.bf16.msra.mxu0 %v891
        %1332 = vmatpush.bf16.msra.mxu0 %v887
        %1333 = vmatpush.bf16.msra.mxu0 %v883
        %1334 = vmatpush.bf16.msra.mxu0 %v879
        %1335 = vmatpush.bf16.msra.mxu0 %v875
        %1336 = vmatpush.bf16.msra.mxu0 %v871
        %1337 = vmatpush.bf16.msra.mxu0 %v867
        %1338 = vmatmul.bf16.gmra.mxu0 %v1329
        %v1339 = vpop.f32.mrf.mxu0
        %v1340 = vadd.f32 0.0, %v1339
        %v1341 = vpop.f32.mrf.mxu0
        %1342 = vdwg.mxu0
        %1343 = vmatpush.bf16.msra.mxu0 %v896
        %1344 = vmatpush.bf16.msra.mxu0 %v892
        %1345 = vmatpush.bf16.msra.mxu0 %v888
        %1346 = vmatpush.bf16.msra.mxu0 %v884
        %1347 = vmatpush.bf16.msra.mxu0 %v880
        %1348 = vmatpush.bf16.msra.mxu0 %v876
        %1349 = vmatpush.bf16.msra.mxu0 %v872
        %1350 = vmatpush.bf16.msra.mxu0 %v868
        %1351 = vmatmul.bf16.gmra.mxu0 %v1329
        %v1352 = vpop.f32.mrf.mxu0
        %v1353 = vadd.f32 0.0, %v1352
        %v1354 = vpop.f32.mrf.mxu0
        %1355 = vdwg.mxu0
        %1356 = vmatpush.bf16.msra.mxu0 %v897
        %1357 = vmatpush.bf16.msra.mxu0 %v893
        %1358 = vmatpush.bf16.msra.mxu0 %v889
        %1359 = vmatpush.bf16.msra.mxu0 %v885
        %1360 = vmatpush.bf16.msra.mxu0 %v881
        %1361 = vmatpush.bf16.msra.mxu0 %v877
        %1362 = vmatpush.bf16.msra.mxu0 %v873
        %1363 = vmatpush.bf16.msra.mxu0 %v869
        %1364 = vmatmul.bf16.gmra.mxu0 %v1329
        %v1365 = vpop.f32.mrf.mxu0
        %v1366 = vadd.f32 0.0, %v1365
        %v1367 = vpop.f32.mrf.mxu0
        %1368 = vdwg.mxu0
        %1369 = vmatpush.bf16.msra.mxu0 %v898
        %1370 = vmatpush.bf16.msra.mxu0 %v894
        %1371 = vmatpush.bf16.msra.mxu0 %v890
        %1372 = vmatpush.bf16.msra.mxu0 %v886
        %1373 = vmatpush.bf16.msra.mxu0 %v882
        %1374 = vmatpush.bf16.msra.mxu0 %v878
        %1375 = vmatpush.bf16.msra.mxu0 %v874
        %1376 = vmatpush.bf16.msra.mxu0 %v870
        %1377 = vmatmul.bf16.gmra.mxu0 %v1329
        %v1378 = vpop.f32.mrf.mxu0
        %v1379 = vadd.f32 0.0, %v1378
        %v1380 = vpop.f32.mrf.mxu0
        %1381 = vdwg.mxu0
        %v1382 = vadd.f32 %v1325, %v1340
        %v1383 = vadd.f32 %v1326, %v1353
        %v1384 = vadd.f32 %v1327, %v1366
        %v1385 = vadd.f32 %v1328, %v1379
        %v1386 = vxor.u32 %v1382, 2147483648
        %v1387 = vmul.f32 %v1386, 1.442695
        %v1388 = vpow.pop %v1387
        %v1389 = vadd.f32 %v1388, 1.0
        %v1390 = vrcp.pop %v1389
        %v1391 = vmul.f32 %v1389, %v1390
        %v1392 = vsub.f32 1.0, %v1391
        %v1393 = vmul.f32 %v1390, %v1392
        %v1394 = vadd.f32 %v1390, %v1393
        %vm1395 = vweird.f32 %v1389
        %vm1396 = vweird.f32 %v1390
        %vm1397 = vmor %vm1395, %vm1396
        %v1398 = vsel %vm1397, %v1390, %v1394
        %v1399 = vand.u32 2147483647, %v1389
        %vm1400 = vcmp.eq.f32.partialorder %v1399, 8.507059e+37
        %v1401 = vand.u32 %v1389, 2147483648
        %v1402 = vor.u32 1.1754944e-38, %v1401
        %v1403 = vsel %vm1400, %v1402, %v1398
        %v1404 = vmul.f32 1.0, %v1403
        %v1405 = vxor.u32 %v1383, 2147483648
        %v1406 = vmul.f32 %v1405, 1.442695
        %v1407 = vpow.pop %v1406
        %v1408 = vadd.f32 %v1407, 1.0
        %v1409 = vrcp.pop %v1408
        %v1410 = vmul.f32 %v1408, %v1409
        %v1411 = vsub.f32 1.0, %v1410
        %v1412 = vmul.f32 %v1409, %v1411
        %v1413 = vadd.f32 %v1409, %v1412
        %vm1414 = vweird.f32 %v1408
        %vm1415 = vweird.f32 %v1409
        %vm1416 = vmor %vm1414, %vm1415
        %v1417 = vsel %vm1416, %v1409, %v1413
        %v1418 = vand.u32 2147483647, %v1408
        %vm1419 = vcmp.eq.f32.partialorder %v1418, 8.507059e+37
        %v1420 = vand.u32 %v1408, 2147483648
        %v1421 = vor.u32 1.1754944e-38, %v1420
        %v1422 = vsel %vm1419, %v1421, %v1417
        %v1423 = vmul.f32 1.0, %v1422
        %v1424 = vtanh.pop %v1384
        %v1425 = vxor.u32 %v1385, 2147483648
        %v1426 = vmul.f32 %v1425, 1.442695
        %v1427 = vpow.pop %v1426
        %v1428 = vadd.f32 %v1427, 1.0
        %v1429 = vrcp.pop %v1428
        %v1430 = vmul.f32 %v1428, %v1429
        %v1431 = vsub.f32 1.0, %v1430
        %v1432 = vmul.f32 %v1429, %v1431
        %v1433 = vadd.f32 %v1429, %v1432
        %vm1434 = vweird.f32 %v1428
        %vm1435 = vweird.f32 %v1429
        %vm1436 = vmor %vm1434, %vm1435
        %v1437 = vsel %vm1436, %v1429, %v1433
        %v1438 = vand.u32 2147483647, %v1428
        %vm1439 = vcmp.eq.f32.partialorder %v1438, 8.507059e+37
        %v1440 = vand.u32 %v1428, 2147483648
        %v1441 = vor.u32 1.1754944e-38, %v1440
        %v1442 = vsel %vm1439, %v1441, %v1437
        %v1443 = vmul.f32 1.0, %v1442
        %v1444 = vmul.f32 %v1423, %v1313
        %v1445 = vmul.f32 %v1404, %v1424
        %v1446 = vadd.f32 %v1444, %v1445
        %v1447 = vtanh.pop %v1446
        %v1448 = vmul.f32 %v1443, %v1447
        %s1449 = smul.u32 %s1321, 8
        %s1450 = scalar_lea.vmem %s327, %s1449 [#allocation13]
        %1451 = vst [vmem:[%s1450] sm:$0xff] %v1448
        %s1452 = smul.u32 %s1053, 4
        %s1453 = smul.u32 %s27, 3
        %s1454 = sadd.s32 %s1452, %s1453
        %s1455 = smul.u32 %s1454, 4
        %s1456 = smul.addr %s1455, 8
        %s1457 = scalar_lea.vmem [#allocation4], %s1456
        %v1458 = vld [vmem:[%s1457] sm:$0xff]
        %v1459 = vld [vmem:[%s1457 + $0x8] sm:$0xff]
        %v1460 = vld [vmem:[%s1457 + $0x10] sm:$0xff]
        %v1461 = vld [vmem:[%s1457 + $0x18] sm:$0xff]
        %v1462 = vpack.c.bf16 %v1448, %v1448
        %1463 = vmatpush.bf16.msra.mxu0 %v895
        %1464 = vmatpush.bf16.msra.mxu0 %v891
        %1465 = vmatpush.bf16.msra.mxu0 %v887
        %1466 = vmatpush.bf16.msra.mxu0 %v883
        %1467 = vmatpush.bf16.msra.mxu0 %v879
        %1468 = vmatpush.bf16.msra.mxu0 %v875
        %1469 = vmatpush.bf16.msra.mxu0 %v871
        %1470 = vmatpush.bf16.msra.mxu0 %v867
        %1471 = vmatmul.bf16.gmra.mxu0 %v1462
        %v1472 = vpop.f32.mrf.mxu0
        %v1473 = vadd.f32 0.0, %v1472
        %v1474 = vpop.f32.mrf.mxu0
        %1475 = vdwg.mxu0
        %1476 = vmatpush.bf16.msra.mxu0 %v896
        %1477 = vmatpush.bf16.msra.mxu0 %v892
        %1478 = vmatpush.bf16.msra.mxu0 %v888
        %1479 = vmatpush.bf16.msra.mxu0 %v884
        %1480 = vmatpush.bf16.msra.mxu0 %v880
        %1481 = vmatpush.bf16.msra.mxu0 %v876
        %1482 = vmatpush.bf16.msra.mxu0 %v872
        %1483 = vmatpush.bf16.msra.mxu0 %v868
        %1484 = vmatmul.bf16.gmra.mxu0 %v1462
        %v1485 = vpop.f32.mrf.mxu0
        %v1486 = vadd.f32 0.0, %v1485
        %v1487 = vpop.f32.mrf.mxu0
        %1488 = vdwg.mxu0
        %1489 = vmatpush.bf16.msra.mxu0 %v897
        %1490 = vmatpush.bf16.msra.mxu0 %v893
        %1491 = vmatpush.bf16.msra.mxu0 %v889
        %1492 = vmatpush.bf16.msra.mxu0 %v885
        %1493 = vmatpush.bf16.msra.mxu0 %v881
        %1494 = vmatpush.bf16.msra.mxu0 %v877
        %1495 = vmatpush.bf16.msra.mxu0 %v873
        %1496 = vmatpush.bf16.msra.mxu0 %v869
        %1497 = vmatmul.bf16.gmra.mxu0 %v1462
        %v1498 = vpop.f32.mrf.mxu0
        %v1499 = vadd.f32 0.0, %v1498
        %v1500 = vpop.f32.mrf.mxu0
        %1501 = vdwg.mxu0
        %1502 = vmatpush.bf16.msra.mxu0 %v898
        %1503 = vmatpush.bf16.msra.mxu0 %v894
        %1504 = vmatpush.bf16.msra.mxu0 %v890
        %1505 = vmatpush.bf16.msra.mxu0 %v886
        %1506 = vmatpush.bf16.msra.mxu0 %v882
        %1507 = vmatpush.bf16.msra.mxu0 %v878
        %1508 = vmatpush.bf16.msra.mxu0 %v874
        %1509 = vmatpush.bf16.msra.mxu0 %v870
        %1510 = vmatmul.bf16.gmra.mxu0 %v1462
        %v1511 = vpop.f32.mrf.mxu0
        %v1512 = vadd.f32 0.0, %v1511
        %v1513 = vpop.f32.mrf.mxu0
        %1514 = vdwg.mxu0
        %v1515 = vadd.f32 %v1458, %v1473
        %v1516 = vadd.f32 %v1459, %v1486
        %v1517 = vadd.f32 %v1460, %v1499
        %v1518 = vadd.f32 %v1461, %v1512
        %v1519 = vxor.u32 %v1515, 2147483648
        %v1520 = vmul.f32 %v1519, 1.442695
        %v1521 = vpow.pop %v1520
        %v1522 = vadd.f32 %v1521, 1.0
        %v1523 = vrcp.pop %v1522
        %v1524 = vmul.f32 %v1522, %v1523
        %v1525 = vsub.f32 1.0, %v1524
        %v1526 = vmul.f32 %v1523, %v1525
        %v1527 = vadd.f32 %v1523, %v1526
        %vm1528 = vweird.f32 %v1522
        %vm1529 = vweird.f32 %v1523
        %vm1530 = vmor %vm1528, %vm1529
        %v1531 = vsel %vm1530, %v1523, %v1527
        %v1532 = vand.u32 2147483647, %v1522
        %vm1533 = vcmp.eq.f32.partialorder %v1532, 8.507059e+37
        %v1534 = vand.u32 %v1522, 2147483648
        %v1535 = vor.u32 1.1754944e-38, %v1534
        %v1536 = vsel %vm1533, %v1535, %v1531
        %v1537 = vmul.f32 1.0, %v1536
        %v1538 = vxor.u32 %v1516, 2147483648
        %v1539 = vmul.f32 %v1538, 1.442695
        %v1540 = vpow.pop %v1539
        %v1541 = vadd.f32 %v1540, 1.0
        %v1542 = vrcp.pop %v1541
        %v1543 = vmul.f32 %v1541, %v1542
        %v1544 = vsub.f32 1.0, %v1543
        %v1545 = vmul.f32 %v1542, %v1544
        %v1546 = vadd.f32 %v1542, %v1545
        %vm1547 = vweird.f32 %v1541
        %vm1548 = vweird.f32 %v1542
        %vm1549 = vmor %vm1547, %vm1548
        %v1550 = vsel %vm1549, %v1542, %v1546
        %v1551 = vand.u32 2147483647, %v1541
        %vm1552 = vcmp.eq.f32.partialorder %v1551, 8.507059e+37
        %v1553 = vand.u32 %v1541, 2147483648
        %v1554 = vor.u32 1.1754944e-38, %v1553
        %v1555 = vsel %vm1552, %v1554, %v1550
        %v1556 = vmul.f32 1.0, %v1555
        %v1557 = vtanh.pop %v1517
        %v1558 = vxor.u32 %v1518, 2147483648
        %v1559 = vmul.f32 %v1558, 1.442695
        %v1560 = vpow.pop %v1559
        %v1561 = vadd.f32 %v1560, 1.0
        %v1562 = vrcp.pop %v1561
        %v1563 = vmul.f32 %v1561, %v1562
        %v1564 = vsub.f32 1.0, %v1563
        %v1565 = vmul.f32 %v1562, %v1564
        %v1566 = vadd.f32 %v1562, %v1565
        %vm1567 = vweird.f32 %v1561
        %vm1568 = vweird.f32 %v1562
        %vm1569 = vmor %vm1567, %vm1568
        %v1570 = vsel %vm1569, %v1562, %v1566
        %v1571 = vand.u32 2147483647, %v1561
        %vm1572 = vcmp.eq.f32.partialorder %v1571, 8.507059e+37
        %v1573 = vand.u32 %v1561, 2147483648
        %v1574 = vor.u32 1.1754944e-38, %v1573
        %v1575 = vsel %vm1572, %v1574, %v1570
        %v1576 = vmul.f32 1.0, %v1575
        %v1577 = vmul.f32 %v1556, %v1446
        %v1578 = vmul.f32 %v1537, %v1557
        %v1579 = vadd.f32 %v1577, %v1578
        %v1580 = vtanh.pop %v1579
        %v1581 = vmul.f32 %v1576, %v1580
        %s1582 = smul.u32 %s1454, 8
        %s1583 = scalar_lea.vmem %s327, %s1582 [#allocation13]
        %1584 = vst [vmem:[%s1583] sm:$0xff] %v1581
        %s1585 = smul.u32 %s1053, 5
        %s1586 = smul.u32 %s27, 2
        %s1587 = sadd.s32 %s1585, %s1586
        %s1588 = smul.u32 %s1587, 4
        %s1589 = smul.addr %s1588, 8
        %s1590 = scalar_lea.vmem [#allocation4], %s1589
        %v1591 = vld [vmem:[%s1590] sm:$0xff]
        %v1592 = vld [vmem:[%s1590 + $0x8] sm:$0xff]
        %v1593 = vld [vmem:[%s1590 + $0x10] sm:$0xff]
        %v1594 = vld [vmem:[%s1590 + $0x18] sm:$0xff]
        %v1595 = vpack.c.bf16 %v1581, %v1581
        %1596 = vmatpush.bf16.msra.mxu0 %v895
        %1597 = vmatpush.bf16.msra.mxu0 %v891
        %1598 = vmatpush.bf16.msra.mxu0 %v887
        %1599 = vmatpush.bf16.msra.mxu0 %v883
        %1600 = vmatpush.bf16.msra.mxu0 %v879
        %1601 = vmatpush.bf16.msra.mxu0 %v875
        %1602 = vmatpush.bf16.msra.mxu0 %v871
        %1603 = vmatpush.bf16.msra.mxu0 %v867
        %1604 = vmatmul.bf16.gmra.mxu0 %v1595
        %v1605 = vpop.f32.mrf.mxu0
        %v1606 = vadd.f32 0.0, %v1605
        %v1607 = vpop.f32.mrf.mxu0
        %1608 = vdwg.mxu0
        %1609 = vmatpush.bf16.msra.mxu0 %v896
        %1610 = vmatpush.bf16.msra.mxu0 %v892
        %1611 = vmatpush.bf16.msra.mxu0 %v888
        %1612 = vmatpush.bf16.msra.mxu0 %v884
        %1613 = vmatpush.bf16.msra.mxu0 %v880
        %1614 = vmatpush.bf16.msra.mxu0 %v876
        %1615 = vmatpush.bf16.msra.mxu0 %v872
        %1616 = vmatpush.bf16.msra.mxu0 %v868
        %1617 = vmatmul.bf16.gmra.mxu0 %v1595
        %v1618 = vpop.f32.mrf.mxu0
        %v1619 = vadd.f32 0.0, %v1618
        %v1620 = vpop.f32.mrf.mxu0
        %1621 = vdwg.mxu0
        %1622 = vmatpush.bf16.msra.mxu0 %v897
        %1623 = vmatpush.bf16.msra.mxu0 %v893
        %1624 = vmatpush.bf16.msra.mxu0 %v889
        %1625 = vmatpush.bf16.msra.mxu0 %v885
        %1626 = vmatpush.bf16.msra.mxu0 %v881
        %1627 = vmatpush.bf16.msra.mxu0 %v877
        %1628 = vmatpush.bf16.msra.mxu0 %v873
        %1629 = vmatpush.bf16.msra.mxu0 %v869
        %1630 = vmatmul.bf16.gmra.mxu0 %v1595
        %v1631 = vpop.f32.mrf.mxu0
        %v1632 = vadd.f32 0.0, %v1631
        %v1633 = vpop.f32.mrf.mxu0
        %1634 = vdwg.mxu0
        %1635 = vmatpush.bf16.msra.mxu0 %v898
        %1636 = vmatpush.bf16.msra.mxu0 %v894
        %1637 = vmatpush.bf16.msra.mxu0 %v890
        %1638 = vmatpush.bf16.msra.mxu0 %v886
        %1639 = vmatpush.bf16.msra.mxu0 %v882
        %1640 = vmatpush.bf16.msra.mxu0 %v878
        %1641 = vmatpush.bf16.msra.mxu0 %v874
        %1642 = vmatpush.bf16.msra.mxu0 %v870
        %1643 = vmatmul.bf16.gmra.mxu0 %v1595
        %v1644 = vpop.f32.mrf.mxu0
        %v1645 = vadd.f32 0.0, %v1644
        %v1646 = vpop.f32.mrf.mxu0
        %1647 = vdwg.mxu0
        %v1648 = vadd.f32 %v1591, %v1606
        %v1649 = vadd.f32 %v1592, %v1619
        %v1650 = vadd.f32 %v1593, %v1632
        %v1651 = vadd.f32 %v1594, %v1645
        %v1652 = vxor.u32 %v1648, 2147483648
        %v1653 = vmul.f32 %v1652, 1.442695
        %v1654 = vpow.pop %v1653
        %v1655 = vadd.f32 %v1654, 1.0
        %v1656 = vrcp.pop %v1655
        %v1657 = vmul.f32 %v1655, %v1656
        %v1658 = vsub.f32 1.0, %v1657
        %v1659 = vmul.f32 %v1656, %v1658
        %v1660 = vadd.f32 %v1656, %v1659
        %vm1661 = vweird.f32 %v1655
        %vm1662 = vweird.f32 %v1656
        %vm1663 = vmor %vm1661, %vm1662
        %v1664 = vsel %vm1663, %v1656, %v1660
        %v1665 = vand.u32 2147483647, %v1655
        %vm1666 = vcmp.eq.f32.partialorder %v1665, 8.507059e+37
        %v1667 = vand.u32 %v1655, 2147483648
        %v1668 = vor.u32 1.1754944e-38, %v1667
        %v1669 = vsel %vm1666, %v1668, %v1664
        %v1670 = vmul.f32 1.0, %v1669
        %v1671 = vxor.u32 %v1649, 2147483648
        %v1672 = vmul.f32 %v1671, 1.442695
        %v1673 = vpow.pop %v1672
        %v1674 = vadd.f32 %v1673, 1.0
        %v1675 = vrcp.pop %v1674
        %v1676 = vmul.f32 %v1674, %v1675
        %v1677 = vsub.f32 1.0, %v1676
        %v1678 = vmul.f32 %v1675, %v1677
        %v1679 = vadd.f32 %v1675, %v1678
        %vm1680 = vweird.f32 %v1674
        %vm1681 = vweird.f32 %v1675
        %vm1682 = vmor %vm1680, %vm1681
        %v1683 = vsel %vm1682, %v1675, %v1679
        %v1684 = vand.u32 2147483647, %v1674
        %vm1685 = vcmp.eq.f32.partialorder %v1684, 8.507059e+37
        %v1686 = vand.u32 %v1674, 2147483648
        %v1687 = vor.u32 1.1754944e-38, %v1686
        %v1688 = vsel %vm1685, %v1687, %v1683
        %v1689 = vmul.f32 1.0, %v1688
        %v1690 = vtanh.pop %v1650
        %v1691 = vxor.u32 %v1651, 2147483648
        %v1692 = vmul.f32 %v1691, 1.442695
        %v1693 = vpow.pop %v1692
        %v1694 = vadd.f32 %v1693, 1.0
        %v1695 = vrcp.pop %v1694
        %v1696 = vmul.f32 %v1694, %v1695
        %v1697 = vsub.f32 1.0, %v1696
        %v1698 = vmul.f32 %v1695, %v1697
        %v1699 = vadd.f32 %v1695, %v1698
        %vm1700 = vweird.f32 %v1694
        %vm1701 = vweird.f32 %v1695
        %vm1702 = vmor %vm1700, %vm1701
        %v1703 = vsel %vm1702, %v1695, %v1699
        %v1704 = vand.u32 2147483647, %v1694
        %vm1705 = vcmp.eq.f32.partialorder %v1704, 8.507059e+37
        %v1706 = vand.u32 %v1694, 2147483648
        %v1707 = vor.u32 1.1754944e-38, %v1706
        %v1708 = vsel %vm1705, %v1707, %v1703
        %v1709 = vmul.f32 1.0, %v1708
        %v1710 = vmul.f32 %v1689, %v1579
        %v1711 = vmul.f32 %v1670, %v1690
        %v1712 = vadd.f32 %v1710, %v1711
        %v1713 = vtanh.pop %v1712
        %v1714 = vmul.f32 %v1709, %v1713
        %s1715 = smul.u32 %s1587, 8
        %s1716 = scalar_lea.vmem %s327, %s1715 [#allocation13]
        %1717 = vst [vmem:[%s1716] sm:$0xff] %v1714
        %s1718 = smul.u32 %s1053, 6
        %s1719 = sadd.s32 %s1718, %s27
        %s1720 = smul.u32 %s1719, 4
        %s1721 = smul.addr %s1720, 8
        %s1722 = scalar_lea.vmem [#allocation4], %s1721
        %v1723 = vld [vmem:[%s1722] sm:$0xff]
        %v1724 = vld [vmem:[%s1722 + $0x8] sm:$0xff]
        %v1725 = vld [vmem:[%s1722 + $0x10] sm:$0xff]
        %v1726 = vld [vmem:[%s1722 + $0x18] sm:$0xff]
        %v1727 = vpack.c.bf16 %v1714, %v1714
        %1728 = vmatpush.bf16.msra.mxu0 %v895
        %1729 = vmatpush.bf16.msra.mxu0 %v891
        %1730 = vmatpush.bf16.msra.mxu0 %v887
        %1731 = vmatpush.bf16.msra.mxu0 %v883
        %1732 = vmatpush.bf16.msra.mxu0 %v879
        %1733 = vmatpush.bf16.msra.mxu0 %v875
        %1734 = vmatpush.bf16.msra.mxu0 %v871
        %1735 = vmatpush.bf16.msra.mxu0 %v867
        %1736 = vmatmul.bf16.gmra.mxu0 %v1727
        %v1737 = vpop.f32.mrf.mxu0
        %v1738 = vadd.f32 0.0, %v1737
        %v1739 = vpop.f32.mrf.mxu0
        %1740 = vdwg.mxu0
        %1741 = vmatpush.bf16.msra.mxu0 %v896
        %1742 = vmatpush.bf16.msra.mxu0 %v892
        %1743 = vmatpush.bf16.msra.mxu0 %v888
        %1744 = vmatpush.bf16.msra.mxu0 %v884
        %1745 = vmatpush.bf16.msra.mxu0 %v880
        %1746 = vmatpush.bf16.msra.mxu0 %v876
        %1747 = vmatpush.bf16.msra.mxu0 %v872
        %1748 = vmatpush.bf16.msra.mxu0 %v868
        %1749 = vmatmul.bf16.gmra.mxu0 %v1727
        %v1750 = vpop.f32.mrf.mxu0
        %v1751 = vadd.f32 0.0, %v1750
        %v1752 = vpop.f32.mrf.mxu0
        %1753 = vdwg.mxu0
        %1754 = vmatpush.bf16.msra.mxu0 %v897
        %1755 = vmatpush.bf16.msra.mxu0 %v893
        %1756 = vmatpush.bf16.msra.mxu0 %v889
        %1757 = vmatpush.bf16.msra.mxu0 %v885
        %1758 = vmatpush.bf16.msra.mxu0 %v881
        %1759 = vmatpush.bf16.msra.mxu0 %v877
        %1760 = vmatpush.bf16.msra.mxu0 %v873
        %1761 = vmatpush.bf16.msra.mxu0 %v869
        %1762 = vmatmul.bf16.gmra.mxu0 %v1727
        %v1763 = vpop.f32.mrf.mxu0
        %v1764 = vadd.f32 0.0, %v1763
        %v1765 = vpop.f32.mrf.mxu0
        %1766 = vdwg.mxu0
        %1767 = vmatpush.bf16.msra.mxu0 %v898
        %1768 = vmatpush.bf16.msra.mxu0 %v894
        %1769 = vmatpush.bf16.msra.mxu0 %v890
        %1770 = vmatpush.bf16.msra.mxu0 %v886
        %1771 = vmatpush.bf16.msra.mxu0 %v882
        %1772 = vmatpush.bf16.msra.mxu0 %v878
        %1773 = vmatpush.bf16.msra.mxu0 %v874
        %1774 = vmatpush.bf16.msra.mxu0 %v870
        %1775 = vmatmul.bf16.gmra.mxu0 %v1727
        %v1776 = vpop.f32.mrf.mxu0
        %v1777 = vadd.f32 0.0, %v1776
        %v1778 = vpop.f32.mrf.mxu0
        %1779 = vdwg.mxu0
        %v1780 = vadd.f32 %v1723, %v1738
        %v1781 = vadd.f32 %v1724, %v1751
        %v1782 = vadd.f32 %v1725, %v1764
        %v1783 = vadd.f32 %v1726, %v1777
        %v1784 = vxor.u32 %v1780, 2147483648
        %v1785 = vmul.f32 %v1784, 1.442695
        %v1786 = vpow.pop %v1785
        %v1787 = vadd.f32 %v1786, 1.0
        %v1788 = vrcp.pop %v1787
        %v1789 = vmul.f32 %v1787, %v1788
        %v1790 = vsub.f32 1.0, %v1789
        %v1791 = vmul.f32 %v1788, %v1790
        %v1792 = vadd.f32 %v1788, %v1791
        %vm1793 = vweird.f32 %v1787
        %vm1794 = vweird.f32 %v1788
        %vm1795 = vmor %vm1793, %vm1794
        %v1796 = vsel %vm1795, %v1788, %v1792
        %v1797 = vand.u32 2147483647, %v1787
        %vm1798 = vcmp.eq.f32.partialorder %v1797, 8.507059e+37
        %v1799 = vand.u32 %v1787, 2147483648
        %v1800 = vor.u32 1.1754944e-38, %v1799
        %v1801 = vsel %vm1798, %v1800, %v1796
        %v1802 = vmul.f32 1.0, %v1801
        %v1803 = vxor.u32 %v1781, 2147483648
        %v1804 = vmul.f32 %v1803, 1.442695
        %v1805 = vpow.pop %v1804
        %v1806 = vadd.f32 %v1805, 1.0
        %v1807 = vrcp.pop %v1806
        %v1808 = vmul.f32 %v1806, %v1807
        %v1809 = vsub.f32 1.0, %v1808
        %v1810 = vmul.f32 %v1807, %v1809
        %v1811 = vadd.f32 %v1807, %v1810
        %vm1812 = vweird.f32 %v1806
        %vm1813 = vweird.f32 %v1807
        %vm1814 = vmor %vm1812, %vm1813
        %v1815 = vsel %vm1814, %v1807, %v1811
        %v1816 = vand.u32 2147483647, %v1806
        %vm1817 = vcmp.eq.f32.partialorder %v1816, 8.507059e+37
        %v1818 = vand.u32 %v1806, 2147483648
        %v1819 = vor.u32 1.1754944e-38, %v1818
        %v1820 = vsel %vm1817, %v1819, %v1815
        %v1821 = vmul.f32 1.0, %v1820
        %v1822 = vtanh.pop %v1782
        %v1823 = vxor.u32 %v1783, 2147483648
        %v1824 = vmul.f32 %v1823, 1.442695
        %v1825 = vpow.pop %v1824
        %v1826 = vadd.f32 %v1825, 1.0
        %v1827 = vrcp.pop %v1826
        %v1828 = vmul.f32 %v1826, %v1827
        %v1829 = vsub.f32 1.0, %v1828
        %v1830 = vmul.f32 %v1827, %v1829
        %v1831 = vadd.f32 %v1827, %v1830
        %vm1832 = vweird.f32 %v1826
        %vm1833 = vweird.f32 %v1827
        %vm1834 = vmor %vm1832, %vm1833
        %v1835 = vsel %vm1834, %v1827, %v1831
        %v1836 = vand.u32 2147483647, %v1826
        %vm1837 = vcmp.eq.f32.partialorder %v1836, 8.507059e+37
        %v1838 = vand.u32 %v1826, 2147483648
        %v1839 = vor.u32 1.1754944e-38, %v1838
        %v1840 = vsel %vm1837, %v1839, %v1835
        %v1841 = vmul.f32 1.0, %v1840
        %v1842 = vmul.f32 %v1821, %v1712
        %v1843 = vmul.f32 %v1802, %v1822
        %v1844 = vadd.f32 %v1842, %v1843
        %v1845 = vtanh.pop %v1844
        %v1846 = vmul.f32 %v1841, %v1845
        %s1847 = smul.u32 %s1719, 8
        %s1848 = scalar_lea.vmem %s327, %s1847 [#allocation13]
        %1849 = vst [vmem:[%s1848] sm:$0xff] %v1846
        %s1850 = smul.u32 %s1053, 7
        %s1851 = smul.u32 %s1850, 4
        %s1852 = smul.addr %s1851, 8
        %s1853 = scalar_lea.vmem [#allocation4], %s1852
        %v1854 = vld [vmem:[%s1853] sm:$0xff]
        %v1855 = vld [vmem:[%s1853 + $0x8] sm:$0xff]
        %v1856 = vld [vmem:[%s1853 + $0x10] sm:$0xff]
        %v1857 = vld [vmem:[%s1853 + $0x18] sm:$0xff]
        %v1858 = vpack.c.bf16 %v1846, %v1846
        %1859 = vmatpush.bf16.msra.mxu0 %v895
        %1860 = vmatpush.bf16.msra.mxu0 %v891
        %1861 = vmatpush.bf16.msra.mxu0 %v887
        %1862 = vmatpush.bf16.msra.mxu0 %v883
        %1863 = vmatpush.bf16.msra.mxu0 %v879
        %1864 = vmatpush.bf16.msra.mxu0 %v875
        %1865 = vmatpush.bf16.msra.mxu0 %v871
        %1866 = vmatpush.bf16.msra.mxu0 %v867
        %1867 = vmatmul.bf16.gmra.mxu0 %v1858
        %v1868 = vpop.f32.mrf.mxu0
        %v1869 = vadd.f32 0.0, %v1868
        %v1870 = vpop.f32.mrf.mxu0
        %1871 = vdwg.mxu0
        %1872 = vmatpush.bf16.msra.mxu0 %v896
        %1873 = vmatpush.bf16.msra.mxu0 %v892
        %1874 = vmatpush.bf16.msra.mxu0 %v888
        %1875 = vmatpush.bf16.msra.mxu0 %v884
        %1876 = vmatpush.bf16.msra.mxu0 %v880
        %1877 = vmatpush.bf16.msra.mxu0 %v876
        %1878 = vmatpush.bf16.msra.mxu0 %v872
        %1879 = vmatpush.bf16.msra.mxu0 %v868
        %1880 = vmatmul.bf16.gmra.mxu0 %v1858
        %v1881 = vpop.f32.mrf.mxu0
        %v1882 = vadd.f32 0.0, %v1881
        %v1883 = vpop.f32.mrf.mxu0
        %1884 = vdwg.mxu0
        %1885 = vmatpush.bf16.msra.mxu0 %v897
        %1886 = vmatpush.bf16.msra.mxu0 %v893
        %1887 = vmatpush.bf16.msra.mxu0 %v889
        %1888 = vmatpush.bf16.msra.mxu0 %v885
        %1889 = vmatpush.bf16.msra.mxu0 %v881
        %1890 = vmatpush.bf16.msra.mxu0 %v877
        %1891 = vmatpush.bf16.msra.mxu0 %v873
        %1892 = vmatpush.bf16.msra.mxu0 %v869
        %1893 = vmatmul.bf16.gmra.mxu0 %v1858
        %v1894 = vpop.f32.mrf.mxu0
        %v1895 = vadd.f32 0.0, %v1894
        %v1896 = vpop.f32.mrf.mxu0
        %1897 = vdwg.mxu0
        %1898 = vmatpush.bf16.msra.mxu0 %v898
        %1899 = vmatpush.bf16.msra.mxu0 %v894
        %1900 = vmatpush.bf16.msra.mxu0 %v890
        %1901 = vmatpush.bf16.msra.mxu0 %v886
        %1902 = vmatpush.bf16.msra.mxu0 %v882
        %1903 = vmatpush.bf16.msra.mxu0 %v878
        %1904 = vmatpush.bf16.msra.mxu0 %v874
        %1905 = vmatpush.bf16.msra.mxu0 %v870
        %1906 = vmatmul.bf16.gmra.mxu0 %v1858
        %v1907 = vpop.f32.mrf.mxu0
        %v1908 = vadd.f32 0.0, %v1907
        %v1909 = vpop.f32.mrf.mxu0
        %1910 = vdwg.mxu0
        %v1911 = vadd.f32 %v1854, %v1869
        %v1912 = vadd.f32 %v1855, %v1882
        %v1913 = vadd.f32 %v1856, %v1895
        %v1914 = vadd.f32 %v1857, %v1908
        %v1915 = vxor.u32 %v1911, 2147483648
        %v1916 = vmul.f32 %v1915, 1.442695
        %v1917 = vpow.pop %v1916
        %v1918 = vadd.f32 %v1917, 1.0
        %v1919 = vrcp.pop %v1918
        %v1920 = vmul.f32 %v1918, %v1919
        %v1921 = vsub.f32 1.0, %v1920
        %v1922 = vmul.f32 %v1919, %v1921
        %v1923 = vadd.f32 %v1919, %v1922
        %vm1924 = vweird.f32 %v1918
        %vm1925 = vweird.f32 %v1919
        %vm1926 = vmor %vm1924, %vm1925
        %v1927 = vsel %vm1926, %v1919, %v1923
        %v1928 = vand.u32 2147483647, %v1918
        %vm1929 = vcmp.eq.f32.partialorder %v1928, 8.507059e+37
        %v1930 = vand.u32 %v1918, 2147483648
        %v1931 = vor.u32 1.1754944e-38, %v1930
        %v1932 = vsel %vm1929, %v1931, %v1927
        %v1933 = vmul.f32 1.0, %v1932
        %v1934 = vxor.u32 %v1912, 2147483648
        %v1935 = vmul.f32 %v1934, 1.442695
        %v1936 = vpow.pop %v1935
        %v1937 = vadd.f32 %v1936, 1.0
        %v1938 = vrcp.pop %v1937
        %v1939 = vmul.f32 %v1937, %v1938
        %v1940 = vsub.f32 1.0, %v1939
        %v1941 = vmul.f32 %v1938, %v1940
        %v1942 = vadd.f32 %v1938, %v1941
        %vm1943 = vweird.f32 %v1937
        %vm1944 = vweird.f32 %v1938
        %vm1945 = vmor %vm1943, %vm1944
        %v1946 = vsel %vm1945, %v1938, %v1942
        %v1947 = vand.u32 2147483647, %v1937
        %vm1948 = vcmp.eq.f32.partialorder %v1947, 8.507059e+37
        %v1949 = vand.u32 %v1937, 2147483648
        %v1950 = vor.u32 1.1754944e-38, %v1949
        %v1951 = vsel %vm1948, %v1950, %v1946
        %v1952 = vmul.f32 1.0, %v1951
        %v1953 = vtanh.pop %v1913
        %v1954 = vxor.u32 %v1914, 2147483648
        %v1955 = vmul.f32 %v1954, 1.442695
        %v1956 = vpow.pop %v1955
        %v1957 = vadd.f32 %v1956, 1.0
        %v1958 = vrcp.pop %v1957
        %v1959 = vmul.f32 %v1957, %v1958
        %v1960 = vsub.f32 1.0, %v1959
        %v1961 = vmul.f32 %v1958, %v1960
        %v1962 = vadd.f32 %v1958, %v1961
        %vm1963 = vweird.f32 %v1957
        %vm1964 = vweird.f32 %v1958
        %vm1965 = vmor %vm1963, %vm1964
        %v1966 = vsel %vm1965, %v1958, %v1962
        %v1967 = vand.u32 2147483647, %v1957
        %vm1968 = vcmp.eq.f32.partialorder %v1967, 8.507059e+37
        %v1969 = vand.u32 %v1957, 2147483648
        %v1970 = vor.u32 1.1754944e-38, %v1969
        %v1971 = vsel %vm1968, %v1970, %v1966
        %v1972 = vmul.f32 1.0, %v1971
        %v1973 = vmul.f32 %v1952, %v1844
        %v1974 = vmul.f32 %v1933, %v1953
        %v1975 = vadd.f32 %v1973, %v1974
        %v1976 = vtanh.pop %v1975
        %v1977 = vmul.f32 %v1972, %v1976
        %s1978 = smul.u32 %s1850, 8
        %s1979 = scalar_lea.vmem %s327, %s1978 [#allocation13]
        %1980 = vst [vmem:[%s1979] sm:$0xff] %v1977
        %1981 = vst [vmem:[#allocation2] sm:$0xff] %v1977
        %1982 = vst [vmem:[#allocation3] sm:$0xff] %v1975
        %s1983 = sand.u32 %s169, 1
        %s1984 = scalar_lea.sflag [#allocation7], %s1983
        %s1985 = sand.u32 %s169, 1
        %s1986 = smul.addr %s1985, 64
        %s1987 = scalar_lea.vmem [#allocation13], %s1986
        // Predicated region
        $region57: #{tpu_custom_call.1} parent=35 // pred_check
          %p1988 = pneg %p179
        $region58: #{tpu_custom_call.1} parent=35 // pred_check_branch
          %1990 = sbr.rel (%p1988) target = $region60
        $region59: #{tpu_custom_call.1} parent=35 // pred_region
          %s1991 = ssub.s32 1, %s27
          %s1992 = smul.u32 %s28, %s1991
          %s1993 = ssub.s32 0, %s28
          %s1994 = smul.u32 %s1993, %s27
          %s1995 = sadd.s32 %s1992, %s1994
          %s1996 = smul.u32 8, %s1995
          %1998 = vsyncadd %s1984, 0
          %s1999 = smul.addr %s1996, 2
          %s2000 = sadd.s32 %s27, %s1999
          %s2001 = smul.addr %s2000, 8
          %s2002 = scalar_lea.hbm %s4, %s2001
          %s2003 = sshll.u32 %s1987, 4
          %s2004 = int_to_ptr.vmem [resolvable:$true] %s2003
          %s2005 = sshll.u32 %s2002, 4
          %s2006 = int_to_ptr.hbm [resolvable:$true] %s2005
          %2011 = dma.vmem_to_hbm [thread:$0]  %s2004, 1024, %s2006, %s1984, 128, 256, 8
        $region60: #{tpu_custom_call.1} parent=35 // pred_fallthru
          _
      $region36: #{tpu_custom_call.1} parent=5 // pred_fallthru
        _
      %p2012 = scmp.le.s32.totalorder 2, %s18
      // Predicated region
      $region61: #{tpu_custom_call.1} parent=5 // pred_check
        %p2013 = pneg %p2012
      $region62: #{tpu_custom_call.1} parent=5 // pred_check_branch
        %2015 = sbr.rel (%p2013) target = $region64
      $region63: #{tpu_custom_call.1} parent=5 // pred_region
        %s2016 = ssub.s32 %s18, 2
        // Predicated region
        $region65: #{tpu_custom_call.1} parent=63 // pred_check
          %p2017 = pneg %p185
        $region66: #{tpu_custom_call.1} parent=63 // pred_check_branch
          %2019 = sbr.rel (%p2017) target = $region68
        $region67: #{tpu_custom_call.1} parent=63 // pred_region
          %s2020 = sand.u32 %s170, 1
          %s2021 = scalar_lea.sflag [#allocation7], %s2020
          %s2022 = sand.u32 %s170, 1
          %s2023 = smul.addr %s2022, 64
          %s2024 = scalar_lea.vmem [#allocation13], %s2023
          %2026 = dma.done %s2021, 1024
        $region68: #{tpu_custom_call.1} parent=63 // pred_fallthru
          _
      $region64: #{tpu_custom_call.1} parent=5 // pred_fallthru
        _
    $region6: #{tpu_custom_call.1} parent=1 // loop_footer
      %s22 = sadd.s32 1, %s18
    $region7: #{tpu_custom_call.1} parent=1 // loop_footer_branch
      %17 = sbr.rel target = $region3
    $region8: #{tpu_custom_call.1} parent=1 // loop_exit
      _
    %2027 = vsyncpa [#allocation6], 1
    %s2028 = scalar_lea.sflag [#allocation6], 1
    %2029 = vsyncpa %s2028, 1
    %2030 = vsyncpa [#allocation9], 1
    %2031 = vsyncpa [#allocation12], 1
    %2032 = vsyncpa [#allocation7], 1
    %s2033 = scalar_lea.sflag [#allocation7], 1
    %2034 = vsyncpa %s2033, 1

// kernel: tpu_custom_call.1
$region0: #{tpu_custom_call.1}
  #allocation0 [shape = 'u32[]', space=smem, size = 0x4, offset = 0x4, fixed_abs, tag = 'smem constant byte address 0x4 - core index']
  #allocation1 [shape = 'u32[72,128]{1,0:T(1,128)}', space=vmem, size = 0x9000, scoped, tag = 'internal scratch']
  #allocation2 [shape = 'f32[8,128]{1,0:T(8,128)}', space=vmem, size = 0x1000, scoped, tag = 'scratch operand']
  #allocation3 [shape = 'f32[8,128]{1,0:T(8,128)}', space=vmem, size = 0x1000, scoped, tag = 'scratch operand']
  #allocation4 [shape = 'f32[8,8,512]{2,1,0:T(8,128)}', space=vmem, size = 0x20000, scoped, tag = 'scratch operand']
  %s0 = inlined_call_operand.hbm [shape: bf16[8,8,128], index: 0, kind: input, shape index: {}]
  %s1 = inlined_call_operand.hbm [shape: bf16[2,128,512], index: 1, kind: input, shape index: {}]
  %s2 = inlined_call_operand.hbm [shape: bf16[2,128,512], index: 2, kind: input, shape index: {}]
  %s3 = inlined_call_operand.hbm [shape: f32[2,1,512], index: 3, kind: input, shape index: {}]
  %s4 = inlined_call_operand.hbm [shape: f32[8,8,256], index: 4, kind: output, shape index: {}]
  %s5 = sld [smem:[#allocation0]]
  $region69: #{tpu_custom_call.1} parent=0
    _
  %s7 = ssub.s32 1, %s5
  %s8 = scalar_select 0, %s7, %s5
  $region1: #{tpu_custom_call.1} parent=0
    #allocation5 [shape = 'u8[32768]{0}', space=vmem, size = 0x8000, scoped, tag = 'input window, operand 0']
    #allocation6 [shape = 's32[2]{0}', space=sflag, size = 0x8, scoped, tag = 'scoped memory for tpu_custom_call.1']
    #allocation7 [shape = 's32[2]{0}', space=sflag, size = 0x8, scoped, tag = 'scoped memory for tpu_custom_call.1']
    #allocation8 [shape = 'u8[262144]{0}', space=vmem, size = 0x40000, scoped, tag = 'input window, operand 1']
    #allocation9 [shape = 's32[2]{0}', space=sflag, size = 0x8, scoped, tag = 'scoped memory for tpu_custom_call.1']
    #allocation10 [shape = 'u8[262144]{0}', space=vmem, size = 0x40000, scoped, tag = 'input window, operand 2']
    #allocation11 [shape = 'u8[4096]{0}', space=vmem, size = 0x1000, scoped, tag = 'input window, operand 3']
    #allocation12 [shape = 's32[2]{0}', space=sflag, size = 0x8, scoped, tag = 'scoped memory for tpu_custom_call.1']
    #allocation13 [shape = 'u8[65536]{0}', space=vmem, size = 0x10000, scoped, tag = 'output window, operand 0']
    %9 = vsyncpa [#allocation6], 0
    %s10 = scalar_lea.sflag [#allocation6], 1
    %11 = vsyncpa %s10, 0
    %12 = vsyncpa [#allocation9], 0
    %s13 = scalar_lea.sflag [#allocation9], 1
    %14 = vsyncpa %s13, 0
    %15 = vsyncpa [#allocation12], 0
    %s16 = scalar_lea.sflag [#allocation12], 1
    %17 = vsyncpa %s16, 0
    %18 = vsyncpa [#allocation7], 0
    %s19 = scalar_lea.sflag [#allocation7], 1
    %20 = vsyncpa %s19, 0
    loop: start=0, step=1, limit=4
    $region2: #{tpu_custom_call.1} parent=1 // loop_pre_header
      _
    $region3: #{tpu_custom_call.1} parent=1 // loop_header
      %s22 = sphi 0, %s26
      %p23 = scmp.ge.s32.totalorder %s22, 4
      %s29 = sphi 0, %s41
      %s30 = sphi 0, %s37
      %s31 = sphi 0, %s29
      %s32 = sphi 0, %s30
      %s33 = sphi 0, %s31
      %s34 = sphi 0, %s32
      %s54 = sphi 0, %s56
      %s57 = sphi 0, %s54
      %s58 = sphi 0, %s57
      %s74 = sphi 0, %s58
      %s80 = sphi 0, %s82
      %s83 = sphi 0, %s80
      %s84 = sphi 0, %s83
      %s100 = sphi 0, %s84
      %s106 = sphi 0, %s108
      %s109 = sphi 0, %s106
      %s110 = sphi 0, %s109
      %s126 = sphi 0, %s110
      %s132 = sphi 0, %s134
      %s135 = sphi 0, %s132
      %s136 = sphi 0, %s135
      %s152 = sphi 0, %s136
      %s170 = sphi 0, %s172
      %s173 = sphi 0, %s170
      %s174 = sphi 0, %s173
      %s190 = sphi 0, %s174
    $region4: #{tpu_custom_call.1} parent=1 // loop_header_branch
      %25 = sbr.rel (%p23) target = $region8
    $region5: #{tpu_custom_call.1} parent=1 // loop_body
      %s27 = ssub.s32 %s22, 1
      %s28 = ssub.s32 %s22, 2
      %s35 = sadd.s32 1, %s30
      %p36 = scmp.ge.s32.totalorder %s35, 1
      %s37 = scalar_select %p36, 0, %s35
      %s38 = sadd.s32 1, %s29
      %s39 = scalar_select %p36, %s38, %s29
      %p40 = scmp.ge.s32.totalorder %s39, 2
      %s41 = scalar_select %p40, 0, %s39
      %s42 = ssub.s32 1, %s29
      %s43 = smul.u32 %s30, %s42
      %s44 = ssub.s32 0, %s30
      %s45 = smul.u32 %s44, %s29
      %s46 = sadd.s32 %s43, %s45
      %s47 = ssub.s32 1, %s41
      %s48 = smul.u32 %s37, %s47
      %s49 = ssub.s32 0, %s37
      %s50 = smul.u32 %s49, %s41
      %s51 = sadd.s32 %s48, %s50
      %s52 = ssub.s32 %s46, %s51
      %p53 = scmp.eq.s32.totalorder %s52, 0
      %s55 = sadd.s32 %s54, 1
      %s56 = scalar_select %p53, %s54, %s55
      %p59 = pneg %p53
      %p60 = scmp.eq.s32.totalorder %s22, 1
      %p61 = por %p59, %p60
      %p62 = scmp.ne.s32.totalorder %s54, %s57
      %p63 = scmp.eq.s32.totalorder %s22, 0
      %p64 = por %p62, %p63
      %p65 = scmp.ne.s32.totalorder %s54, %s57
      %p66 = scmp.eq.s32.totalorder %s27, 1
      %p67 = por %p65, %p66
      %p68 = scmp.ne.s32.totalorder %s57, %s58
      %p69 = scmp.eq.s32.totalorder %s27, 0
      %p70 = por %p68, %p69
      %p71 = scmp.ne.s32.totalorder %s57, %s58
      %p72 = scmp.eq.s32.totalorder %s28, 1
      %p73 = por %p71, %p72
      %p75 = scmp.ne.s32.totalorder %s58, %s74
      %p76 = scmp.eq.s32.totalorder %s28, 0
      %p77 = por %p75, %p76
      %s78 = ssub.s32 %s29, %s41
      %p79 = scmp.eq.s32.totalorder %s78, 0
      %s81 = sadd.s32 %s80, 1
      %s82 = scalar_select %p79, %s80, %s81
      %p85 = pneg %p79
      %p86 = scmp.eq.s32.totalorder %s22, 1
      %p87 = por %p85, %p86
      %p88 = scmp.ne.s32.totalorder %s80, %s83
      %p89 = scmp.eq.s32.totalorder %s22, 0
      %p90 = por %p88, %p89
      %p91 = scmp.ne.s32.totalorder %s80, %s83
      %p92 = scmp.eq.s32.totalorder %s27, 1
      %p93 = por %p91, %p92
      %p94 = scmp.ne.s32.totalorder %s83, %s84
      %p95 = scmp.eq.s32.totalorder %s27, 0
      %p96 = por %p94, %p95
      %p97 = scmp.ne.s32.totalorder %s83, %s84
      %p98 = scmp.eq.s32.totalorder %s28, 1
      %p99 = por %p97, %p98
      %p101 = scmp.ne.s32.totalorder %s84, %s100
      %p102 = scmp.eq.s32.totalorder %s28, 0
      %p103 = por %p101, %p102
      %s104 = ssub.s32 %s29, %s41
      %p105 = scmp.eq.s32.totalorder %s104, 0
      %s107 = sadd.s32 %s106, 1
      %s108 = scalar_select %p105, %s106, %s107
      %p111 = pneg %p105
      %p112 = scmp.eq.s32.totalorder %s22, 1
      %p113 = por %p111, %p112
      %p114 = scmp.ne.s32.totalorder %s106, %s109
      %p115 = scmp.eq.s32.totalorder %s22, 0
      %p116 = por %p114, %p115
      %p117 = scmp.ne.s32.totalorder %s106, %s109
      %p118 = scmp.eq.s32.totalorder %s27, 1
      %p119 = por %p117, %p118
      %p120 = scmp.ne.s32.totalorder %s109, %s110
      %p121 = scmp.eq.s32.totalorder %s27, 0
      %p122 = por %p120, %p121
      %p123 = scmp.ne.s32.totalorder %s109, %s110
      %p124 = scmp.eq.s32.totalorder %s28, 1
      %p125 = por %p123, %p124
      %p127 = scmp.ne.s32.totalorder %s110, %s126
      %p128 = scmp.eq.s32.totalorder %s28, 0
      %p129 = por %p127, %p128
      %s130 = ssub.s32 %s29, %s41
      %p131 = scmp.eq.s32.totalorder %s130, 0
      %s133 = sadd.s32 %s132, 1
      %s134 = scalar_select %p131, %s132, %s133
      %p137 = pneg %p131
      %p138 = scmp.eq.s32.totalorder %s22, 1
      %p139 = por %p137, %p138
      %p140 = scmp.ne.s32.totalorder %s132, %s135
      %p141 = scmp.eq.s32.totalorder %s22, 0
      %p142 = por %p140, %p141
      %p143 = scmp.ne.s32.totalorder %s132, %s135
      %p144 = scmp.eq.s32.totalorder %s27, 1
      %p145 = por %p143, %p144
      %p146 = scmp.ne.s32.totalorder %s135, %s136
      %p147 = scmp.eq.s32.totalorder %s27, 0
      %p148 = por %p146, %p147
      %p149 = scmp.ne.s32.totalorder %s135, %s136
      %p150 = scmp.eq.s32.totalorder %s28, 1
      %p151 = por %p149, %p150
      %p153 = scmp.ne.s32.totalorder %s136, %s152
      %p154 = scmp.eq.s32.totalorder %s28, 0
      %p155 = por %p153, %p154
      %s156 = ssub.s32 1, %s29
      %s157 = smul.u32 %s30, %s156
      %s158 = ssub.s32 0, %s30
      %s159 = smul.u32 %s158, %s29
      %s160 = sadd.s32 %s157, %s159
      %s161 = ssub.s32 1, %s41
      %s162 = smul.u32 %s37, %s161
      %s163 = ssub.s32 0, %s37
      %s164 = smul.u32 %s163, %s41
      %s165 = sadd.s32 %s162, %s164
      %s166 = ssub.s32 %s160, %s165
      %s167 = ssub.s32 %s29, %s41
      %s168 = sor.u32 %s166, %s167
      %p169 = scmp.eq.s32.totalorder %s168, 0
      %s171 = sadd.s32 %s170, 1
      %s172 = scalar_select %p169, %s170, %s171
      %p175 = pneg %p169
      %p176 = scmp.eq.s32.totalorder %s22, 1
      %p177 = por %p175, %p176
      %p178 = scmp.ne.s32.totalorder %s170, %s173
      %p179 = scmp.eq.s32.totalorder %s22, 0
      %p180 = por %p178, %p179
      %p181 = scmp.ne.s32.totalorder %s170, %s173
      %p182 = scmp.eq.s32.totalorder %s27, 1
      %p183 = por %p181, %p182
      %p184 = scmp.ne.s32.totalorder %s173, %s174
      %p185 = scmp.eq.s32.totalorder %s27, 0
      %p186 = por %p184, %p185
      %p187 = scmp.ne.s32.totalorder %s173, %s174
      %p188 = scmp.eq.s32.totalorder %s28, 1
      %p189 = por %p187, %p188
      %p191 = scmp.ne.s32.totalorder %s174, %s190
      %p192 = scmp.eq.s32.totalorder %s28, 0
      %p193 = por %p191, %p192
      %p194 = scmp.le.s32.totalorder 1, %s22
      %p195 = scmp.lt.s32.totalorder %s22, 3
      %p196 = pnand %p194, %p195
      %p197 = pneg %p196
      // Predicated region
      $region9: #{tpu_custom_call.1} parent=5 // pred_check
        _
      $region10: #{tpu_custom_call.1} parent=5 // pred_check_branch
        %199 = sbr.rel (%p196) target = $region12
      $region11: #{tpu_custom_call.1} parent=5 // pred_region
        %s200 = ssub.s32 %s22, 1
      $region12: #{tpu_custom_call.1} parent=5 // pred_fallthru
        _
      %p201 = scmp.lt.s32.totalorder %s22, 2
      // Predicated region
      $region13: #{tpu_custom_call.1} parent=5 // pred_check
        %p202 = pneg %p201
      $region14: #{tpu_custom_call.1} parent=5 // pred_check_branch
        %204 = sbr.rel (%p202) target = $region16
      $region15: #{tpu_custom_call.1} parent=5 // pred_region
        // Predicated region
        $region17: #{tpu_custom_call.1} parent=15 // pred_check
          %p205 = pneg %p64
        $region18: #{tpu_custom_call.1} parent=15 // pred_check_branch
          %207 = sbr.rel (%p205) target = $region20
        $region19: #{tpu_custom_call.1} parent=15 // pred_region
          %s208 = sand.u32 %s54, 1
          %s209 = scalar_lea.sflag [#allocation6], %s208
          %s210 = sand.u32 %s54, 1
          %s211 = smul.addr %s210, 32
          %s212 = scalar_lea.vmem [#allocation5], %s211
          %s213 = ssub.s32 1, %s29
          %s214 = smul.u32 %s30, %s213
          %s215 = ssub.s32 0, %s30
          %s216 = smul.u32 %s215, %s29
          %s217 = sadd.s32 %s214, %s216
          %s218 = smul.u32 8, %s217
          %220 = vsyncadd %s209, 0
          %s221 = smul.addr %s218, 4
          %s222 = scalar_lea.hbm %s0, %s221
          %s223 = sshll.u32 %s222, 4
          %s224 = int_to_ptr.hbm [resolvable:$true] %s223
          %s225 = sshll.u32 %s212, 4
          %s226 = int_to_ptr.vmem [resolvable:$true] %s225
          %231 = dma.hbm_to_vmem [thread:$0]  %s224, 512, %s226, %s209, 64, 64, 4
        $region20: #{tpu_custom_call.1} parent=15 // pred_fallthru
          _
        // Predicated region
        $region21: #{tpu_custom_call.1} parent=15 // pred_check
          %p232 = pneg %p90
        $region22: #{tpu_custom_call.1} parent=15 // pred_check_branch
          %234 = sbr.rel (%p232) target = $region24
        $region23: #{tpu_custom_call.1} parent=15 // pred_region
          %s235 = sand.u32 %s22, 1
          %s236 = scalar_lea.sflag [#allocation9], %s235
          %s237 = sand.u32 %s80, 1
          %s238 = smul.addr %s237, 256
          %s239 = scalar_lea.vmem [#allocation8], %s238
          %241 = vsyncadd %s236, 0
          %s242 = smul.addr %s29, 64
          %s243 = smul.addr %s242, 4
          %s244 = scalar_lea.hbm %s1, %s243
          %s245 = sshll.u32 %s244, 4
          %s246 = int_to_ptr.hbm [resolvable:$true] %s245
          %s247 = sshll.u32 %s239, 4
          %s248 = int_to_ptr.vmem [resolvable:$true] %s247
          %253 = dma.hbm_to_vmem [thread:$0]  %s246, 4096, %s248, %s236, 256, 256, 16
        $region24: #{tpu_custom_call.1} parent=15 // pred_fallthru
          _
        // Predicated region
        $region25: #{tpu_custom_call.1} parent=15 // pred_check
          %p254 = pneg %p116
        $region26: #{tpu_custom_call.1} parent=15 // pred_check_branch
          %256 = sbr.rel (%p254) target = $region28
        $region27: #{tpu_custom_call.1} parent=15 // pred_region
          %s257 = sand.u32 %s22, 1
          %s258 = scalar_lea.sflag [#allocation9], %s257
          %s259 = sand.u32 %s106, 1
          %s260 = smul.addr %s259, 256
          %s261 = scalar_lea.vmem [#allocation10], %s260
          %263 = vsyncadd %s258, 0
          %s264 = smul.addr %s29, 64
          %s265 = smul.addr %s264, 4
          %s266 = scalar_lea.hbm %s2, %s265
          %s267 = sshll.u32 %s266, 4
          %s268 = int_to_ptr.hbm [resolvable:$true] %s267
          %s269 = sshll.u32 %s261, 4
          %s270 = int_to_ptr.vmem [resolvable:$true] %s269
          %275 = dma.hbm_to_vmem [thread:$0]  %s268, 4096, %s270, %s258, 256, 256, 16
        $region28: #{tpu_custom_call.1} parent=15 // pred_fallthru
          _
        // Predicated region
        $region29: #{tpu_custom_call.1} parent=15 // pred_check
          %p276 = pneg %p142
        $region30: #{tpu_custom_call.1} parent=15 // pred_check_branch
          %278 = sbr.rel (%p276) target = $region32
        $region31: #{tpu_custom_call.1} parent=15 // pred_region
          %s279 = sand.u32 %s132, 1
          %s280 = scalar_lea.sflag [#allocation12], %s279
          %s281 = sand.u32 %s132, 1
          %s282 = smul.addr %s281, 4
          %s283 = scalar_lea.vmem [#allocation11], %s282
          %285 = vsyncadd %s280, 0
          %s286 = smul.addr %s29, 4
          %s287 = scalar_lea.hbm %s3, %s286
          %s289 = sshll.u32 %s287, 4
          %s290 = int_to_ptr.hbm [resolvable:$true] %s289
          %s291 = sshll.u32 %s283, 4
          %s292 = int_to_ptr.vmem [resolvable:$true] %s291
          %294 = dma.hbm_to_vmem [thread:$0]  %s290, 64, %s292, %s280
        $region32: #{tpu_custom_call.1} parent=15 // pred_fallthru
          _
      $region16: #{tpu_custom_call.1} parent=5 // pred_fallthru
        _
      %p295 = scmp.le.s32.totalorder 1, %s22
      %p296 = scmp.lt.s32.totalorder %s22, 3
      %p297 = pnand %p295, %p296
      %p298 = pneg %p297
      // Predicated region
      $region33: #{tpu_custom_call.1} parent=5 // pred_check
        _
      $region34: #{tpu_custom_call.1} parent=5 // pred_check_branch
        %300 = sbr.rel (%p297) target = $region36
      $region35: #{tpu_custom_call.1} parent=5 // pred_region
        %s301 = ssub.s32 %s22, 1
        %s302 = sand.u32 %s57, 1
        %s303 = scalar_lea.sflag [#allocation6], %s302
        %s304 = sand.u32 %s57, 1
        %s305 = smul.addr %s304, 32
        %s306 = scalar_lea.vmem [#allocation5], %s305
        // Predicated region
        $region37: #{tpu_custom_call.1} parent=35 // pred_check
          %p307 = pneg %p70
        $region38: #{tpu_custom_call.1} parent=35 // pred_check_branch
          %309 = sbr.rel (%p307) target = $region40
        $region39: #{tpu_custom_call.1} parent=35 // pred_region
          %311 = dma.done %s303, 512
        $region40: #{tpu_custom_call.1} parent=35 // pred_fallthru
          _
        %s312 = sand.u32 %s27, 1
        %s313 = scalar_lea.sflag [#allocation9], %s312
        %s314 = sand.u32 %s83, 1
        %s315 = smul.addr %s314, 256
        %s316 = scalar_lea.vmem [#allocation8], %s315
        // Predicated region
        $region41: #{tpu_custom_call.1} parent=35 // pred_check
          %p317 = pneg %p96
        $region42: #{tpu_custom_call.1} parent=35 // pred_check_branch
          %319 = sbr.rel (%p317) target = $region44
        $region43: #{tpu_custom_call.1} parent=35 // pred_region
          %321 = dma.done %s313, 4096
        $region44: #{tpu_custom_call.1} parent=35 // pred_fallthru
          _
        %s322 = sand.u32 %s27, 1
        %s323 = scalar_lea.sflag [#allocation9], %s322
        %s324 = sand.u32 %s109, 1
        %s325 = smul.addr %s324, 256
        %s326 = scalar_lea.vmem [#allocation10], %s325
        // Predicated region
        $region45: #{tpu_custom_call.1} parent=35 // pred_check
          %p327 = pneg %p122
        $region46: #{tpu_custom_call.1} parent=35 // pred_check_branch
          %329 = sbr.rel (%p327) target = $region48
        $region47: #{tpu_custom_call.1} parent=35 // pred_region
          %331 = dma.done %s323, 4096
        $region48: #{tpu_custom_call.1} parent=35 // pred_fallthru
          _
        %s332 = sand.u32 %s135, 1
        %s333 = scalar_lea.sflag [#allocation12], %s332
        %s334 = sand.u32 %s135, 1
        %s335 = smul.addr %s334, 4
        %s336 = scalar_lea.vmem [#allocation11], %s335
        // Predicated region
        $region49: #{tpu_custom_call.1} parent=35 // pred_check
          %p337 = pneg %p148
        $region50: #{tpu_custom_call.1} parent=35 // pred_check_branch
          %339 = sbr.rel (%p337) target = $region52
        $region51: #{tpu_custom_call.1} parent=35 // pred_region
          %341 = dma.done %s333, 64
        $region52: #{tpu_custom_call.1} parent=35 // pred_fallthru
          _
        %s342 = sand.u32 %s57, 1
        %s343 = scalar_lea.sflag [#allocation6], %s342
        %s344 = sand.u32 %s57, 1
        %s345 = smul.addr %s344, 32
        %s346 = scalar_lea.vmem [#allocation5], %s345
        %p347 = pneg %p70
        %p348 = pneg %p67
        %s349 = sand.u32 %s27, 1
        %s350 = scalar_lea.sflag [#allocation9], %s349
        %s351 = sand.u32 %s83, 1
        %s352 = smul.addr %s351, 256
        %s353 = scalar_lea.vmem [#allocation8], %s352
        %p354 = pneg %p96
        %p355 = pneg %p93
        %s356 = sand.u32 %s27, 1
        %s357 = scalar_lea.sflag [#allocation9], %s356
        %s358 = sand.u32 %s109, 1
        %s359 = smul.addr %s358, 256
        %s360 = scalar_lea.vmem [#allocation10], %s359
        %p361 = pneg %p122
        %p362 = pneg %p119
        %s363 = sand.u32 %s135, 1
        %s364 = scalar_lea.sflag [#allocation12], %s363
        %s365 = sand.u32 %s135, 1
        %s366 = smul.addr %s365, 4
        %s367 = scalar_lea.vmem [#allocation11], %s366
        %p368 = pneg %p148
        %p369 = pneg %p145
        %p370 = pneg %p186
        %p371 = pneg %p183
        %s372 = sand.u32 %s173, 1
        %s373 = scalar_lea.sflag [#allocation7], %s372
        %s374 = sand.u32 %s173, 1
        %s375 = smul.addr %s374, 64
        %s376 = scalar_lea.vmem [#allocation13], %s375
        %s377 = ssub.s32 1, %s31
        %s378 = smul.u32 %s32, %s377
        %s379 = ssub.s32 0, %s32
        %s380 = smul.u32 %s379, %s31
        %s381 = sadd.s32 %s378, %s380
        %s382 = smul.u32 8, %s381
        %s383 = ssub.s32 1, %s31
        %s384 = smul.u32 %s32, %s383
        %s385 = ssub.s32 0, %s32
        %s386 = smul.u32 %s385, %s31
        %s387 = sadd.s32 %s384, %s386
        %s388 = smul.u32 8, %s387
        %p389 = scmp.eq.s32.totalorder %s32, 0
        // Predicated region
        $region53: #{tpu_custom_call.1} parent=35 // pred_check
          %p390 = pneg %p389
        $region54: #{tpu_custom_call.1} parent=35 // pred_check_branch
          %392 = sbr.rel (%p390) target = $region56
        $region55: #{tpu_custom_call.1} parent=35 // pred_region
          %393 = vst [vmem:[#allocation2] sm:$0xff] 0.0
          %394 = vst [vmem:[#allocation3] sm:$0xff] 0.0
        $region56: #{tpu_custom_call.1} parent=35 // pred_fallthru
          _
        %v395 = vld [vmem:[%s306] sm:$0xf]
        %v396 = vld [vmem:[%s306 + $0x4] sm:$0xf]
        %v397 = vld [vmem:[%s306 + $0x8] sm:$0xf]
        %v398 = vld [vmem:[%s306 + $0xc] sm:$0xf]
        %v399 = vld [vmem:[%s306 + $0x10] sm:$0xf]
        %v400 = vld [vmem:[%s306 + $0x14] sm:$0xf]
        %v401 = vld [vmem:[%s306 + $0x18] sm:$0xf]
        %v402 = vld [vmem:[%s306 + $0x1c] sm:$0xf]
        %v403 = vld [vmem:[%s316] sm:$0xff]
        %v404 = vld [vmem:[%s316 + $0x8] sm:$0xff]
        %v405 = vld [vmem:[%s316 + $0x10] sm:$0xff]
        %v406 = vld [vmem:[%s316 + $0x18] sm:$0xff]
        %v407 = vld [vmem:[%s316 + $0x20] sm:$0xff]
        %v408 = vld [vmem:[%s316 + $0x28] sm:$0xff]
        %v409 = vld [vmem:[%s316 + $0x30] sm:$0xff]
        %v410 = vld [vmem:[%s316 + $0x38] sm:$0xff]
        %v411 = vld [vmem:[%s316 + $0x40] sm:$0xff]
        %v412 = vld [vmem:[%s316 + $0x48] sm:$0xff]
        %v413 = vld [vmem:[%s316 + $0x50] sm:$0xff]
        %v414 = vld [vmem:[%s316 + $0x58] sm:$0xff]
        %v415 = vld [vmem:[%s316 + $0x60] sm:$0xff]
        %v416 = vld [vmem:[%s316 + $0x68] sm:$0xff]
        %v417 = vld [vmem:[%s316 + $0x70] sm:$0xff]
        %v418 = vld [vmem:[%s316 + $0x78] sm:$0xff]
        %v419 = vld [vmem:[%s316 + $0x80] sm:$0xff]
        %v420 = vld [vmem:[%s316 + $0x88] sm:$0xff]
        %v421 = vld [vmem:[%s316 + $0x90] sm:$0xff]
        %v422 = vld [vmem:[%s316 + $0x98] sm:$0xff]
        %v423 = vld [vmem:[%s316 + $0xa0] sm:$0xff]
        %v424 = vld [vmem:[%s316 + $0xa8] sm:$0xff]
        %v425 = vld [vmem:[%s316 + $0xb0] sm:$0xff]
        %v426 = vld [vmem:[%s316 + $0xb8] sm:$0xff]
        %v427 = vld [vmem:[%s316 + $0xc0] sm:$0xff]
        %v428 = vld [vmem:[%s316 + $0xc8] sm:$0xff]
        %v429 = vld [vmem:[%s316 + $0xd0] sm:$0xff]
        %v430 = vld [vmem:[%s316 + $0xd8] sm:$0xff]
        %v431 = vld [vmem:[%s316 + $0xe0] sm:$0xff]
        %v432 = vld [vmem:[%s316 + $0xe8] sm:$0xff]
        %v433 = vld [vmem:[%s316 + $0xf0] sm:$0xff]
        %v434 = vld [vmem:[%s316 + $0xf8] sm:$0xff]
        %v435 = vld [vmem:[%s336] sm:$0xf]
        %v437 = vperm.slane %v435, 0
        %v438 = vperm.slane %v435, 1
        %v439 = vperm.slane %v435, 2
        %v440 = vperm.slane %v435, 3
        %v453 = vunpack.c.l.b16 %v395
        %v454 = vunpack.c.l.b16 %v396
        %v455 = vunpack.c.l.b16 %v397
        %v456 = vunpack.c.l.b16 %v398
        %v457 = vunpack.c.l.b16 %v399
        %v458 = vunpack.c.l.b16 %v400
        %v459 = vunpack.c.l.b16 %v401
        %v460 = vunpack.c.l.b16 %v402
        %v461 = vpack.c.b16 %v454, %v453
        %v462 = vpack.c.b16 %v456, %v455
        %v463 = vpack.c.b16 %v458, %v457
        %v464 = vpack.c.b16 %v460, %v459
        %v501 = vunpack.c.l.b16 %v403
        %v502 = vunpack.c.h.b16 %v403
        %v503 = vunpack.c.l.b16 %v404
        %v504 = vunpack.c.h.b16 %v404
        %v505 = vunpack.c.l.b16 %v405
        %v506 = vunpack.c.h.b16 %v405
        %v507 = vunpack.c.l.b16 %v406
        %v508 = vunpack.c.h.b16 %v406
        %v509 = vunpack.c.l.b16 %v407
        %v510 = vunpack.c.h.b16 %v407
        %v511 = vunpack.c.l.b16 %v408
        %v512 = vunpack.c.h.b16 %v408
        %v513 = vunpack.c.l.b16 %v409
        %v514 = vunpack.c.h.b16 %v409
        %v515 = vunpack.c.l.b16 %v410
        %v516 = vunpack.c.h.b16 %v410
        %v517 = vunpack.c.l.b16 %v411
        %v518 = vunpack.c.h.b16 %v411
        %v519 = vunpack.c.l.b16 %v412
        %v520 = vunpack.c.h.b16 %v412
        %v521 = vunpack.c.l.b16 %v413
        %v522 = vunpack.c.h.b16 %v413
        %v523 = vunpack.c.l.b16 %v414
        %v524 = vunpack.c.h.b16 %v414
        %v525 = vunpack.c.l.b16 %v415
        %v526 = vunpack.c.h.b16 %v415
        %v527 = vunpack.c.l.b16 %v416
        %v528 = vunpack.c.h.b16 %v416
        %v529 = vunpack.c.l.b16 %v417
        %v530 = vunpack.c.h.b16 %v417
        %v531 = vunpack.c.l.b16 %v418
        %v532 = vunpack.c.h.b16 %v418
        %v533 = vunpack.c.l.b16 %v419
        %v534 = vunpack.c.h.b16 %v419
        %v535 = vunpack.c.l.b16 %v420
        %v536 = vunpack.c.h.b16 %v420
        %v537 = vunpack.c.l.b16 %v421
        %v538 = vunpack.c.h.b16 %v421
        %v539 = vunpack.c.l.b16 %v422
        %v540 = vunpack.c.h.b16 %v422
        %v541 = vunpack.c.l.b16 %v423
        %v542 = vunpack.c.h.b16 %v423
        %v543 = vunpack.c.l.b16 %v424
        %v544 = vunpack.c.h.b16 %v424
        %v545 = vunpack.c.l.b16 %v425
        %v546 = vunpack.c.h.b16 %v425
        %v547 = vunpack.c.l.b16 %v426
        %v548 = vunpack.c.h.b16 %v426
        %v549 = vunpack.c.l.b16 %v427
        %v550 = vunpack.c.h.b16 %v427
        %v551 = vunpack.c.l.b16 %v428
        %v552 = vunpack.c.h.b16 %v428
        %v553 = vunpack.c.l.b16 %v429
        %v554 = vunpack.c.h.b16 %v429
        %v555 = vunpack.c.l.b16 %v430
        %v556 = vunpack.c.h.b16 %v430
        %v557 = vunpack.c.l.b16 %v431
        %v558 = vunpack.c.h.b16 %v431
        %v559 = vunpack.c.l.b16 %v432
        %v560 = vunpack.c.h.b16 %v432
        %v561 = vunpack.c.l.b16 %v433
        %v562 = vunpack.c.h.b16 %v433
        %v563 = vunpack.c.l.b16 %v434
        %v564 = vunpack.c.h.b16 %v434
        %v565 = vpack.c.b16 %v505, %v501
        %v566 = vpack.c.b16 %v506, %v502
        %v567 = vpack.c.b16 %v507, %v503
        %v568 = vpack.c.b16 %v508, %v504
        %v569 = vpack.c.b16 %v513, %v509
        %v570 = vpack.c.b16 %v514, %v510
        %v571 = vpack.c.b16 %v515, %v511
        %v572 = vpack.c.b16 %v516, %v512
        %v573 = vpack.c.b16 %v521, %v517
        %v574 = vpack.c.b16 %v522, %v518
        %v575 = vpack.c.b16 %v523, %v519
        %v576 = vpack.c.b16 %v524, %v520
        %v577 = vpack.c.b16 %v529, %v525
        %v578 = vpack.c.b16 %v530, %v526
        %v579 = vpack.c.b16 %v531, %v527
        %v580 = vpack.c.b16 %v532, %v528
        %v581 = vpack.c.b16 %v537, %v533
        %v582 = vpack.c.b16 %v538, %v534
        %v583 = vpack.c.b16 %v539, %v535
        %v584 = vpack.c.b16 %v540, %v536
        %v585 = vpack.c.b16 %v545, %v541
        %v586 = vpack.c.b16 %v546, %v542
        %v587 = vpack.c.b16 %v547, %v543
        %v588 = vpack.c.b16 %v548, %v544
        %v589 = vpack.c.b16 %v553, %v549
        %v590 = vpack.c.b16 %v554, %v550
        %v591 = vpack.c.b16 %v555, %v551
        %v592 = vpack.c.b16 %v556, %v552
        %v593 = vpack.c.b16 %v561, %v557
        %v594 = vpack.c.b16 %v562, %v558
        %v595 = vpack.c.b16 %v563, %v559
        %v596 = vpack.c.b16 %v564, %v560
        %629 = vmatpush.bf16.msra.mxu0 %v593
        %630 = vmatpush.bf16.msra.mxu0 %v589
        %631 = vmatpush.bf16.msra.mxu0 %v585
        %632 = vmatpush.bf16.msra.mxu0 %v581
        %633 = vmatpush.bf16.msra.mxu0 %v577
        %634 = vmatpush.bf16.msra.mxu0 %v573
        %635 = vmatpush.bf16.msra.mxu0 %v569
        %636 = vmatpush.bf16.msra.mxu0 %v565
        %637 = vmatmul.bf16.gmra.mxu0 %v461
        %v638 = vpop.f32.mrf.mxu0
        %v639 = vadd.f32 %v437, %v638
        %v640 = vpop.f32.mrf.mxu0
        %v641 = vadd.f32 %v437, %v640
        %642 = vmatmul.bf16.gmra.mxu0 %v462
        %v643 = vpop.f32.mrf.mxu0
        %v644 = vadd.f32 %v437, %v643
        %v645 = vpop.f32.mrf.mxu0
        %v646 = vadd.f32 %v437, %v645
        %647 = vmatmul.bf16.gmra.mxu0 %v463
        %v648 = vpop.f32.mrf.mxu0
        %v649 = vadd.f32 %v437, %v648
        %v650 = vpop.f32.mrf.mxu0
        %v651 = vadd.f32 %v437, %v650
        %652 = vmatmul.bf16.gmra.mxu0 %v464
        %v653 = vpop.f32.mrf.mxu0
        %v654 = vadd.f32 %v437, %v653
        %v655 = vpop.f32.mrf.mxu0
        %v656 = vadd.f32 %v437, %v655
        %657 = vdwg.mxu0
        %658 = vmatpush.bf16.msra.mxu0 %v594
        %659 = vmatpush.bf16.msra.mxu0 %v590
        %660 = vmatpush.bf16.msra.mxu0 %v586
        %661 = vmatpush.bf16.msra.mxu0 %v582
        %662 = vmatpush.bf16.msra.mxu0 %v578
        %663 = vmatpush.bf16.msra.mxu0 %v574
        %664 = vmatpush.bf16.msra.mxu0 %v570
        %665 = vmatpush.bf16.msra.mxu0 %v566
        %666 = vmatmul.bf16.gmra.mxu0 %v461
        %v667 = vpop.f32.mrf.mxu0
        %v668 = vadd.f32 %v438, %v667
        %v669 = vpop.f32.mrf.mxu0
        %v670 = vadd.f32 %v438, %v669
        %671 = vmatmul.bf16.gmra.mxu0 %v462
        %v672 = vpop.f32.mrf.mxu0
        %v673 = vadd.f32 %v438, %v672
        %v674 = vpop.f32.mrf.mxu0
        %v675 = vadd.f32 %v438, %v674
        %676 = vmatmul.bf16.gmra.mxu0 %v463
        %v677 = vpop.f32.mrf.mxu0
        %v678 = vadd.f32 %v438, %v677
        %v679 = vpop.f32.mrf.mxu0
        %v680 = vadd.f32 %v438, %v679
        %681 = vmatmul.bf16.gmra.mxu0 %v464
        %v682 = vpop.f32.mrf.mxu0
        %v683 = vadd.f32 %v438, %v682
        %v684 = vpop.f32.mrf.mxu0
        %v685 = vadd.f32 %v438, %v684
        %686 = vdwg.mxu0
        %687 = vmatpush.bf16.msra.mxu0 %v595
        %688 = vmatpush.bf16.msra.mxu0 %v591
        %689 = vmatpush.bf16.msra.mxu0 %v587
        %690 = vmatpush.bf16.msra.mxu0 %v583
        %691 = vmatpush.bf16.msra.mxu0 %v579
        %692 = vmatpush.bf16.msra.mxu0 %v575
        %693 = vmatpush.bf16.msra.mxu0 %v571
        %694 = vmatpush.bf16.msra.mxu0 %v567
        %695 = vmatmul.bf16.gmra.mxu0 %v461
        %v696 = vpop.f32.mrf.mxu0
        %v697 = vadd.f32 %v439, %v696
        %v698 = vpop.f32.mrf.mxu0
        %v699 = vadd.f32 %v439, %v698
        %700 = vmatmul.bf16.gmra.mxu0 %v462
        %v701 = vpop.f32.mrf.mxu0
        %v702 = vadd.f32 %v439, %v701
        %v703 = vpop.f32.mrf.mxu0
        %v704 = vadd.f32 %v439, %v703
        %705 = vmatmul.bf16.gmra.mxu0 %v463
        %v706 = vpop.f32.mrf.mxu0
        %v707 = vadd.f32 %v439, %v706
        %v708 = vpop.f32.mrf.mxu0
        %v709 = vadd.f32 %v439, %v708
        %710 = vmatmul.bf16.gmra.mxu0 %v464
        %v711 = vpop.f32.mrf.mxu0
        %v712 = vadd.f32 %v439, %v711
        %v713 = vpop.f32.mrf.mxu0
        %v714 = vadd.f32 %v439, %v713
        %715 = vdwg.mxu0
        %716 = vmatpush.bf16.msra.mxu0 %v596
        %717 = vmatpush.bf16.msra.mxu0 %v592
        %718 = vmatpush.bf16.msra.mxu0 %v588
        %719 = vmatpush.bf16.msra.mxu0 %v584
        %720 = vmatpush.bf16.msra.mxu0 %v580
        %721 = vmatpush.bf16.msra.mxu0 %v576
        %722 = vmatpush.bf16.msra.mxu0 %v572
        %723 = vmatpush.bf16.msra.mxu0 %v568
        %724 = vmatmul.bf16.gmra.mxu0 %v461
        %v725 = vpop.f32.mrf.mxu0
        %v726 = vadd.f32 %v440, %v725
        %v727 = vpop.f32.mrf.mxu0
        %v728 = vadd.f32 %v440, %v727
        %729 = vmatmul.bf16.gmra.mxu0 %v462
        %v730 = vpop.f32.mrf.mxu0
        %v731 = vadd.f32 %v440, %v730
        %v732 = vpop.f32.mrf.mxu0
        %v733 = vadd.f32 %v440, %v732
        %734 = vmatmul.bf16.gmra.mxu0 %v463
        %v735 = vpop.f32.mrf.mxu0
        %v736 = vadd.f32 %v440, %v735
        %v737 = vpop.f32.mrf.mxu0
        %v738 = vadd.f32 %v440, %v737
        %739 = vmatmul.bf16.gmra.mxu0 %v464
        %v740 = vpop.f32.mrf.mxu0
        %v741 = vadd.f32 %v440, %v740
        %v742 = vpop.f32.mrf.mxu0
        %v743 = vadd.f32 %v440, %v742
        %744 = vdwg.mxu0
        %745 = vst [vmem:[#allocation4] sm:$0xff] %v639
        %746 = vst [vmem:[#allocation4 + $0x8] sm:$0xff] %v668
        %747 = vst [vmem:[#allocation4 + $0x10] sm:$0xff] %v697
        %748 = vst [vmem:[#allocation4 + $0x18] sm:$0xff] %v726
        %749 = vst [vmem:[#allocation4 + $0x20] sm:$0xff] %v641
        %750 = vst [vmem:[#allocation4 + $0x28] sm:$0xff] %v670
        %751 = vst [vmem:[#allocation4 + $0x30] sm:$0xff] %v699
        %752 = vst [vmem:[#allocation4 + $0x38] sm:$0xff] %v728
        %753 = vst [vmem:[#allocation4 + $0x40] sm:$0xff] %v644
        %754 = vst [vmem:[#allocation4 + $0x48] sm:$0xff] %v673
        %755 = vst [vmem:[#allocation4 + $0x50] sm:$0xff] %v702
        %756 = vst [vmem:[#allocation4 + $0x58] sm:$0xff] %v731
        %757 = vst [vmem:[#allocation4 + $0x60] sm:$0xff] %v646
        %758 = vst [vmem:[#allocation4 + $0x68] sm:$0xff] %v675
        %759 = vst [vmem:[#allocation4 + $0x70] sm:$0xff] %v704
        %760 = vst [vmem:[#allocation4 + $0x78] sm:$0xff] %v733
        %761 = vst [vmem:[#allocation4 + $0x80] sm:$0xff] %v649
        %762 = vst [vmem:[#allocation4 + $0x88] sm:$0xff] %v678
        %763 = vst [vmem:[#allocation4 + $0x90] sm:$0xff] %v707
        %764 = vst [vmem:[#allocation4 + $0x98] sm:$0xff] %v736
        %765 = vst [vmem:[#allocation4 + $0xa0] sm:$0xff] %v651
        %766 = vst [vmem:[#allocation4 + $0xa8] sm:$0xff] %v680
        %767 = vst [vmem:[#allocation4 + $0xb0] sm:$0xff] %v709
        %768 = vst [vmem:[#allocation4 + $0xb8] sm:$0xff] %v738
        %769 = vst [vmem:[#allocation4 + $0xc0] sm:$0xff] %v654
        %770 = vst [vmem:[#allocation4 + $0xc8] sm:$0xff] %v683
        %771 = vst [vmem:[#allocation4 + $0xd0] sm:$0xff] %v712
        %772 = vst [vmem:[#allocation4 + $0xd8] sm:$0xff] %v741
        %773 = vst [vmem:[#allocation4 + $0xe0] sm:$0xff] %v656
        %774 = vst [vmem:[#allocation4 + $0xe8] sm:$0xff] %v685
        %775 = vst [vmem:[#allocation4 + $0xf0] sm:$0xff] %v714
        %776 = vst [vmem:[#allocation4 + $0xf8] sm:$0xff] %v743
        %v777 = vld [vmem:[%s326] sm:$0xff]
        %v778 = vld [vmem:[%s326 + $0x8] sm:$0xff]
        %v779 = vld [vmem:[%s326 + $0x10] sm:$0xff]
        %v780 = vld [vmem:[%s326 + $0x18] sm:$0xff]
        %v781 = vld [vmem:[%s326 + $0x20] sm:$0xff]
        %v782 = vld [vmem:[%s326 + $0x28] sm:$0xff]
        %v783 = vld [vmem:[%s326 + $0x30] sm:$0xff]
        %v784 = vld [vmem:[%s326 + $0x38] sm:$0xff]
        %v785 = vld [vmem:[%s326 + $0x40] sm:$0xff]
        %v786 = vld [vmem:[%s326 + $0x48] sm:$0xff]
        %v787 = vld [vmem:[%s326 + $0x50] sm:$0xff]
        %v788 = vld [vmem:[%s326 + $0x58] sm:$0xff]
        %v789 = vld [vmem:[%s326 + $0x60] sm:$0xff]
        %v790 = vld [vmem:[%s326 + $0x68] sm:$0xff]
        %v791 = vld [vmem:[%s326 + $0x70] sm:$0xff]
        %v792 = vld [vmem:[%s326 + $0x78] sm:$0xff]
        %v793 = vld [vmem:[%s326 + $0x80] sm:$0xff]
        %v794 = vld [vmem:[%s326 + $0x88] sm:$0xff]
        %v795 = vld [vmem:[%s326 + $0x90] sm:$0xff]
        %v796 = vld [vmem:[%s326 + $0x98] sm:$0xff]
        %v797 = vld [vmem:[%s326 + $0xa0] sm:$0xff]
        %v798 = vld [vmem:[%s326 + $0xa8] sm:$0xff]
        %v799 = vld [vmem:[%s326 + $0xb0] sm:$0xff]
        %v800 = vld [vmem:[%s326 + $0xb8] sm:$0xff]
        %v801 = vld [vmem:[%s326 + $0xc0] sm:$0xff]
        %v802 = vld [vmem:[%s326 + $0xc8] sm:$0xff]
        %v803 = vld [vmem:[%s326 + $0xd0] sm:$0xff]
        %v804 = vld [vmem:[%s326 + $0xd8] sm:$0xff]
        %v805 = vld [vmem:[%s326 + $0xe0] sm:$0xff]
        %v806 = vld [vmem:[%s326 + $0xe8] sm:$0xff]
        %v807 = vld [vmem:[%s326 + $0xf0] sm:$0xff]
        %v808 = vld [vmem:[%s326 + $0xf8] sm:$0xff]
        %v809 = vld [vmem:[#allocation2] sm:$0xff]
        %v810 = vld [vmem:[#allocation3] sm:$0xff]
        %s811 = smul.u32 %s31, 7
        %s812 = smul.u32 %s811, 4
        %s813 = smul.addr %s812, 8
        %s814 = scalar_lea.vmem [#allocation4], %s813
        %v815 = vld [vmem:[%s814] sm:$0xff]
        %v816 = vld [vmem:[%s814 + $0x8] sm:$0xff]
        %v817 = vld [vmem:[%s814 + $0x10] sm:$0xff]
        %v818 = vld [vmem:[%s814 + $0x18] sm:$0xff]
        %v819 = vpack.c.bf16 %v809, %v809
        %v852 = vunpack.c.l.b16 %v777
        %v853 = vunpack.c.h.b16 %v777
        %v854 = vunpack.c.l.b16 %v778
        %v855 = vunpack.c.h.b16 %v778
        %v856 = vunpack.c.l.b16 %v779
        %v857 = vunpack.c.h.b16 %v779
        %v858 = vunpack.c.l.b16 %v780
        %v859 = vunpack.c.h.b16 %v780
        %v860 = vunpack.c.l.b16 %v781
        %v861 = vunpack.c.h.b16 %v781
        %v862 = vunpack.c.l.b16 %v782
        %v863 = vunpack.c.h.b16 %v782
        %v864 = vunpack.c.l.b16 %v783
        %v865 = vunpack.c.h.b16 %v783
        %v866 = vunpack.c.l.b16 %v784
        %v867 = vunpack.c.h.b16 %v784
        %v868 = vunpack.c.l.b16 %v785
        %v869 = vunpack.c.h.b16 %v785
        %v870 = vunpack.c.l.b16 %v786
        %v871 = vunpack.c.h.b16 %v786
        %v872 = vunpack.c.l.b16 %v787
        %v873 = vunpack.c.h.b16 %v787
        %v874 = vunpack.c.l.b16 %v788
        %v875 = vunpack.c.h.b16 %v788
        %v876 = vunpack.c.l.b16 %v789
        %v877 = vunpack.c.h.b16 %v789
        %v878 = vunpack.c.l.b16 %v790
        %v879 = vunpack.c.h.b16 %v790
        %v880 = vunpack.c.l.b16 %v791
        %v881 = vunpack.c.h.b16 %v791
        %v882 = vunpack.c.l.b16 %v792
        %v883 = vunpack.c.h.b16 %v792
        %v884 = vunpack.c.l.b16 %v793
        %v885 = vunpack.c.h.b16 %v793
        %v886 = vunpack.c.l.b16 %v794
        %v887 = vunpack.c.h.b16 %v794
        %v888 = vunpack.c.l.b16 %v795
        %v889 = vunpack.c.h.b16 %v795
        %v890 = vunpack.c.l.b16 %v796
        %v891 = vunpack.c.h.b16 %v796
        %v892 = vunpack.c.l.b16 %v797
        %v893 = vunpack.c.h.b16 %v797
        %v894 = vunpack.c.l.b16 %v798
        %v895 = vunpack.c.h.b16 %v798
        %v896 = vunpack.c.l.b16 %v799
        %v897 = vunpack.c.h.b16 %v799
        %v898 = vunpack.c.l.b16 %v800
        %v899 = vunpack.c.h.b16 %v800
        %v900 = vunpack.c.l.b16 %v801
        %v901 = vunpack.c.h.b16 %v801
        %v902 = vunpack.c.l.b16 %v802
        %v903 = vunpack.c.h.b16 %v802
        %v904 = vunpack.c.l.b16 %v803
        %v905 = vunpack.c.h.b16 %v803
        %v906 = vunpack.c.l.b16 %v804
        %v907 = vunpack.c.h.b16 %v804
        %v908 = vunpack.c.l.b16 %v805
        %v909 = vunpack.c.h.b16 %v805
        %v910 = vunpack.c.l.b16 %v806
        %v911 = vunpack.c.h.b16 %v806
        %v912 = vunpack.c.l.b16 %v807
        %v913 = vunpack.c.h.b16 %v807
        %v914 = vunpack.c.l.b16 %v808
        %v915 = vunpack.c.h.b16 %v808
        %v916 = vpack.c.b16 %v856, %v852
        %v917 = vpack.c.b16 %v857, %v853
        %v918 = vpack.c.b16 %v858, %v854
        %v919 = vpack.c.b16 %v859, %v855
        %v920 = vpack.c.b16 %v864, %v860
        %v921 = vpack.c.b16 %v865, %v861
        %v922 = vpack.c.b16 %v866, %v862
        %v923 = vpack.c.b16 %v867, %v863
        %v924 = vpack.c.b16 %v872, %v868
        %v925 = vpack.c.b16 %v873, %v869
        %v926 = vpack.c.b16 %v874, %v870
        %v927 = vpack.c.b16 %v875, %v871
        %v928 = vpack.c.b16 %v880, %v876
        %v929 = vpack.c.b16 %v881, %v877
        %v930 = vpack.c.b16 %v882, %v878
        %v931 = vpack.c.b16 %v883, %v879
        %v932 = vpack.c.b16 %v888, %v884
        %v933 = vpack.c.b16 %v889, %v885
        %v934 = vpack.c.b16 %v890, %v886
        %v935 = vpack.c.b16 %v891, %v887
        %v936 = vpack.c.b16 %v896, %v892
        %v937 = vpack.c.b16 %v897, %v893
        %v938 = vpack.c.b16 %v898, %v894
        %v939 = vpack.c.b16 %v899, %v895
        %v940 = vpack.c.b16 %v904, %v900
        %v941 = vpack.c.b16 %v905, %v901
        %v942 = vpack.c.b16 %v906, %v902
        %v943 = vpack.c.b16 %v907, %v903
        %v944 = vpack.c.b16 %v912, %v908
        %v945 = vpack.c.b16 %v913, %v909
        %v946 = vpack.c.b16 %v914, %v910
        %v947 = vpack.c.b16 %v915, %v911
        %980 = vmatpush.bf16.msra.mxu0 %v944
        %981 = vmatpush.bf16.msra.mxu0 %v940
        %982 = vmatpush.bf16.msra.mxu0 %v936
        %983 = vmatpush.bf16.msra.mxu0 %v932
        %984 = vmatpush.bf16.msra.mxu0 %v928
        %985 = vmatpush.bf16.msra.mxu0 %v924
        %986 = vmatpush.bf16.msra.mxu0 %v920
        %987 = vmatpush.bf16.msra.mxu0 %v916
        %988 = vmatmul.bf16.gmra.mxu0 %v819
        %v989 = vpop.f32.mrf.mxu0
        %v990 = vadd.f32 0.0, %v989
        %v991 = vpop.f32.mrf.mxu0
        %992 = vdwg.mxu0
        %993 = vmatpush.bf16.msra.mxu0 %v945
        %994 = vmatpush.bf16.msra.mxu0 %v941
        %995 = vmatpush.bf16.msra.mxu0 %v937
        %996 = vmatpush.bf16.msra.mxu0 %v933
        %997 = vmatpush.bf16.msra.mxu0 %v929
        %998 = vmatpush.bf16.msra.mxu0 %v925
        %999 = vmatpush.bf16.msra.mxu0 %v921
        %1000 = vmatpush.bf16.msra.mxu0 %v917
        %1001 = vmatmul.bf16.gmra.mxu0 %v819
        %v1002 = vpop.f32.mrf.mxu0
        %v1003 = vadd.f32 0.0, %v1002
        %v1004 = vpop.f32.mrf.mxu0
        %1005 = vdwg.mxu0
        %1006 = vmatpush.bf16.msra.mxu0 %v946
        %1007 = vmatpush.bf16.msra.mxu0 %v942
        %1008 = vmatpush.bf16.msra.mxu0 %v938
        %1009 = vmatpush.bf16.msra.mxu0 %v934
        %1010 = vmatpush.bf16.msra.mxu0 %v930
        %1011 = vmatpush.bf16.msra.mxu0 %v926
        %1012 = vmatpush.bf16.msra.mxu0 %v922
        %1013 = vmatpush.bf16.msra.mxu0 %v918
        %1014 = vmatmul.bf16.gmra.mxu0 %v819
        %v1015 = vpop.f32.mrf.mxu0
        %v1016 = vadd.f32 0.0, %v1015
        %v1017 = vpop.f32.mrf.mxu0
        %1018 = vdwg.mxu0
        %1019 = vmatpush.bf16.msra.mxu0 %v947
        %1020 = vmatpush.bf16.msra.mxu0 %v943
        %1021 = vmatpush.bf16.msra.mxu0 %v939
        %1022 = vmatpush.bf16.msra.mxu0 %v935
        %1023 = vmatpush.bf16.msra.mxu0 %v931
        %1024 = vmatpush.bf16.msra.mxu0 %v927
        %1025 = vmatpush.bf16.msra.mxu0 %v923
        %1026 = vmatpush.bf16.msra.mxu0 %v919
        %1027 = vmatmul.bf16.gmra.mxu0 %v819
        %v1028 = vpop.f32.mrf.mxu0
        %v1029 = vadd.f32 0.0, %v1028
        %v1030 = vpop.f32.mrf.mxu0
        %1031 = vdwg.mxu0
        %v1032 = vadd.f32 %v815, %v990
        %v1033 = vadd.f32 %v816, %v1003
        %v1034 = vadd.f32 %v817, %v1016
        %v1035 = vadd.f32 %v818, %v1029
        %v1036 = vxor.u32 %v1032, 2147483648
        %v1037 = vmul.f32 %v1036, 1.442695
        %v1038 = vpow.pop %v1037
        %v1039 = vadd.f32 %v1038, 1.0
        %v1040 = vrcp.pop %v1039
        %v1041 = vmul.f32 %v1039, %v1040
        %v1042 = vsub.f32 1.0, %v1041
        %v1043 = vmul.f32 %v1040, %v1042
        %v1044 = vadd.f32 %v1040, %v1043
        %vm1045 = vweird.f32 %v1039
        %vm1046 = vweird.f32 %v1040
        %vm1047 = vmor %vm1045, %vm1046
        %v1048 = vsel %vm1047, %v1040, %v1044
        %v1049 = vand.u32 2147483647, %v1039
        %vm1050 = vcmp.eq.f32.partialorder %v1049, 8.507059e+37
        %v1051 = vand.u32 %v1039, 2147483648
        %v1052 = vor.u32 1.1754944e-38, %v1051
        %v1053 = vsel %vm1050, %v1052, %v1048
        %v1054 = vmul.f32 1.0, %v1053
        %v1055 = vxor.u32 %v1033, 2147483648
        %v1056 = vmul.f32 %v1055, 1.442695
        %v1057 = vpow.pop %v1056
        %v1058 = vadd.f32 %v1057, 1.0
        %v1059 = vrcp.pop %v1058
        %v1060 = vmul.f32 %v1058, %v1059
        %v1061 = vsub.f32 1.0, %v1060
        %v1062 = vmul.f32 %v1059, %v1061
        %v1063 = vadd.f32 %v1059, %v1062
        %vm1064 = vweird.f32 %v1058
        %vm1065 = vweird.f32 %v1059
        %vm1066 = vmor %vm1064, %vm1065
        %v1067 = vsel %vm1066, %v1059, %v1063
        %v1068 = vand.u32 2147483647, %v1058
        %vm1069 = vcmp.eq.f32.partialorder %v1068, 8.507059e+37
        %v1070 = vand.u32 %v1058, 2147483648
        %v1071 = vor.u32 1.1754944e-38, %v1070
        %v1072 = vsel %vm1069, %v1071, %v1067
        %v1073 = vmul.f32 1.0, %v1072
        %v1074 = vtanh.pop %v1034
        %v1075 = vxor.u32 %v1035, 2147483648
        %v1076 = vmul.f32 %v1075, 1.442695
        %v1077 = vpow.pop %v1076
        %v1078 = vadd.f32 %v1077, 1.0
        %v1079 = vrcp.pop %v1078
        %v1080 = vmul.f32 %v1078, %v1079
        %v1081 = vsub.f32 1.0, %v1080
        %v1082 = vmul.f32 %v1079, %v1081
        %v1083 = vadd.f32 %v1079, %v1082
        %vm1084 = vweird.f32 %v1078
        %vm1085 = vweird.f32 %v1079
        %vm1086 = vmor %vm1084, %vm1085
        %v1087 = vsel %vm1086, %v1079, %v1083
        %v1088 = vand.u32 2147483647, %v1078
        %vm1089 = vcmp.eq.f32.partialorder %v1088, 8.507059e+37
        %v1090 = vand.u32 %v1078, 2147483648
        %v1091 = vor.u32 1.1754944e-38, %v1090
        %v1092 = vsel %vm1089, %v1091, %v1087
        %v1093 = vmul.f32 1.0, %v1092
        %v1094 = vmul.f32 %v1073, %v810
        %v1095 = vmul.f32 %v1054, %v1074
        %v1096 = vadd.f32 %v1094, %v1095
        %v1097 = vtanh.pop %v1096
        %v1098 = vmul.f32 %v1093, %v1097
        %s1099 = smul.u32 %s811, 8
        %s1100 = scalar_lea.vmem %s376, %s1099 [#allocation13]
        %1101 = vst [vmem:[%s1100] sm:$0xff] %v1098
        %s1102 = ssub.s32 1, %s31
        %s1103 = smul.u32 %s31, 6
        %s1104 = sadd.s32 %s1102, %s1103
        %s1105 = smul.u32 %s1104, 4
        %s1106 = smul.addr %s1105, 8
        %s1107 = scalar_lea.vmem [#allocation4], %s1106
        %v1108 = vld [vmem:[%s1107] sm:$0xff]
        %v1109 = vld [vmem:[%s1107 + $0x8] sm:$0xff]
        %v1110 = vld [vmem:[%s1107 + $0x10] sm:$0xff]
        %v1111 = vld [vmem:[%s1107 + $0x18] sm:$0xff]
        %v1112 = vpack.c.bf16 %v1098, %v1098
        %1113 = vmatpush.bf16.msra.mxu0 %v944
        %1114 = vmatpush.bf16.msra.mxu0 %v940
        %1115 = vmatpush.bf16.msra.mxu0 %v936
        %1116 = vmatpush.bf16.msra.mxu0 %v932
        %1117 = vmatpush.bf16.msra.mxu0 %v928
        %1118 = vmatpush.bf16.msra.mxu0 %v924
        %1119 = vmatpush.bf16.msra.mxu0 %v920
        %1120 = vmatpush.bf16.msra.mxu0 %v916
        %1121 = vmatmul.bf16.gmra.mxu0 %v1112
        %v1122 = vpop.f32.mrf.mxu0
        %v1123 = vadd.f32 0.0, %v1122
        %v1124 = vpop.f32.mrf.mxu0
        %1125 = vdwg.mxu0
        %1126 = vmatpush.bf16.msra.mxu0 %v945
        %1127 = vmatpush.bf16.msra.mxu0 %v941
        %1128 = vmatpush.bf16.msra.mxu0 %v937
        %1129 = vmatpush.bf16.msra.mxu0 %v933
        %1130 = vmatpush.bf16.msra.mxu0 %v929
        %1131 = vmatpush.bf16.msra.mxu0 %v925
        %1132 = vmatpush.bf16.msra.mxu0 %v921
        %1133 = vmatpush.bf16.msra.mxu0 %v917
        %1134 = vmatmul.bf16.gmra.mxu0 %v1112
        %v1135 = vpop.f32.mrf.mxu0
        %v1136 = vadd.f32 0.0, %v1135
        %v1137 = vpop.f32.mrf.mxu0
        %1138 = vdwg.mxu0
        %1139 = vmatpush.bf16.msra.mxu0 %v946
        %1140 = vmatpush.bf16.msra.mxu0 %v942
        %1141 = vmatpush.bf16.msra.mxu0 %v938
        %1142 = vmatpush.bf16.msra.mxu0 %v934
        %1143 = vmatpush.bf16.msra.mxu0 %v930
        %1144 = vmatpush.bf16.msra.mxu0 %v926
        %1145 = vmatpush.bf16.msra.mxu0 %v922
        %1146 = vmatpush.bf16.msra.mxu0 %v918
        %1147 = vmatmul.bf16.gmra.mxu0 %v1112
        %v1148 = vpop.f32.mrf.mxu0
        %v1149 = vadd.f32 0.0, %v1148
        %v1150 = vpop.f32.mrf.mxu0
        %1151 = vdwg.mxu0
        %1152 = vmatpush.bf16.msra.mxu0 %v947
        %1153 = vmatpush.bf16.msra.mxu0 %v943
        %1154 = vmatpush.bf16.msra.mxu0 %v939
        %1155 = vmatpush.bf16.msra.mxu0 %v935
        %1156 = vmatpush.bf16.msra.mxu0 %v931
        %1157 = vmatpush.bf16.msra.mxu0 %v927
        %1158 = vmatpush.bf16.msra.mxu0 %v923
        %1159 = vmatpush.bf16.msra.mxu0 %v919
        %1160 = vmatmul.bf16.gmra.mxu0 %v1112
        %v1161 = vpop.f32.mrf.mxu0
        %v1162 = vadd.f32 0.0, %v1161
        %v1163 = vpop.f32.mrf.mxu0
        %1164 = vdwg.mxu0
        %v1165 = vadd.f32 %v1108, %v1123
        %v1166 = vadd.f32 %v1109, %v1136
        %v1167 = vadd.f32 %v1110, %v1149
        %v1168 = vadd.f32 %v1111, %v1162
        %v1169 = vxor.u32 %v1165, 2147483648
        %v1170 = vmul.f32 %v1169, 1.442695
        %v1171 = vpow.pop %v1170
        %v1172 = vadd.f32 %v1171, 1.0
        %v1173 = vrcp.pop %v1172
        %v1174 = vmul.f32 %v1172, %v1173
        %v1175 = vsub.f32 1.0, %v1174
        %v1176 = vmul.f32 %v1173, %v1175
        %v1177 = vadd.f32 %v1173, %v1176
        %vm1178 = vweird.f32 %v1172
        %vm1179 = vweird.f32 %v1173
        %vm1180 = vmor %vm1178, %vm1179
        %v1181 = vsel %vm1180, %v1173, %v1177
        %v1182 = vand.u32 2147483647, %v1172
        %vm1183 = vcmp.eq.f32.partialorder %v1182, 8.507059e+37
        %v1184 = vand.u32 %v1172, 2147483648
        %v1185 = vor.u32 1.1754944e-38, %v1184
        %v1186 = vsel %vm1183, %v1185, %v1181
        %v1187 = vmul.f32 1.0, %v1186
        %v1188 = vxor.u32 %v1166, 2147483648
        %v1189 = vmul.f32 %v1188, 1.442695
        %v1190 = vpow.pop %v1189
        %v1191 = vadd.f32 %v1190, 1.0
        %v1192 = vrcp.pop %v1191
        %v1193 = vmul.f32 %v1191, %v1192
        %v1194 = vsub.f32 1.0, %v1193
        %v1195 = vmul.f32 %v1192, %v1194
        %v1196 = vadd.f32 %v1192, %v1195
        %vm1197 = vweird.f32 %v1191
        %vm1198 = vweird.f32 %v1192
        %vm1199 = vmor %vm1197, %vm1198
        %v1200 = vsel %vm1199, %v1192, %v1196
        %v1201 = vand.u32 2147483647, %v1191
        %vm1202 = vcmp.eq.f32.partialorder %v1201, 8.507059e+37
        %v1203 = vand.u32 %v1191, 2147483648
        %v1204 = vor.u32 1.1754944e-38, %v1203
        %v1205 = vsel %vm1202, %v1204, %v1200
        %v1206 = vmul.f32 1.0, %v1205
        %v1207 = vtanh.pop %v1167
        %v1208 = vxor.u32 %v1168, 2147483648
        %v1209 = vmul.f32 %v1208, 1.442695
        %v1210 = vpow.pop %v1209
        %v1211 = vadd.f32 %v1210, 1.0
        %v1212 = vrcp.pop %v1211
        %v1213 = vmul.f32 %v1211, %v1212
        %v1214 = vsub.f32 1.0, %v1213
        %v1215 = vmul.f32 %v1212, %v1214
        %v1216 = vadd.f32 %v1212, %v1215
        %vm1217 = vweird.f32 %v1211
        %vm1218 = vweird.f32 %v1212
        %vm1219 = vmor %vm1217, %vm1218
        %v1220 = vsel %vm1219, %v1212, %v1216
        %v1221 = vand.u32 2147483647, %v1211
        %vm1222 = vcmp.eq.f32.partialorder %v1221, 8.507059e+37
        %v1223 = vand.u32 %v1211, 2147483648
        %v1224 = vor.u32 1.1754944e-38, %v1223
        %v1225 = vsel %vm1222, %v1224, %v1220
        %v1226 = vmul.f32 1.0, %v1225
        %v1227 = vmul.f32 %v1206, %v1096
        %v1228 = vmul.f32 %v1187, %v1207
        %v1229 = vadd.f32 %v1227, %v1228
        %v1230 = vtanh.pop %v1229
        %v1231 = vmul.f32 %v1226, %v1230
        %s1232 = smul.u32 %s1104, 8
        %s1233 = scalar_lea.vmem %s376, %s1232 [#allocation13]
        %1234 = vst [vmem:[%s1233] sm:$0xff] %v1231
        %s1235 = smul.u32 %s1102, 2
        %s1236 = smul.u32 %s31, 5
        %s1237 = sadd.s32 %s1235, %s1236
        %s1238 = smul.u32 %s1237, 4
        %s1239 = smul.addr %s1238, 8
        %s1240 = scalar_lea.vmem [#allocation4], %s1239
        %v1241 = vld [vmem:[%s1240] sm:$0xff]
        %v1242 = vld [vmem:[%s1240 + $0x8] sm:$0xff]
        %v1243 = vld [vmem:[%s1240 + $0x10] sm:$0xff]
        %v1244 = vld [vmem:[%s1240 + $0x18] sm:$0xff]
        %v1245 = vpack.c.bf16 %v1231, %v1231
        %1246 = vmatpush.bf16.msra.mxu0 %v944
        %1247 = vmatpush.bf16.msra.mxu0 %v940
        %1248 = vmatpush.bf16.msra.mxu0 %v936
        %1249 = vmatpush.bf16.msra.mxu0 %v932
        %1250 = vmatpush.bf16.msra.mxu0 %v928
        %1251 = vmatpush.bf16.msra.mxu0 %v924
        %1252 = vmatpush.bf16.msra.mxu0 %v920
        %1253 = vmatpush.bf16.msra.mxu0 %v916
        %1254 = vmatmul.bf16.gmra.mxu0 %v1245
        %v1255 = vpop.f32.mrf.mxu0
        %v1256 = vadd.f32 0.0, %v1255
        %v1257 = vpop.f32.mrf.mxu0
        %1258 = vdwg.mxu0
        %1259 = vmatpush.bf16.msra.mxu0 %v945
        %1260 = vmatpush.bf16.msra.mxu0 %v941
        %1261 = vmatpush.bf16.msra.mxu0 %v937
        %1262 = vmatpush.bf16.msra.mxu0 %v933
        %1263 = vmatpush.bf16.msra.mxu0 %v929
        %1264 = vmatpush.bf16.msra.mxu0 %v925
        %1265 = vmatpush.bf16.msra.mxu0 %v921
        %1266 = vmatpush.bf16.msra.mxu0 %v917
        %1267 = vmatmul.bf16.gmra.mxu0 %v1245
        %v1268 = vpop.f32.mrf.mxu0
        %v1269 = vadd.f32 0.0, %v1268
        %v1270 = vpop.f32.mrf.mxu0
        %1271 = vdwg.mxu0
        %1272 = vmatpush.bf16.msra.mxu0 %v946
        %1273 = vmatpush.bf16.msra.mxu0 %v942
        %1274 = vmatpush.bf16.msra.mxu0 %v938
        %1275 = vmatpush.bf16.msra.mxu0 %v934
        %1276 = vmatpush.bf16.msra.mxu0 %v930
        %1277 = vmatpush.bf16.msra.mxu0 %v926
        %1278 = vmatpush.bf16.msra.mxu0 %v922
        %1279 = vmatpush.bf16.msra.mxu0 %v918
        %1280 = vmatmul.bf16.gmra.mxu0 %v1245
        %v1281 = vpop.f32.mrf.mxu0
        %v1282 = vadd.f32 0.0, %v1281
        %v1283 = vpop.f32.mrf.mxu0
        %1284 = vdwg.mxu0
        %1285 = vmatpush.bf16.msra.mxu0 %v947
        %1286 = vmatpush.bf16.msra.mxu0 %v943
        %1287 = vmatpush.bf16.msra.mxu0 %v939
        %1288 = vmatpush.bf16.msra.mxu0 %v935
        %1289 = vmatpush.bf16.msra.mxu0 %v931
        %1290 = vmatpush.bf16.msra.mxu0 %v927
        %1291 = vmatpush.bf16.msra.mxu0 %v923
        %1292 = vmatpush.bf16.msra.mxu0 %v919
        %1293 = vmatmul.bf16.gmra.mxu0 %v1245
        %v1294 = vpop.f32.mrf.mxu0
        %v1295 = vadd.f32 0.0, %v1294
        %v1296 = vpop.f32.mrf.mxu0
        %1297 = vdwg.mxu0
        %v1298 = vadd.f32 %v1241, %v1256
        %v1299 = vadd.f32 %v1242, %v1269
        %v1300 = vadd.f32 %v1243, %v1282
        %v1301 = vadd.f32 %v1244, %v1295
        %v1302 = vxor.u32 %v1298, 2147483648
        %v1303 = vmul.f32 %v1302, 1.442695
        %v1304 = vpow.pop %v1303
        %v1305 = vadd.f32 %v1304, 1.0
        %v1306 = vrcp.pop %v1305
        %v1307 = vmul.f32 %v1305, %v1306
        %v1308 = vsub.f32 1.0, %v1307
        %v1309 = vmul.f32 %v1306, %v1308
        %v1310 = vadd.f32 %v1306, %v1309
        %vm1311 = vweird.f32 %v1305
        %vm1312 = vweird.f32 %v1306
        %vm1313 = vmor %vm1311, %vm1312
        %v1314 = vsel %vm1313, %v1306, %v1310
        %v1315 = vand.u32 2147483647, %v1305
        %vm1316 = vcmp.eq.f32.partialorder %v1315, 8.507059e+37
        %v1317 = vand.u32 %v1305, 2147483648
        %v1318 = vor.u32 1.1754944e-38, %v1317
        %v1319 = vsel %vm1316, %v1318, %v1314
        %v1320 = vmul.f32 1.0, %v1319
        %v1321 = vxor.u32 %v1299, 2147483648
        %v1322 = vmul.f32 %v1321, 1.442695
        %v1323 = vpow.pop %v1322
        %v1324 = vadd.f32 %v1323, 1.0
        %v1325 = vrcp.pop %v1324
        %v1326 = vmul.f32 %v1324, %v1325
        %v1327 = vsub.f32 1.0, %v1326
        %v1328 = vmul.f32 %v1325, %v1327
        %v1329 = vadd.f32 %v1325, %v1328
        %vm1330 = vweird.f32 %v1324
        %vm1331 = vweird.f32 %v1325
        %vm1332 = vmor %vm1330, %vm1331
        %v1333 = vsel %vm1332, %v1325, %v1329
        %v1334 = vand.u32 2147483647, %v1324
        %vm1335 = vcmp.eq.f32.partialorder %v1334, 8.507059e+37
        %v1336 = vand.u32 %v1324, 2147483648
        %v1337 = vor.u32 1.1754944e-38, %v1336
        %v1338 = vsel %vm1335, %v1337, %v1333
        %v1339 = vmul.f32 1.0, %v1338
        %v1340 = vtanh.pop %v1300
        %v1341 = vxor.u32 %v1301, 2147483648
        %v1342 = vmul.f32 %v1341, 1.442695
        %v1343 = vpow.pop %v1342
        %v1344 = vadd.f32 %v1343, 1.0
        %v1345 = vrcp.pop %v1344
        %v1346 = vmul.f32 %v1344, %v1345
        %v1347 = vsub.f32 1.0, %v1346
        %v1348 = vmul.f32 %v1345, %v1347
        %v1349 = vadd.f32 %v1345, %v1348
        %vm1350 = vweird.f32 %v1344
        %vm1351 = vweird.f32 %v1345
        %vm1352 = vmor %vm1350, %vm1351
        %v1353 = vsel %vm1352, %v1345, %v1349
        %v1354 = vand.u32 2147483647, %v1344
        %vm1355 = vcmp.eq.f32.partialorder %v1354, 8.507059e+37
        %v1356 = vand.u32 %v1344, 2147483648
        %v1357 = vor.u32 1.1754944e-38, %v1356
        %v1358 = vsel %vm1355, %v1357, %v1353
        %v1359 = vmul.f32 1.0, %v1358
        %v1360 = vmul.f32 %v1339, %v1229
        %v1361 = vmul.f32 %v1320, %v1340
        %v1362 = vadd.f32 %v1360, %v1361
        %v1363 = vtanh.pop %v1362
        %v1364 = vmul.f32 %v1359, %v1363
        %s1365 = smul.u32 %s1237, 8
        %s1366 = scalar_lea.vmem %s376, %s1365 [#allocation13]
        %1367 = vst [vmem:[%s1366] sm:$0xff] %v1364
        %s1368 = smul.u32 %s1102, 3
        %s1369 = smul.u32 %s31, 4
        %s1370 = sadd.s32 %s1368, %s1369
        %s1371 = smul.u32 %s1370, 4
        %s1372 = smul.addr %s1371, 8
        %s1373 = scalar_lea.vmem [#allocation4], %s1372
        %v1374 = vld [vmem:[%s1373] sm:$0xff]
        %v1375 = vld [vmem:[%s1373 + $0x8] sm:$0xff]
        %v1376 = vld [vmem:[%s1373 + $0x10] sm:$0xff]
        %v1377 = vld [vmem:[%s1373 + $0x18] sm:$0xff]
        %v1378 = vpack.c.bf16 %v1364, %v1364
        %1379 = vmatpush.bf16.msra.mxu0 %v944
        %1380 = vmatpush.bf16.msra.mxu0 %v940
        %1381 = vmatpush.bf16.msra.mxu0 %v936
        %1382 = vmatpush.bf16.msra.mxu0 %v932
        %1383 = vmatpush.bf16.msra.mxu0 %v928
        %1384 = vmatpush.bf16.msra.mxu0 %v924
        %1385 = vmatpush.bf16.msra.mxu0 %v920
        %1386 = vmatpush.bf16.msra.mxu0 %v916
        %1387 = vmatmul.bf16.gmra.mxu0 %v1378
        %v1388 = vpop.f32.mrf.mxu0
        %v1389 = vadd.f32 0.0, %v1388
        %v1390 = vpop.f32.mrf.mxu0
        %1391 = vdwg.mxu0
        %1392 = vmatpush.bf16.msra.mxu0 %v945
        %1393 = vmatpush.bf16.msra.mxu0 %v941
        %1394 = vmatpush.bf16.msra.mxu0 %v937
        %1395 = vmatpush.bf16.msra.mxu0 %v933
        %1396 = vmatpush.bf16.msra.mxu0 %v929
        %1397 = vmatpush.bf16.msra.mxu0 %v925
        %1398 = vmatpush.bf16.msra.mxu0 %v921
        %1399 = vmatpush.bf16.msra.mxu0 %v917
        %1400 = vmatmul.bf16.gmra.mxu0 %v1378
        %v1401 = vpop.f32.mrf.mxu0
        %v1402 = vadd.f32 0.0, %v1401
        %v1403 = vpop.f32.mrf.mxu0
        %1404 = vdwg.mxu0
        %1405 = vmatpush.bf16.msra.mxu0 %v946
        %1406 = vmatpush.bf16.msra.mxu0 %v942
        %1407 = vmatpush.bf16.msra.mxu0 %v938
        %1408 = vmatpush.bf16.msra.mxu0 %v934
        %1409 = vmatpush.bf16.msra.mxu0 %v930
        %1410 = vmatpush.bf16.msra.mxu0 %v926
        %1411 = vmatpush.bf16.msra.mxu0 %v922
        %1412 = vmatpush.bf16.msra.mxu0 %v918
        %1413 = vmatmul.bf16.gmra.mxu0 %v1378
        %v1414 = vpop.f32.mrf.mxu0
        %v1415 = vadd.f32 0.0, %v1414
        %v1416 = vpop.f32.mrf.mxu0
        %1417 = vdwg.mxu0
        %1418 = vmatpush.bf16.msra.mxu0 %v947
        %1419 = vmatpush.bf16.msra.mxu0 %v943
        %1420 = vmatpush.bf16.msra.mxu0 %v939
        %1421 = vmatpush.bf16.msra.mxu0 %v935
        %1422 = vmatpush.bf16.msra.mxu0 %v931
        %1423 = vmatpush.bf16.msra.mxu0 %v927
        %1424 = vmatpush.bf16.msra.mxu0 %v923
        %1425 = vmatpush.bf16.msra.mxu0 %v919
        %1426 = vmatmul.bf16.gmra.mxu0 %v1378
        %v1427 = vpop.f32.mrf.mxu0
        %v1428 = vadd.f32 0.0, %v1427
        %v1429 = vpop.f32.mrf.mxu0
        %1430 = vdwg.mxu0
        %v1431 = vadd.f32 %v1374, %v1389
        %v1432 = vadd.f32 %v1375, %v1402
        %v1433 = vadd.f32 %v1376, %v1415
        %v1434 = vadd.f32 %v1377, %v1428
        %v1435 = vxor.u32 %v1431, 2147483648
        %v1436 = vmul.f32 %v1435, 1.442695
        %v1437 = vpow.pop %v1436
        %v1438 = vadd.f32 %v1437, 1.0
        %v1439 = vrcp.pop %v1438
        %v1440 = vmul.f32 %v1438, %v1439
        %v1441 = vsub.f32 1.0, %v1440
        %v1442 = vmul.f32 %v1439, %v1441
        %v1443 = vadd.f32 %v1439, %v1442
        %vm1444 = vweird.f32 %v1438
        %vm1445 = vweird.f32 %v1439
        %vm1446 = vmor %vm1444, %vm1445
        %v1447 = vsel %vm1446, %v1439, %v1443
        %v1448 = vand.u32 2147483647, %v1438
        %vm1449 = vcmp.eq.f32.partialorder %v1448, 8.507059e+37
        %v1450 = vand.u32 %v1438, 2147483648
        %v1451 = vor.u32 1.1754944e-38, %v1450
        %v1452 = vsel %vm1449, %v1451, %v1447
        %v1453 = vmul.f32 1.0, %v1452
        %v1454 = vxor.u32 %v1432, 2147483648
        %v1455 = vmul.f32 %v1454, 1.442695
        %v1456 = vpow.pop %v1455
        %v1457 = vadd.f32 %v1456, 1.0
        %v1458 = vrcp.pop %v1457
        %v1459 = vmul.f32 %v1457, %v1458
        %v1460 = vsub.f32 1.0, %v1459
        %v1461 = vmul.f32 %v1458, %v1460
        %v1462 = vadd.f32 %v1458, %v1461
        %vm1463 = vweird.f32 %v1457
        %vm1464 = vweird.f32 %v1458
        %vm1465 = vmor %vm1463, %vm1464
        %v1466 = vsel %vm1465, %v1458, %v1462
        %v1467 = vand.u32 2147483647, %v1457
        %vm1468 = vcmp.eq.f32.partialorder %v1467, 8.507059e+37
        %v1469 = vand.u32 %v1457, 2147483648
        %v1470 = vor.u32 1.1754944e-38, %v1469
        %v1471 = vsel %vm1468, %v1470, %v1466
        %v1472 = vmul.f32 1.0, %v1471
        %v1473 = vtanh.pop %v1433
        %v1474 = vxor.u32 %v1434, 2147483648
        %v1475 = vmul.f32 %v1474, 1.442695
        %v1476 = vpow.pop %v1475
        %v1477 = vadd.f32 %v1476, 1.0
        %v1478 = vrcp.pop %v1477
        %v1479 = vmul.f32 %v1477, %v1478
        %v1480 = vsub.f32 1.0, %v1479
        %v1481 = vmul.f32 %v1478, %v1480
        %v1482 = vadd.f32 %v1478, %v1481
        %vm1483 = vweird.f32 %v1477
        %vm1484 = vweird.f32 %v1478
        %vm1485 = vmor %vm1483, %vm1484
        %v1486 = vsel %vm1485, %v1478, %v1482
        %v1487 = vand.u32 2147483647, %v1477
        %vm1488 = vcmp.eq.f32.partialorder %v1487, 8.507059e+37
        %v1489 = vand.u32 %v1477, 2147483648
        %v1490 = vor.u32 1.1754944e-38, %v1489
        %v1491 = vsel %vm1488, %v1490, %v1486
        %v1492 = vmul.f32 1.0, %v1491
        %v1493 = vmul.f32 %v1472, %v1362
        %v1494 = vmul.f32 %v1453, %v1473
        %v1495 = vadd.f32 %v1493, %v1494
        %v1496 = vtanh.pop %v1495
        %v1497 = vmul.f32 %v1492, %v1496
        %s1498 = smul.u32 %s1370, 8
        %s1499 = scalar_lea.vmem %s376, %s1498 [#allocation13]
        %1500 = vst [vmem:[%s1499] sm:$0xff] %v1497
        %s1501 = smul.u32 %s1102, 4
        %s1502 = smul.u32 %s31, 3
        %s1503 = sadd.s32 %s1501, %s1502
        %s1504 = smul.u32 %s1503, 4
        %s1505 = smul.addr %s1504, 8
        %s1506 = scalar_lea.vmem [#allocation4], %s1505
        %v1507 = vld [vmem:[%s1506] sm:$0xff]
        %v1508 = vld [vmem:[%s1506 + $0x8] sm:$0xff]
        %v1509 = vld [vmem:[%s1506 + $0x10] sm:$0xff]
        %v1510 = vld [vmem:[%s1506 + $0x18] sm:$0xff]
        %v1511 = vpack.c.bf16 %v1497, %v1497
        %1512 = vmatpush.bf16.msra.mxu0 %v944
        %1513 = vmatpush.bf16.msra.mxu0 %v940
        %1514 = vmatpush.bf16.msra.mxu0 %v936
        %1515 = vmatpush.bf16.msra.mxu0 %v932
        %1516 = vmatpush.bf16.msra.mxu0 %v928
        %1517 = vmatpush.bf16.msra.mxu0 %v924
        %1518 = vmatpush.bf16.msra.mxu0 %v920
        %1519 = vmatpush.bf16.msra.mxu0 %v916
        %1520 = vmatmul.bf16.gmra.mxu0 %v1511
        %v1521 = vpop.f32.mrf.mxu0
        %v1522 = vadd.f32 0.0, %v1521
        %v1523 = vpop.f32.mrf.mxu0
        %1524 = vdwg.mxu0
        %1525 = vmatpush.bf16.msra.mxu0 %v945
        %1526 = vmatpush.bf16.msra.mxu0 %v941
        %1527 = vmatpush.bf16.msra.mxu0 %v937
        %1528 = vmatpush.bf16.msra.mxu0 %v933
        %1529 = vmatpush.bf16.msra.mxu0 %v929
        %1530 = vmatpush.bf16.msra.mxu0 %v925
        %1531 = vmatpush.bf16.msra.mxu0 %v921
        %1532 = vmatpush.bf16.msra.mxu0 %v917
        %1533 = vmatmul.bf16.gmra.mxu0 %v1511
        %v1534 = vpop.f32.mrf.mxu0
        %v1535 = vadd.f32 0.0, %v1534
        %v1536 = vpop.f32.mrf.mxu0
        %1537 = vdwg.mxu0
        %1538 = vmatpush.bf16.msra.mxu0 %v946
        %1539 = vmatpush.bf16.msra.mxu0 %v942
        %1540 = vmatpush.bf16.msra.mxu0 %v938
        %1541 = vmatpush.bf16.msra.mxu0 %v934
        %1542 = vmatpush.bf16.msra.mxu0 %v930
        %1543 = vmatpush.bf16.msra.mxu0 %v926
        %1544 = vmatpush.bf16.msra.mxu0 %v922
        %1545 = vmatpush.bf16.msra.mxu0 %v918
        %1546 = vmatmul.bf16.gmra.mxu0 %v1511
        %v1547 = vpop.f32.mrf.mxu0
        %v1548 = vadd.f32 0.0, %v1547
        %v1549 = vpop.f32.mrf.mxu0
        %1550 = vdwg.mxu0
        %1551 = vmatpush.bf16.msra.mxu0 %v947
        %1552 = vmatpush.bf16.msra.mxu0 %v943
        %1553 = vmatpush.bf16.msra.mxu0 %v939
        %1554 = vmatpush.bf16.msra.mxu0 %v935
        %1555 = vmatpush.bf16.msra.mxu0 %v931
        %1556 = vmatpush.bf16.msra.mxu0 %v927
        %1557 = vmatpush.bf16.msra.mxu0 %v923
        %1558 = vmatpush.bf16.msra.mxu0 %v919
        %1559 = vmatmul.bf16.gmra.mxu0 %v1511
        %v1560 = vpop.f32.mrf.mxu0
        %v1561 = vadd.f32 0.0, %v1560
        %v1562 = vpop.f32.mrf.mxu0
        %1563 = vdwg.mxu0
        %v1564 = vadd.f32 %v1507, %v1522
        %v1565 = vadd.f32 %v1508, %v1535
        %v1566 = vadd.f32 %v1509, %v1548
        %v1567 = vadd.f32 %v1510, %v1561
        %v1568 = vxor.u32 %v1564, 2147483648
        %v1569 = vmul.f32 %v1568, 1.442695
        %v1570 = vpow.pop %v1569
        %v1571 = vadd.f32 %v1570, 1.0
        %v1572 = vrcp.pop %v1571
        %v1573 = vmul.f32 %v1571, %v1572
        %v1574 = vsub.f32 1.0, %v1573
        %v1575 = vmul.f32 %v1572, %v1574
        %v1576 = vadd.f32 %v1572, %v1575
        %vm1577 = vweird.f32 %v1571
        %vm1578 = vweird.f32 %v1572
        %vm1579 = vmor %vm1577, %vm1578
        %v1580 = vsel %vm1579, %v1572, %v1576
        %v1581 = vand.u32 2147483647, %v1571
        %vm1582 = vcmp.eq.f32.partialorder %v1581, 8.507059e+37
        %v1583 = vand.u32 %v1571, 2147483648
        %v1584 = vor.u32 1.1754944e-38, %v1583
        %v1585 = vsel %vm1582, %v1584, %v1580
        %v1586 = vmul.f32 1.0, %v1585
        %v1587 = vxor.u32 %v1565, 2147483648
        %v1588 = vmul.f32 %v1587, 1.442695
        %v1589 = vpow.pop %v1588
        %v1590 = vadd.f32 %v1589, 1.0
        %v1591 = vrcp.pop %v1590
        %v1592 = vmul.f32 %v1590, %v1591
        %v1593 = vsub.f32 1.0, %v1592
        %v1594 = vmul.f32 %v1591, %v1593
        %v1595 = vadd.f32 %v1591, %v1594
        %vm1596 = vweird.f32 %v1590
        %vm1597 = vweird.f32 %v1591
        %vm1598 = vmor %vm1596, %vm1597
        %v1599 = vsel %vm1598, %v1591, %v1595
        %v1600 = vand.u32 2147483647, %v1590
        %vm1601 = vcmp.eq.f32.partialorder %v1600, 8.507059e+37
        %v1602 = vand.u32 %v1590, 2147483648
        %v1603 = vor.u32 1.1754944e-38, %v1602
        %v1604 = vsel %vm1601, %v1603, %v1599
        %v1605 = vmul.f32 1.0, %v1604
        %v1606 = vtanh.pop %v1566
        %v1607 = vxor.u32 %v1567, 2147483648
        %v1608 = vmul.f32 %v1607, 1.442695
        %v1609 = vpow.pop %v1608
        %v1610 = vadd.f32 %v1609, 1.0
        %v1611 = vrcp.pop %v1610
        %v1612 = vmul.f32 %v1610, %v1611
        %v1613 = vsub.f32 1.0, %v1612
        %v1614 = vmul.f32 %v1611, %v1613
        %v1615 = vadd.f32 %v1611, %v1614
        %vm1616 = vweird.f32 %v1610
        %vm1617 = vweird.f32 %v1611
        %vm1618 = vmor %vm1616, %vm1617
        %v1619 = vsel %vm1618, %v1611, %v1615
        %v1620 = vand.u32 2147483647, %v1610
        %vm1621 = vcmp.eq.f32.partialorder %v1620, 8.507059e+37
        %v1622 = vand.u32 %v1610, 2147483648
        %v1623 = vor.u32 1.1754944e-38, %v1622
        %v1624 = vsel %vm1621, %v1623, %v1619
        %v1625 = vmul.f32 1.0, %v1624
        %v1626 = vmul.f32 %v1605, %v1495
        %v1627 = vmul.f32 %v1586, %v1606
        %v1628 = vadd.f32 %v1626, %v1627
        %v1629 = vtanh.pop %v1628
        %v1630 = vmul.f32 %v1625, %v1629
        %s1631 = smul.u32 %s1503, 8
        %s1632 = scalar_lea.vmem %s376, %s1631 [#allocation13]
        %1633 = vst [vmem:[%s1632] sm:$0xff] %v1630
        %s1634 = smul.u32 %s1102, 5
        %s1635 = smul.u32 %s31, 2
        %s1636 = sadd.s32 %s1634, %s1635
        %s1637 = smul.u32 %s1636, 4
        %s1638 = smul.addr %s1637, 8
        %s1639 = scalar_lea.vmem [#allocation4], %s1638
        %v1640 = vld [vmem:[%s1639] sm:$0xff]
        %v1641 = vld [vmem:[%s1639 + $0x8] sm:$0xff]
        %v1642 = vld [vmem:[%s1639 + $0x10] sm:$0xff]
        %v1643 = vld [vmem:[%s1639 + $0x18] sm:$0xff]
        %v1644 = vpack.c.bf16 %v1630, %v1630
        %1645 = vmatpush.bf16.msra.mxu0 %v944
        %1646 = vmatpush.bf16.msra.mxu0 %v940
        %1647 = vmatpush.bf16.msra.mxu0 %v936
        %1648 = vmatpush.bf16.msra.mxu0 %v932
        %1649 = vmatpush.bf16.msra.mxu0 %v928
        %1650 = vmatpush.bf16.msra.mxu0 %v924
        %1651 = vmatpush.bf16.msra.mxu0 %v920
        %1652 = vmatpush.bf16.msra.mxu0 %v916
        %1653 = vmatmul.bf16.gmra.mxu0 %v1644
        %v1654 = vpop.f32.mrf.mxu0
        %v1655 = vadd.f32 0.0, %v1654
        %v1656 = vpop.f32.mrf.mxu0
        %1657 = vdwg.mxu0
        %1658 = vmatpush.bf16.msra.mxu0 %v945
        %1659 = vmatpush.bf16.msra.mxu0 %v941
        %1660 = vmatpush.bf16.msra.mxu0 %v937
        %1661 = vmatpush.bf16.msra.mxu0 %v933
        %1662 = vmatpush.bf16.msra.mxu0 %v929
        %1663 = vmatpush.bf16.msra.mxu0 %v925
        %1664 = vmatpush.bf16.msra.mxu0 %v921
        %1665 = vmatpush.bf16.msra.mxu0 %v917
        %1666 = vmatmul.bf16.gmra.mxu0 %v1644
        %v1667 = vpop.f32.mrf.mxu0
        %v1668 = vadd.f32 0.0, %v1667
        %v1669 = vpop.f32.mrf.mxu0
        %1670 = vdwg.mxu0
        %1671 = vmatpush.bf16.msra.mxu0 %v946
        %1672 = vmatpush.bf16.msra.mxu0 %v942
        %1673 = vmatpush.bf16.msra.mxu0 %v938
        %1674 = vmatpush.bf16.msra.mxu0 %v934
        %1675 = vmatpush.bf16.msra.mxu0 %v930
        %1676 = vmatpush.bf16.msra.mxu0 %v926
        %1677 = vmatpush.bf16.msra.mxu0 %v922
        %1678 = vmatpush.bf16.msra.mxu0 %v918
        %1679 = vmatmul.bf16.gmra.mxu0 %v1644
        %v1680 = vpop.f32.mrf.mxu0
        %v1681 = vadd.f32 0.0, %v1680
        %v1682 = vpop.f32.mrf.mxu0
        %1683 = vdwg.mxu0
        %1684 = vmatpush.bf16.msra.mxu0 %v947
        %1685 = vmatpush.bf16.msra.mxu0 %v943
        %1686 = vmatpush.bf16.msra.mxu0 %v939
        %1687 = vmatpush.bf16.msra.mxu0 %v935
        %1688 = vmatpush.bf16.msra.mxu0 %v931
        %1689 = vmatpush.bf16.msra.mxu0 %v927
        %1690 = vmatpush.bf16.msra.mxu0 %v923
        %1691 = vmatpush.bf16.msra.mxu0 %v919
        %1692 = vmatmul.bf16.gmra.mxu0 %v1644
        %v1693 = vpop.f32.mrf.mxu0
        %v1694 = vadd.f32 0.0, %v1693
        %v1695 = vpop.f32.mrf.mxu0
        %1696 = vdwg.mxu0
        %v1697 = vadd.f32 %v1640, %v1655
        %v1698 = vadd.f32 %v1641, %v1668
        %v1699 = vadd.f32 %v1642, %v1681
        %v1700 = vadd.f32 %v1643, %v1694
        %v1701 = vxor.u32 %v1697, 2147483648
        %v1702 = vmul.f32 %v1701, 1.442695
        %v1703 = vpow.pop %v1702
        %v1704 = vadd.f32 %v1703, 1.0
        %v1705 = vrcp.pop %v1704
        %v1706 = vmul.f32 %v1704, %v1705
        %v1707 = vsub.f32 1.0, %v1706
        %v1708 = vmul.f32 %v1705, %v1707
        %v1709 = vadd.f32 %v1705, %v1708
        %vm1710 = vweird.f32 %v1704
        %vm1711 = vweird.f32 %v1705
        %vm1712 = vmor %vm1710, %vm1711
        %v1713 = vsel %vm1712, %v1705, %v1709
        %v1714 = vand.u32 2147483647, %v1704
        %vm1715 = vcmp.eq.f32.partialorder %v1714, 8.507059e+37
        %v1716 = vand.u32 %v1704, 2147483648
        %v1717 = vor.u32 1.1754944e-38, %v1716
        %v1718 = vsel %vm1715, %v1717, %v1713
        %v1719 = vmul.f32 1.0, %v1718
        %v1720 = vxor.u32 %v1698, 2147483648
        %v1721 = vmul.f32 %v1720, 1.442695
        %v1722 = vpow.pop %v1721
        %v1723 = vadd.f32 %v1722, 1.0
        %v1724 = vrcp.pop %v1723
        %v1725 = vmul.f32 %v1723, %v1724
        %v1726 = vsub.f32 1.0, %v1725
        %v1727 = vmul.f32 %v1724, %v1726
        %v1728 = vadd.f32 %v1724, %v1727
        %vm1729 = vweird.f32 %v1723
        %vm1730 = vweird.f32 %v1724
        %vm1731 = vmor %vm1729, %vm1730
        %v1732 = vsel %vm1731, %v1724, %v1728
        %v1733 = vand.u32 2147483647, %v1723
        %vm1734 = vcmp.eq.f32.partialorder %v1733, 8.507059e+37
        %v1735 = vand.u32 %v1723, 2147483648
        %v1736 = vor.u32 1.1754944e-38, %v1735
        %v1737 = vsel %vm1734, %v1736, %v1732
        %v1738 = vmul.f32 1.0, %v1737
        %v1739 = vtanh.pop %v1699
        %v1740 = vxor.u32 %v1700, 2147483648
        %v1741 = vmul.f32 %v1740, 1.442695
        %v1742 = vpow.pop %v1741
        %v1743 = vadd.f32 %v1742, 1.0
        %v1744 = vrcp.pop %v1743
        %v1745 = vmul.f32 %v1743, %v1744
        %v1746 = vsub.f32 1.0, %v1745
        %v1747 = vmul.f32 %v1744, %v1746
        %v1748 = vadd.f32 %v1744, %v1747
        %vm1749 = vweird.f32 %v1743
        %vm1750 = vweird.f32 %v1744
        %vm1751 = vmor %vm1749, %vm1750
        %v1752 = vsel %vm1751, %v1744, %v1748
        %v1753 = vand.u32 2147483647, %v1743
        %vm1754 = vcmp.eq.f32.partialorder %v1753, 8.507059e+37
        %v1755 = vand.u32 %v1743, 2147483648
        %v1756 = vor.u32 1.1754944e-38, %v1755
        %v1757 = vsel %vm1754, %v1756, %v1752
        %v1758 = vmul.f32 1.0, %v1757
        %v1759 = vmul.f32 %v1738, %v1628
        %v1760 = vmul.f32 %v1719, %v1739
        %v1761 = vadd.f32 %v1759, %v1760
        %v1762 = vtanh.pop %v1761
        %v1763 = vmul.f32 %v1758, %v1762
        %s1764 = smul.u32 %s1636, 8
        %s1765 = scalar_lea.vmem %s376, %s1764 [#allocation13]
        %1766 = vst [vmem:[%s1765] sm:$0xff] %v1763
        %s1767 = smul.u32 %s1102, 6
        %s1768 = sadd.s32 %s1767, %s31
        %s1769 = smul.u32 %s1768, 4
        %s1770 = smul.addr %s1769, 8
        %s1771 = scalar_lea.vmem [#allocation4], %s1770
        %v1772 = vld [vmem:[%s1771] sm:$0xff]
        %v1773 = vld [vmem:[%s1771 + $0x8] sm:$0xff]
        %v1774 = vld [vmem:[%s1771 + $0x10] sm:$0xff]
        %v1775 = vld [vmem:[%s1771 + $0x18] sm:$0xff]
        %v1776 = vpack.c.bf16 %v1763, %v1763
        %1777 = vmatpush.bf16.msra.mxu0 %v944
        %1778 = vmatpush.bf16.msra.mxu0 %v940
        %1779 = vmatpush.bf16.msra.mxu0 %v936
        %1780 = vmatpush.bf16.msra.mxu0 %v932
        %1781 = vmatpush.bf16.msra.mxu0 %v928
        %1782 = vmatpush.bf16.msra.mxu0 %v924
        %1783 = vmatpush.bf16.msra.mxu0 %v920
        %1784 = vmatpush.bf16.msra.mxu0 %v916
        %1785 = vmatmul.bf16.gmra.mxu0 %v1776
        %v1786 = vpop.f32.mrf.mxu0
        %v1787 = vadd.f32 0.0, %v1786
        %v1788 = vpop.f32.mrf.mxu0
        %1789 = vdwg.mxu0
        %1790 = vmatpush.bf16.msra.mxu0 %v945
        %1791 = vmatpush.bf16.msra.mxu0 %v941
        %1792 = vmatpush.bf16.msra.mxu0 %v937
        %1793 = vmatpush.bf16.msra.mxu0 %v933
        %1794 = vmatpush.bf16.msra.mxu0 %v929
        %1795 = vmatpush.bf16.msra.mxu0 %v925
        %1796 = vmatpush.bf16.msra.mxu0 %v921
        %1797 = vmatpush.bf16.msra.mxu0 %v917
        %1798 = vmatmul.bf16.gmra.mxu0 %v1776
        %v1799 = vpop.f32.mrf.mxu0
        %v1800 = vadd.f32 0.0, %v1799
        %v1801 = vpop.f32.mrf.mxu0
        %1802 = vdwg.mxu0
        %1803 = vmatpush.bf16.msra.mxu0 %v946
        %1804 = vmatpush.bf16.msra.mxu0 %v942
        %1805 = vmatpush.bf16.msra.mxu0 %v938
        %1806 = vmatpush.bf16.msra.mxu0 %v934
        %1807 = vmatpush.bf16.msra.mxu0 %v930
        %1808 = vmatpush.bf16.msra.mxu0 %v926
        %1809 = vmatpush.bf16.msra.mxu0 %v922
        %1810 = vmatpush.bf16.msra.mxu0 %v918
        %1811 = vmatmul.bf16.gmra.mxu0 %v1776
        %v1812 = vpop.f32.mrf.mxu0
        %v1813 = vadd.f32 0.0, %v1812
        %v1814 = vpop.f32.mrf.mxu0
        %1815 = vdwg.mxu0
        %1816 = vmatpush.bf16.msra.mxu0 %v947
        %1817 = vmatpush.bf16.msra.mxu0 %v943
        %1818 = vmatpush.bf16.msra.mxu0 %v939
        %1819 = vmatpush.bf16.msra.mxu0 %v935
        %1820 = vmatpush.bf16.msra.mxu0 %v931
        %1821 = vmatpush.bf16.msra.mxu0 %v927
        %1822 = vmatpush.bf16.msra.mxu0 %v923
        %1823 = vmatpush.bf16.msra.mxu0 %v919
        %1824 = vmatmul.bf16.gmra.mxu0 %v1776
        %v1825 = vpop.f32.mrf.mxu0
        %v1826 = vadd.f32 0.0, %v1825
        %v1827 = vpop.f32.mrf.mxu0
        %1828 = vdwg.mxu0
        %v1829 = vadd.f32 %v1772, %v1787
        %v1830 = vadd.f32 %v1773, %v1800
        %v1831 = vadd.f32 %v1774, %v1813
        %v1832 = vadd.f32 %v1775, %v1826
        %v1833 = vxor.u32 %v1829, 2147483648
        %v1834 = vmul.f32 %v1833, 1.442695
        %v1835 = vpow.pop %v1834
        %v1836 = vadd.f32 %v1835, 1.0
        %v1837 = vrcp.pop %v1836
        %v1838 = vmul.f32 %v1836, %v1837
        %v1839 = vsub.f32 1.0, %v1838
        %v1840 = vmul.f32 %v1837, %v1839
        %v1841 = vadd.f32 %v1837, %v1840
        %vm1842 = vweird.f32 %v1836
        %vm1843 = vweird.f32 %v1837
        %vm1844 = vmor %vm1842, %vm1843
        %v1845 = vsel %vm1844, %v1837, %v1841
        %v1846 = vand.u32 2147483647, %v1836
        %vm1847 = vcmp.eq.f32.partialorder %v1846, 8.507059e+37
        %v1848 = vand.u32 %v1836, 2147483648
        %v1849 = vor.u32 1.1754944e-38, %v1848
        %v1850 = vsel %vm1847, %v1849, %v1845
        %v1851 = vmul.f32 1.0, %v1850
        %v1852 = vxor.u32 %v1830, 2147483648
        %v1853 = vmul.f32 %v1852, 1.442695
        %v1854 = vpow.pop %v1853
        %v1855 = vadd.f32 %v1854, 1.0
        %v1856 = vrcp.pop %v1855
        %v1857 = vmul.f32 %v1855, %v1856
        %v1858 = vsub.f32 1.0, %v1857
        %v1859 = vmul.f32 %v1856, %v1858
        %v1860 = vadd.f32 %v1856, %v1859
        %vm1861 = vweird.f32 %v1855
        %vm1862 = vweird.f32 %v1856
        %vm1863 = vmor %vm1861, %vm1862
        %v1864 = vsel %vm1863, %v1856, %v1860
        %v1865 = vand.u32 2147483647, %v1855
        %vm1866 = vcmp.eq.f32.partialorder %v1865, 8.507059e+37
        %v1867 = vand.u32 %v1855, 2147483648
        %v1868 = vor.u32 1.1754944e-38, %v1867
        %v1869 = vsel %vm1866, %v1868, %v1864
        %v1870 = vmul.f32 1.0, %v1869
        %v1871 = vtanh.pop %v1831
        %v1872 = vxor.u32 %v1832, 2147483648
        %v1873 = vmul.f32 %v1872, 1.442695
        %v1874 = vpow.pop %v1873
        %v1875 = vadd.f32 %v1874, 1.0
        %v1876 = vrcp.pop %v1875
        %v1877 = vmul.f32 %v1875, %v1876
        %v1878 = vsub.f32 1.0, %v1877
        %v1879 = vmul.f32 %v1876, %v1878
        %v1880 = vadd.f32 %v1876, %v1879
        %vm1881 = vweird.f32 %v1875
        %vm1882 = vweird.f32 %v1876
        %vm1883 = vmor %vm1881, %vm1882
        %v1884 = vsel %vm1883, %v1876, %v1880
        %v1885 = vand.u32 2147483647, %v1875
        %vm1886 = vcmp.eq.f32.partialorder %v1885, 8.507059e+37
        %v1887 = vand.u32 %v1875, 2147483648
        %v1888 = vor.u32 1.1754944e-38, %v1887
        %v1889 = vsel %vm1886, %v1888, %v1884
        %v1890 = vmul.f32 1.0, %v1889
        %v1891 = vmul.f32 %v1870, %v1761
        %v1892 = vmul.f32 %v1851, %v1871
        %v1893 = vadd.f32 %v1891, %v1892
        %v1894 = vtanh.pop %v1893
        %v1895 = vmul.f32 %v1890, %v1894
        %s1896 = smul.u32 %s1768, 8
        %s1897 = scalar_lea.vmem %s376, %s1896 [#allocation13]
        %1898 = vst [vmem:[%s1897] sm:$0xff] %v1895
        %s1899 = smul.u32 %s1102, 7
        %s1900 = smul.u32 %s1899, 4
        %s1901 = smul.addr %s1900, 8
        %s1902 = scalar_lea.vmem [#allocation4], %s1901
        %v1903 = vld [vmem:[%s1902] sm:$0xff]
        %v1904 = vld [vmem:[%s1902 + $0x8] sm:$0xff]
        %v1905 = vld [vmem:[%s1902 + $0x10] sm:$0xff]
        %v1906 = vld [vmem:[%s1902 + $0x18] sm:$0xff]
        %v1907 = vpack.c.bf16 %v1895, %v1895
        %1908 = vmatpush.bf16.msra.mxu0 %v944
        %1909 = vmatpush.bf16.msra.mxu0 %v940
        %1910 = vmatpush.bf16.msra.mxu0 %v936
        %1911 = vmatpush.bf16.msra.mxu0 %v932
        %1912 = vmatpush.bf16.msra.mxu0 %v928
        %1913 = vmatpush.bf16.msra.mxu0 %v924
        %1914 = vmatpush.bf16.msra.mxu0 %v920
        %1915 = vmatpush.bf16.msra.mxu0 %v916
        %1916 = vmatmul.bf16.gmra.mxu0 %v1907
        %v1917 = vpop.f32.mrf.mxu0
        %v1918 = vadd.f32 0.0, %v1917
        %v1919 = vpop.f32.mrf.mxu0
        %1920 = vdwg.mxu0
        %1921 = vmatpush.bf16.msra.mxu0 %v945
        %1922 = vmatpush.bf16.msra.mxu0 %v941
        %1923 = vmatpush.bf16.msra.mxu0 %v937
        %1924 = vmatpush.bf16.msra.mxu0 %v933
        %1925 = vmatpush.bf16.msra.mxu0 %v929
        %1926 = vmatpush.bf16.msra.mxu0 %v925
        %1927 = vmatpush.bf16.msra.mxu0 %v921
        %1928 = vmatpush.bf16.msra.mxu0 %v917
        %1929 = vmatmul.bf16.gmra.mxu0 %v1907
        %v1930 = vpop.f32.mrf.mxu0
        %v1931 = vadd.f32 0.0, %v1930
        %v1932 = vpop.f32.mrf.mxu0
        %1933 = vdwg.mxu0
        %1934 = vmatpush.bf16.msra.mxu0 %v946
        %1935 = vmatpush.bf16.msra.mxu0 %v942
        %1936 = vmatpush.bf16.msra.mxu0 %v938
        %1937 = vmatpush.bf16.msra.mxu0 %v934
        %1938 = vmatpush.bf16.msra.mxu0 %v930
        %1939 = vmatpush.bf16.msra.mxu0 %v926
        %1940 = vmatpush.bf16.msra.mxu0 %v922
        %1941 = vmatpush.bf16.msra.mxu0 %v918
        %1942 = vmatmul.bf16.gmra.mxu0 %v1907
        %v1943 = vpop.f32.mrf.mxu0
        %v1944 = vadd.f32 0.0, %v1943
        %v1945 = vpop.f32.mrf.mxu0
        %1946 = vdwg.mxu0
        %1947 = vmatpush.bf16.msra.mxu0 %v947
        %1948 = vmatpush.bf16.msra.mxu0 %v943
        %1949 = vmatpush.bf16.msra.mxu0 %v939
        %1950 = vmatpush.bf16.msra.mxu0 %v935
        %1951 = vmatpush.bf16.msra.mxu0 %v931
        %1952 = vmatpush.bf16.msra.mxu0 %v927
        %1953 = vmatpush.bf16.msra.mxu0 %v923
        %1954 = vmatpush.bf16.msra.mxu0 %v919
        %1955 = vmatmul.bf16.gmra.mxu0 %v1907
        %v1956 = vpop.f32.mrf.mxu0
        %v1957 = vadd.f32 0.0, %v1956
        %v1958 = vpop.f32.mrf.mxu0
        %1959 = vdwg.mxu0
        %v1960 = vadd.f32 %v1903, %v1918
        %v1961 = vadd.f32 %v1904, %v1931
        %v1962 = vadd.f32 %v1905, %v1944
        %v1963 = vadd.f32 %v1906, %v1957
        %v1964 = vxor.u32 %v1960, 2147483648
        %v1965 = vmul.f32 %v1964, 1.442695
        %v1966 = vpow.pop %v1965
        %v1967 = vadd.f32 %v1966, 1.0
        %v1968 = vrcp.pop %v1967
        %v1969 = vmul.f32 %v1967, %v1968
        %v1970 = vsub.f32 1.0, %v1969
        %v1971 = vmul.f32 %v1968, %v1970
        %v1972 = vadd.f32 %v1968, %v1971
        %vm1973 = vweird.f32 %v1967
        %vm1974 = vweird.f32 %v1968
        %vm1975 = vmor %vm1973, %vm1974
        %v1976 = vsel %vm1975, %v1968, %v1972
        %v1977 = vand.u32 2147483647, %v1967
        %vm1978 = vcmp.eq.f32.partialorder %v1977, 8.507059e+37
        %v1979 = vand.u32 %v1967, 2147483648
        %v1980 = vor.u32 1.1754944e-38, %v1979
        %v1981 = vsel %vm1978, %v1980, %v1976
        %v1982 = vmul.f32 1.0, %v1981
        %v1983 = vxor.u32 %v1961, 2147483648
        %v1984 = vmul.f32 %v1983, 1.442695
        %v1985 = vpow.pop %v1984
        %v1986 = vadd.f32 %v1985, 1.0
        %v1987 = vrcp.pop %v1986
        %v1988 = vmul.f32 %v1986, %v1987
        %v1989 = vsub.f32 1.0, %v1988
        %v1990 = vmul.f32 %v1987, %v1989
        %v1991 = vadd.f32 %v1987, %v1990
        %vm1992 = vweird.f32 %v1986
        %vm1993 = vweird.f32 %v1987
        %vm1994 = vmor %vm1992, %vm1993
        %v1995 = vsel %vm1994, %v1987, %v1991
        %v1996 = vand.u32 2147483647, %v1986
        %vm1997 = vcmp.eq.f32.partialorder %v1996, 8.507059e+37
        %v1998 = vand.u32 %v1986, 2147483648
        %v1999 = vor.u32 1.1754944e-38, %v1998
        %v2000 = vsel %vm1997, %v1999, %v1995
        %v2001 = vmul.f32 1.0, %v2000
        %v2002 = vtanh.pop %v1962
        %v2003 = vxor.u32 %v1963, 2147483648
        %v2004 = vmul.f32 %v2003, 1.442695
        %v2005 = vpow.pop %v2004
        %v2006 = vadd.f32 %v2005, 1.0
        %v2007 = vrcp.pop %v2006
        %v2008 = vmul.f32 %v2006, %v2007
        %v2009 = vsub.f32 1.0, %v2008
        %v2010 = vmul.f32 %v2007, %v2009
        %v2011 = vadd.f32 %v2007, %v2010
        %vm2012 = vweird.f32 %v2006
        %vm2013 = vweird.f32 %v2007
        %vm2014 = vmor %vm2012, %vm2013
        %v2015 = vsel %vm2014, %v2007, %v2011
        %v2016 = vand.u32 2147483647, %v2006
        %vm2017 = vcmp.eq.f32.partialorder %v2016, 8.507059e+37
        %v2018 = vand.u32 %v2006, 2147483648
        %v2019 = vor.u32 1.1754944e-38, %v2018
        %v2020 = vsel %vm2017, %v2019, %v2015
        %v2021 = vmul.f32 1.0, %v2020
        %v2022 = vmul.f32 %v2001, %v1893
        %v2023 = vmul.f32 %v1982, %v2002
        %v2024 = vadd.f32 %v2022, %v2023
        %v2025 = vtanh.pop %v2024
        %v2026 = vmul.f32 %v2021, %v2025
        %s2027 = smul.u32 %s1899, 8
        %s2028 = scalar_lea.vmem %s376, %s2027 [#allocation13]
        %2029 = vst [vmem:[%s2028] sm:$0xff] %v2026
        %2030 = vst [vmem:[#allocation2] sm:$0xff] %v2026
        %2031 = vst [vmem:[#allocation3] sm:$0xff] %v2024
        %s2032 = sand.u32 %s173, 1
        %s2033 = scalar_lea.sflag [#allocation7], %s2032
        %s2034 = sand.u32 %s173, 1
        %s2035 = smul.addr %s2034, 64
        %s2036 = scalar_lea.vmem [#allocation13], %s2035
        // Predicated region
        $region57: #{tpu_custom_call.1} parent=35 // pred_check
          %p2037 = pneg %p183
        $region58: #{tpu_custom_call.1} parent=35 // pred_check_branch
          %2039 = sbr.rel (%p2037) target = $region60
        $region59: #{tpu_custom_call.1} parent=35 // pred_region
          %s2040 = ssub.s32 1, %s31
          %s2041 = smul.u32 %s32, %s2040
          %s2042 = ssub.s32 0, %s32
          %s2043 = smul.u32 %s2042, %s31
          %s2044 = sadd.s32 %s2041, %s2043
          %s2045 = smul.u32 8, %s2044
          %2047 = vsyncadd %s2033, 0
          %s2048 = smul.addr %s2045, 2
          %s2049 = sadd.s32 %s31, %s2048
          %s2050 = smul.addr %s2049, 8
          %s2051 = scalar_lea.hbm %s4, %s2050
          %s2052 = sshll.u32 %s2036, 4
          %s2053 = int_to_ptr.vmem [resolvable:$true] %s2052
          %s2054 = sshll.u32 %s2051, 4
          %s2055 = int_to_ptr.hbm [resolvable:$true] %s2054
          %2060 = dma.vmem_to_hbm [thread:$0]  %s2053, 1024, %s2055, %s2033, 128, 256, 8
        $region60: #{tpu_custom_call.1} parent=35 // pred_fallthru
          _
      $region36: #{tpu_custom_call.1} parent=5 // pred_fallthru
        _
      %p2061 = scmp.le.s32.totalorder 2, %s22
      // Predicated region
      $region61: #{tpu_custom_call.1} parent=5 // pred_check
        %p2062 = pneg %p2061
      $region62: #{tpu_custom_call.1} parent=5 // pred_check_branch
        %2064 = sbr.rel (%p2062) target = $region64
      $region63: #{tpu_custom_call.1} parent=5 // pred_region
        %s2065 = ssub.s32 %s22, 2
        // Predicated region
        $region65: #{tpu_custom_call.1} parent=63 // pred_check
          %p2066 = pneg %p189
        $region66: #{tpu_custom_call.1} parent=63 // pred_check_branch
          %2068 = sbr.rel (%p2066) target = $region68
        $region67: #{tpu_custom_call.1} parent=63 // pred_region
          %s2069 = sand.u32 %s174, 1
          %s2070 = scalar_lea.sflag [#allocation7], %s2069
          %s2071 = sand.u32 %s174, 1
          %s2072 = smul.addr %s2071, 64
          %s2073 = scalar_lea.vmem [#allocation13], %s2072
          %2075 = dma.done %s2070, 1024
        $region68: #{tpu_custom_call.1} parent=63 // pred_fallthru
          _
      $region64: #{tpu_custom_call.1} parent=5 // pred_fallthru
        _
    $region6: #{tpu_custom_call.1} parent=1 // loop_footer
      %s26 = sadd.s32 1, %s22
    $region7: #{tpu_custom_call.1} parent=1 // loop_footer_branch
      %21 = sbr.rel target = $region3
    $region8: #{tpu_custom_call.1} parent=1 // loop_exit
      _
    %2076 = vsyncpa [#allocation6], 1
    %s2077 = scalar_lea.sflag [#allocation6], 1
    %2078 = vsyncpa %s2077, 1
    %2079 = vsyncpa [#allocation9], 1
    %s2080 = scalar_lea.sflag [#allocation9], 1
    %2081 = vsyncpa %s2080, 1
    %2082 = vsyncpa [#allocation12], 1
    %s2083 = scalar_lea.sflag [#allocation12], 1
    %2084 = vsyncpa %s2083, 1
    %2085 = vsyncpa [#allocation7], 1
    %s2086 = scalar_lea.sflag [#allocation7], 1
    %2087 = vsyncpa %s2086, 1

</llo_original>
